<compile_context>
chip_gen: v7x
topology: tpu7x:2x2x1
jax: 0.10.0
libtpu: 0.0.40
codegen_flags: <defaults>
</compile_context>

<pallas_src>
import functools

import numpy as np
import jax
import jax.numpy as jnp
from jax import lax
from jax.experimental import pallas as pl
from jax.experimental.pallas import tpu as pltpu


# ----------------------------------------------------------------------------
# Fused Pallas kernel: pos-embed + conv1..conv4 for one batch element
# ----------------------------------------------------------------------------
def _decoder_fused_kernel(inp_ref, mask_ref, b0_ref,
                          w1_ref, b1_ref, w2_ref, b2_ref,
                          w3_ref, b3_ref, w4_ref, b4_ref,
                          o_ref,
                          fbuf, patch,
                          *, H, W, CP, MARG):
    f32 = jnp.float32
    HW = H * W

    # Zero only the row-halo margins; the HW interior is fully overwritten every
    # layer.  Done every grid step (safe under 'parallel' megacore sharding).
    fbuf[:, 0:MARG] = jnp.zeros((CP, MARG), f32)
    fbuf[:, MARG + HW:MARG + HW + MARG] = jnp.zeros((CP, MARG), f32)

    # Column-validity masks for horizontal tap offsets ox in [-2..2] (row ox+2).
    masks = [mask_ref[r:r + 1, :] for r in range(5)]          # each (1, HW)

    def set_act(a):                                           # a: (Cin<=CP, HW)
        fbuf[0:a.shape[0], MARG:MARG + HW] = a

    def conv_same(w_ref, b_ref, K, relu):
        """'same' conv as transposed im2col GEMM: (Cout,D) @ (D,HW)."""
        p = K // 2
        D = K * K * CP
        for dy in range(K):                                   # static unroll
            for dx in range(K):
                ox = dx - p
                s = (dy - p) * W + ox                         # flat tap shift
                win = fbuf[:, MARG + s:MARG + s + HW]         # (CP, HW) slab
                if ox != 0:                                   # mask wrapped cols
                    win = win * masks[ox + 2]
                j = dy * K + dx
                patch[j * CP:(j + 1) * CP, :] = win
        acc = jnp.dot(w_ref[...], patch[0:D, :],
                      preferred_element_type=f32) + b_ref[...]   # (Cout, HW)
        return jnp.maximum(acc, 0.0) if relu else acc

    # layer-1 input: [x, grid, zero-pad] channel-first; only +b_embed stays here
    # (w_embed is already composed into w1).
    set_act(inp_ref[0].astype(f32) + b0_ref[...])
    set_act(conv_same(w1_ref, b1_ref, 5, True))
    set_act(conv_same(w2_ref, b2_ref, 5, True))
    set_act(conv_same(w3_ref, b3_ref, 5, True))
    h4 = conv_same(w4_ref, b4_ref, 3, False)                  # (4, HW), lane-dense

    o_ref[...] = h4.reshape(1, 4, HW).astype(o_ref.dtype)


# ----------------------------------------------------------------------------
# One-time parameter preparation (hoisted out of the forward path)
# ----------------------------------------------------------------------------
def prepare_decoder_params(p):
    """ConvTranspose2d(stride=1,'same') == same-Conv with flipped kernel and
    swapped in/out channels.  Weights are flattened tap-major / channel-minor,
    zero-padded to CP input channels, and transposed to (Cout, K*K*CP) so the
    kernel runs each conv as W_t @ patch_t.  The PositionEmbed Linear (w_embed)
    is composed into conv1 over 4 extra 'grid' input channels."""
    S = p["w_embed"].shape[1]
    C = p["b1"].shape[0]
    CP = max(C, S + 4)
    CP = ((CP + 7) // 8) * 8                     # sublane-aligned channel rows

    def to_conv(w_ct):                           # (Cin,Cout,K,K) -> (K,K,Cin,Cout)
        return jnp.flip(w_ct, axis=(2, 3)).transpose(2, 3, 0, 1)

    def flatten_t(w_conv):                       # (K,K,Cin,Cout) -> (Cout,K*K*CP)
        K, _, Cin, Cout = w_conv.shape
        if Cin < CP:
            w_conv = jnp.concatenate(
                [w_conv, jnp.zeros((K, K, CP - Cin, Cout), w_conv.dtype)], axis=2)
        return w_conv.reshape(K * K * CP, Cout).T

    w1c = to_conv(p["w1"])                                     # (5,5,S,C)
    w1g = jnp.einsum("fs,yxsc->yxfc", p["w_embed"], w1c)       # (5,5,4,C)
    w1aug = jnp.concatenate([w1c, w1g], axis=2)                # (5,5,S+4,C)

    b0 = jnp.zeros((CP, 1), jnp.float32).at[:S, 0].set(p["b_embed"])

    return {
        "b0": b0,
        "w1": flatten_t(w1aug),          "b1": p["b1"].reshape(-1, 1),
        "w2": flatten_t(to_conv(p["w2"])), "b2": p["b2"].reshape(-1, 1),
        "w3": flatten_t(to_conv(p["w3"])), "b3": p["b3"].reshape(-1, 1),
        "w4": flatten_t(to_conv(p["w4"])), "b4": p["b4"].reshape(-1, 1),
    }


# ----------------------------------------------------------------------------
# Forward wrapper: tiny input layout plumbing + one pallas_call + free reshape
# ----------------------------------------------------------------------------
def decoder_forward(p, x, grid):
    """x: (B,H,W,slot_size), grid: (B,H,W,4); returns NCHW (B,4,H,W)."""
    B, H, W, S = x.shape
    HW = H * W
    CP = p["b0"].shape[0]
    MARG = 2 * W + 2                              # max |tap shift| for K=5

    # Channel-first, lane-dense input: [x, grid, zero-pad] -> (B, CP, H*W).
    parts = [x, grid]
    extra = CP - (S + 4)
    if extra:
        parts.append(jnp.zeros((B, H, W, extra), x.dtype))
    inp = jnp.concatenate(parts, axis=-1).reshape(B, HW, CP)
    inp = jnp.transpose(inp, (0, 2, 1))           # (B, CP, HW) - tiny layout op

    # Column-validity masks (trace-time numpy constant, ox = row - 2).
    col = np.arange(HW, dtype=np.int64) % W
    mask = np.stack([((col + ox >= 0) & (col + ox < W)).astype(np.float32)
                     for ox in range(-2, 3)])      # (5, HW)
    mask = jnp.asarray(mask)

    kern = functools.partial(_decoder_fused_kernel, H=H, W=W, CP=CP, MARG=MARG)

    def rep(shape):                                # replicated (non-batched) operand
        n = len(shape)
        return pl.BlockSpec(shape, lambda b: (0,) * n)

    out = pl.pallas_call(
        kern,
        out_shape=jax.ShapeDtypeStruct((B, 4, HW), x.dtype),
        grid=(B,),
        in_specs=[
            pl.BlockSpec((1, CP, HW), lambda b: (b, 0, 0)),
            rep(mask.shape), rep(p["b0"].shape),
            rep(p["w1"].shape), rep(p["b1"].shape),
            rep(p["w2"].shape), rep(p["b2"].shape),
            rep(p["w3"].shape), rep(p["b3"].shape),
            rep(p["w4"].shape), rep(p["b4"].shape),
        ],
        out_specs=pl.BlockSpec((1, 4, HW), lambda b: (b, 0, 0)),
        scratch_shapes=[
            pltpu.VMEM((CP, MARG + HW + MARG), jnp.float32),   # flat row-padded act
            pltpu.VMEM((5 * 5 * CP, HW), jnp.float32),         # im2col patch (D,HW)
        ],
        compiler_params=pltpu.CompilerParams(
            dimension_semantics=("parallel",)),   # B -> one image per TC on v7x
    )(inp, mask, p["b0"], p["w1"], p["b1"], p["w2"], p["b2"],
      p["w3"], p["b3"], p["w4"], p["b4"])

    return out.reshape(B, 4, H, W)                # free row-major reshape to NCHW


# ----------------------------------------------------------------------------
# Pure-JAX reference (same math, lax conv) for a sanity check
# ----------------------------------------------------------------------------
def _ref_conv_t_same(x, w_ct, b, relu):
    w_conv = jnp.flip(w_ct, axis=(2, 3)).transpose(2, 3, 0, 1)  # (K,K,Cin,Cout)
    y = lax.conv_general_dilated(
        x, w_conv, window_strides=(1, 1), padding="SAME",
        dimension_numbers=("NHWC", "HWIO", "NHWC"))
    y = y + b
    return jnp.maximum(y, 0.0) if relu else y


def decoder_reference(params, x, grid):
    h = x + jnp.einsum("bhwf,fs->bhws", grid, params["w_embed"]) + params["b_embed"]
    h = _ref_conv_t_same(h, params["w1"], params["b1"], True)
    h = _ref_conv_t_same(h, params["w2"], params["b2"], True)
    h = _ref_conv_t_same(h, params["w3"], params["b3"], True)
    h = _ref_conv_t_same(h, params["w4"], params["b4"], False)
    return jnp.transpose(h, (0, 3, 1, 2))


# ----------------------------------------------------------------------------
# Deterministic parameter init (shapes follow Decoder.__init__, PyTorch layout)
# ----------------------------------------------------------------------------
def init_params(key, hidden_size, slot_size):
    ks = jax.random.split(key, 10)
    def n(k, shape, scale=0.05):
        return (scale * jax.random.normal(k, shape)).astype(jnp.float32)
    return {
        # PositionEmbed: nn.Linear(4, slot_size)  (stored as (4, slot_size))
        "w_embed": n(ks[0], (4, slot_size)),
        "b_embed": n(ks[1], (slot_size,)),
        # ConvTranspose2d weights in PyTorch layout (Cin, Cout, K, K)
        "w1": n(ks[2], (slot_size, hidden_size, 5, 5)),
        "b1": n(ks[3], (hidden_size,)),
        "w2": n(ks[4], (hidden_size, hidden_size, 5, 5)),
        "b2": n(ks[5], (hidden_size,)),
        "w3": n(ks[6], (hidden_size, hidden_size, 5, 5)),
        "b3": n(ks[7], (hidden_size,)),
        "w4": n(ks[8], (hidden_size, 4, 3, 3)),
        "b4": n(ks[9], (4,)),
    }


if __name__ == "__main__":
    B, H, W = 2, 16, 16
    hidden_size, slot_size = 16, 8

    key = jax.random.PRNGKey(0)
    kp, kx, kg = jax.random.split(key, 3)
    params = init_params(kp, hidden_size, slot_size)
    kparams = prepare_decoder_params(params)      # weight transform done ONCE

    x = jax.random.normal(kx, (B, H, W, slot_size), dtype=jnp.float32)
    grid = jax.random.uniform(kg, (B, H, W, 4), dtype=jnp.float32)

    fwd = jax.jit(decoder_forward)
    out = jax.block_until_ready(fwd(kparams, x, grid))
    assert out.shape == (B, 4, H, W), out.shape

    ref = jax.block_until_ready(decoder_reference(params, x, grid))
    err = float(jnp.max(jnp.abs(out - ref)))
    assert jnp.allclose(out, ref, atol=3e-4, rtol=3e-4), err

    print("KERNEL_OK")
</pallas_src>

<mosaic_0001>
module attributes {stable_mosaic.version = 11 : i64} {
  func.func @_decoder_fused_kernel(%arg0: i32, %arg1: memref<1x16x256xf32, #tpu.memory_space<vmem>>, %arg2: memref<5x256xf32, #tpu.memory_space<vmem>>, %arg3: memref<16x1xf32, #tpu.memory_space<vmem>>, %arg4: memref<16x400xf32, #tpu.memory_space<vmem>>, %arg5: memref<16x1xf32, #tpu.memory_space<vmem>>, %arg6: memref<16x400xf32, #tpu.memory_space<vmem>>, %arg7: memref<16x1xf32, #tpu.memory_space<vmem>>, %arg8: memref<16x400xf32, #tpu.memory_space<vmem>>, %arg9: memref<16x1xf32, #tpu.memory_space<vmem>>, %arg10: memref<4x144xf32, #tpu.memory_space<vmem>>, %arg11: memref<4x1xf32, #tpu.memory_space<vmem>>, %arg12: memref<1x4x256xf32, #tpu.memory_space<vmem>>, %arg13: memref<16x324xf32, #tpu.memory_space<vmem>>, %arg14: memref<400x256xf32, #tpu.memory_space<vmem>>) attributes {dimension_semantics = [#tpu.dimension_semantics<parallel>], iteration_bounds = array<i64: 2>, scalar_prefetch = 0 : i64, scratch_operands = 2 : i64, tpu.core_type = #tpu.core_type<tc>, window_params = [{transform_indices = @transform_0, window_bounds = array<i64: 1, 16, 256>}, {pipeline_mode = #tpu.pipeline_mode<synchronous>, transform_indices = @transform_1, window_bounds = array<i64: 5, 256>}, {pipeline_mode = #tpu.pipeline_mode<synchronous>, transform_indices = @transform_2, window_bounds = array<i64: 16, 1>}, {pipeline_mode = #tpu.pipeline_mode<synchronous>, transform_indices = @transform_3, window_bounds = array<i64: 16, 400>}, {pipeline_mode = #tpu.pipeline_mode<synchronous>, transform_indices = @transform_4, window_bounds = array<i64: 16, 1>}, {pipeline_mode = #tpu.pipeline_mode<synchronous>, transform_indices = @transform_5, window_bounds = array<i64: 16, 400>}, {pipeline_mode = #tpu.pipeline_mode<synchronous>, transform_indices = @transform_6, window_bounds = array<i64: 16, 1>}, {pipeline_mode = #tpu.pipeline_mode<synchronous>, transform_indices = @transform_7, window_bounds = array<i64: 16, 400>}, {pipeline_mode = #tpu.pipeline_mode<synchronous>, transform_indices = @transform_8, window_bounds = array<i64: 16, 1>}, {pipeline_mode = #tpu.pipeline_mode<synchronous>, transform_indices = @transform_9, window_bounds = array<i64: 4, 144>}, {pipeline_mode = #tpu.pipeline_mode<synchronous>, transform_indices = @transform_10, window_bounds = array<i64: 4, 1>}, {transform_indices = @transform_11, window_bounds = array<i64: 1, 4, 256>}]} {
    %cst = arith.constant 0.000000e+00 : f32
    %0 = vector.broadcast %cst : f32 to vector<16x34xf32>
    %c0 = arith.constant 0 : index
    %c0_0 = arith.constant 0 : index
    %1 = vector.load %arg13[%c0, %c0_0] : memref<16x324xf32, #tpu.memory_space<vmem>>, vector<16x34xf32>
    tpu.vector_store %arg13[%c0, %c0_0], %0 {strides = array<i32>} : memref<16x324xf32, #tpu.memory_space<vmem>>, vector<16x34xf32>,
    %cst_1 = arith.constant 0.000000e+00 : f32
    %2 = vector.broadcast %cst_1 : f32 to vector<16x34xf32>
    %c0_2 = arith.constant 0 : index
    %c290 = arith.constant 290 : index
    %3 = vector.load %arg13[%c0_2, %c290] : memref<16x324xf32, #tpu.memory_space<vmem>>, vector<16x34xf32>
    tpu.vector_store %arg13[%c0_2, %c290], %2 {strides = array<i32>} : memref<16x324xf32, #tpu.memory_space<vmem>>, vector<16x34xf32>,
    %c0_3 = arith.constant 0 : index
    %c0_4 = arith.constant 0 : index
    %4 = vector.load %arg2[%c0_3, %c0_4] : memref<5x256xf32, #tpu.memory_space<vmem>>, vector<1x256xf32>
    %c1 = arith.constant 1 : index
    %c0_5 = arith.constant 0 : index
    %5 = vector.load %arg2[%c1, %c0_5] : memref<5x256xf32, #tpu.memory_space<vmem>>, vector<1x256xf32>
    %c3 = arith.constant 3 : index
    %c0_6 = arith.constant 0 : index
    %6 = vector.load %arg2[%c3, %c0_6] : memref<5x256xf32, #tpu.memory_space<vmem>>, vector<1x256xf32>
    %c4 = arith.constant 4 : index
    %c0_7 = arith.constant 0 : index
    %7 = vector.load %arg2[%c4, %c0_7] : memref<5x256xf32, #tpu.memory_space<vmem>>, vector<1x256xf32>
    %c0_8 = arith.constant 0 : index
    %c0_9 = arith.constant 0 : index
    %c0_10 = arith.constant 0 : index
    %8 = vector.load %arg1[%c0_8, %c0_9, %c0_10] : memref<1x16x256xf32, #tpu.memory_space<vmem>>, vector<1x16x256xf32>
    %9 = vector.shape_cast %8 : vector<1x16x256xf32> to vector<16x256xf32>
    %c0_11 = arith.constant 0 : index
    %c0_12 = arith.constant 0 : index
    %10 = vector.load %arg3[%c0_11, %c0_12] : memref<16x1xf32, #tpu.memory_space<vmem>>, vector<16x1xf32>
    %11 = vector.broadcast %10 : vector<16x1xf32> to vector<16x256xf32>
    %12 = arith.addf %9, %11 : vector<16x256xf32>
    %c0_13 = arith.constant 0 : index
    %c34 = arith.constant 34 : index
    %13 = vector.load %arg13[%c0_13, %c34] : memref<16x324xf32, #tpu.memory_space<vmem>>, vector<16x256xf32>
    tpu.vector_store %arg13[%c0_13, %c34], %12 {strides = array<i32>} : memref<16x324xf32, #tpu.memory_space<vmem>>, vector<16x256xf32>,
    %c0_14 = arith.constant 0 : index
    %c0_15 = arith.constant 0 : index
    %14 = vector.load %arg13[%c0_14, %c0_15] : memref<16x324xf32, #tpu.memory_space<vmem>>, vector<16x256xf32>
    %15 = vector.broadcast %4 : vector<1x256xf32> to vector<16x256xf32>
    %16 = arith.mulf %14, %15 : vector<16x256xf32>
    %c0_16 = arith.constant 0 : index
    %c0_17 = arith.constant 0 : index
    %17 = vector.load %arg14[%c0_16, %c0_17] : memref<400x256xf32, #tpu.memory_space<vmem>>, vector<16x256xf32>
    tpu.vector_store %arg14[%c0_16, %c0_17], %16 {strides = array<i32>} : memref<400x256xf32, #tpu.memory_space<vmem>>, vector<16x256xf32>,
    %c0_18 = arith.constant 0 : index
    %c1_19 = arith.constant 1 : index
    %18 = vector.load %arg13[%c0_18, %c1_19] : memref<16x324xf32, #tpu.memory_space<vmem>>, vector<16x256xf32>
    %19 = vector.broadcast %5 : vector<1x256xf32> to vector<16x256xf32>
    %20 = arith.mulf %18, %19 : vector<16x256xf32>
    %c16 = arith.constant 16 : index
    %c0_20 = arith.constant 0 : index
    %21 = vector.load %arg14[%c16, %c0_20] : memref<400x256xf32, #tpu.memory_space<vmem>>, vector<16x256xf32>
    tpu.vector_store %arg14[%c16, %c0_20], %20 {strides = array<i32>} : memref<400x256xf32, #tpu.memory_space<vmem>>, vector<16x256xf32>,
    %c0_21 = arith.constant 0 : index
    %c2 = arith.constant 2 : index
    %22 = vector.load %arg13[%c0_21, %c2] : memref<16x324xf32, #tpu.memory_space<vmem>>, vector<16x256xf32>
    %c32 = arith.constant 32 : index
    %c0_22 = arith.constant 0 : index
    %23 = vector.load %arg14[%c32, %c0_22] : memref<400x256xf32, #tpu.memory_space<vmem>>, vector<16x256xf32>
    tpu.vector_store %arg14[%c32, %c0_22], %22 {strides = array<i32>} : memref<400x256xf32, #tpu.memory_space<vmem>>, vector<16x256xf32>,
    %c0_23 = arith.constant 0 : index
    %c3_24 = arith.constant 3 : index
    %24 = vector.load %arg13[%c0_23, %c3_24] : memref<16x324xf32, #tpu.memory_space<vmem>>, vector<16x256xf32>
    %25 = vector.broadcast %6 : vector<1x256xf32> to vector<16x256xf32>
    %26 = arith.mulf %24, %25 : vector<16x256xf32>
    %c48 = arith.constant 48 : index
    %c0_25 = arith.constant 0 : index
    %27 = vector.load %arg14[%c48, %c0_25] : memref<400x256xf32, #tpu.memory_space<vmem>>, vector<16x256xf32>
    tpu.vector_store %arg14[%c48, %c0_25], %26 {strides = array<i32>} : memref<400x256xf32, #tpu.memory_space<vmem>>, vector<16x256xf32>,
    %c0_26 = arith.constant 0 : index
    %c4_27 = arith.constant 4 : index
    %28 = vector.load %arg13[%c0_26, %c4_27] : memref<16x324xf32, #tpu.memory_space<vmem>>, vector<16x256xf32>
    %29 = vector.broadcast %7 : vector<1x256xf32> to vector<16x256xf32>
    %30 = arith.mulf %28, %29 : vector<16x256xf32>
    %c64 = arith.constant 64 : index
    %c0_28 = arith.constant 0 : index
    %31 = vector.load %arg14[%c64, %c0_28] : memref<400x256xf32, #tpu.memory_space<vmem>>, vector<16x256xf32>
    tpu.vector_store %arg14[%c64, %c0_28], %30 {strides = array<i32>} : memref<400x256xf32, #tpu.memory_space<vmem>>, vector<16x256xf32>,
    %c0_29 = arith.constant 0 : index
    %c16_30 = arith.constant 16 : index
    %32 = vector.load %arg13[%c0_29, %c16_30] : memref<16x324xf32, #tpu.memory_space<vmem>>, vector<16x256xf32>
    %33 = vector.broadcast %4 : vector<1x256xf32> to vector<16x256xf32>
    %34 = arith.mulf %32, %33 : vector<16x256xf32>
    %c80 = arith.constant 80 : index
    %c0_31 = arith.constant 0 : index
    %35 = vector.load %arg14[%c80, %c0_31] : memref<400x256xf32, #tpu.memory_space<vmem>>, vector<16x256xf32>
    tpu.vector_store %arg14[%c80, %c0_31], %34 {strides = array<i32>} : memref<400x256xf32, #tpu.memory_space<vmem>>, vector<16x256xf32>,
    %c0_32 = arith.constant 0 : index
    %c17 = arith.constant 17 : index
    %36 = vector.load %arg13[%c0_32, %c17] : memref<16x324xf32, #tpu.memory_space<vmem>>, vector<16x256xf32>
    %37 = vector.broadcast %5 : vector<1x256xf32> to vector<16x256xf32>
    %38 = arith.mulf %36, %37 : vector<16x256xf32>
    %c96 = arith.constant 96 : index
    %c0_33 = arith.constant 0 : index
    %39 = vector.load %arg14[%c96, %c0_33] : memref<400x256xf32, #tpu.memory_space<vmem>>, vector<16x256xf32>
    tpu.vector_store %arg14[%c96, %c0_33], %38 {strides = array<i32>} : memref<400x256xf32, #tpu.memory_space<vmem>>, vector<16x256xf32>,
    %c0_34 = arith.constant 0 : index
    %c18 = arith.constant 18 : index
    %40 = vector.load %arg13[%c0_34, %c18] : memref<16x324xf32, #tpu.memory_space<vmem>>, vector<16x256xf32>
    %c112 = arith.constant 112 : index
    %c0_35 = arith.constant 0 : index
    %41 = vector.load %arg14[%c112, %c0_35] : memref<400x256xf32, #tpu.memory_space<vmem>>, vector<16x256xf32>
    tpu.vector_store %arg14[%c112, %c0_35], %40 {strides = array<i32>} : memref<400x256xf32, #tpu.memory_space<vmem>>, vector<16x256xf32>,
    %c0_36 = arith.constant 0 : index
    %c19 = arith.constant 19 : index
    %42 = vector.load %arg13[%c0_36, %c19] : memref<16x324xf32, #tpu.memory_space<vmem>>, vector<16x256xf32>
    %43 = vector.broadcast %6 : vector<1x256xf32> to vector<16x256xf32>
    %44 = arith.mulf %42, %43 : vector<16x256xf32>
    %c128 = arith.constant 128 : index
    %c0_37 = arith.constant 0 : index
    %45 = vector.load %arg14[%c128, %c0_37] : memref<400x256xf32, #tpu.memory_space<vmem>>, vector<16x256xf32>
    tpu.vector_store %arg14[%c128, %c0_37], %44 {strides = array<i32>} : memref<400x256xf32, #tpu.memory_space<vmem>>, vector<16x256xf32>,
    %c0_38 = arith.constant 0 : index
    %c20 = arith.constant 20 : index
    %46 = vector.load %arg13[%c0_38, %c20] : memref<16x324xf32, #tpu.memory_space<vmem>>, vector<16x256xf32>
    %47 = vector.broadcast %7 : vector<1x256xf32> to vector<16x256xf32>
    %48 = arith.mulf %46, %47 : vector<16x256xf32>
    %c144 = arith.constant 144 : index
    %c0_39 = arith.constant 0 : index
    %49 = vector.load %arg14[%c144, %c0_39] : memref<400x256xf32, #tpu.memory_space<vmem>>, vector<16x256xf32>
    tpu.vector_store %arg14[%c144, %c0_39], %48 {strides = array<i32>} : memref<400x256xf32, #tpu.memory_space<vmem>>, vector<16x256xf32>,
    %c0_40 = arith.constant 0 : index
    %c32_41 = arith.constant 32 : index
    %50 = vector.load %arg13[%c0_40, %c32_41] : memref<16x324xf32, #tpu.memory_space<vmem>>, vector<16x256xf32>
    %51 = vector.broadcast %4 : vector<1x256xf32> to vector<16x256xf32>
    %52 = arith.mulf %50, %51 : vector<16x256xf32>
    %c160 = arith.constant 160 : index
    %c0_42 = arith.constant 0 : index
    %53 = vector.load %arg14[%c160, %c0_42] : memref<400x256xf32, #tpu.memory_space<vmem>>, vector<16x256xf32>
    tpu.vector_store %arg14[%c160, %c0_42], %52 {strides = array<i32>} : memref<400x256xf32, #tpu.memory_space<vmem>>, vector<16x256xf32>,
    %c0_43 = arith.constant 0 : index
    %c33 = arith.constant 33 : index
    %54 = vector.load %arg13[%c0_43, %c33] : memref<16x324xf32, #tpu.memory_space<vmem>>, vector<16x256xf32>
    %55 = vector.broadcast %5 : vector<1x256xf32> to vector<16x256xf32>
    %56 = arith.mulf %54, %55 : vector<16x256xf32>
    %c176 = arith.constant 176 : index
    %c0_44 = arith.constant 0 : index
    %57 = vector.load %arg14[%c176, %c0_44] : memref<400x256xf32, #tpu.memory_space<vmem>>, vector<16x256xf32>
    tpu.vector_store %arg14[%c176, %c0_44], %56 {strides = array<i32>} : memref<400x256xf32, #tpu.memory_space<vmem>>, vector<16x256xf32>,
    %c0_45 = arith.constant 0 : index
    %c34_46 = arith.constant 34 : index
    %58 = vector.load %arg13[%c0_45, %c34_46] : memref<16x324xf32, #tpu.memory_space<vmem>>, vector<16x256xf32>
    %c192 = arith.constant 192 : index
    %c0_47 = arith.constant 0 : index
    %59 = vector.load %arg14[%c192, %c0_47] : memref<400x256xf32, #tpu.memory_space<vmem>>, vector<16x256xf32>
    tpu.vector_store %arg14[%c192, %c0_47], %58 {strides = array<i32>} : memref<400x256xf32, #tpu.memory_space<vmem>>, vector<16x256xf32>,
    %c0_48 = arith.constant 0 : index
    %c35 = arith.constant 35 : index
    %60 = vector.load %arg13[%c0_48, %c35] : memref<16x324xf32, #tpu.memory_space<vmem>>, vector<16x256xf32>
    %61 = vector.broadcast %6 : vector<1x256xf32> to vector<16x256xf32>
    %62 = arith.mulf %60, %61 : vector<16x256xf32>
    %c208 = arith.constant 208 : index
    %c0_49 = arith.constant 0 : index
    %63 = vector.load %arg14[%c208, %c0_49] : memref<400x256xf32, #tpu.memory_space<vmem>>, vector<16x256xf32>
    tpu.vector_store %arg14[%c208, %c0_49], %62 {strides = array<i32>} : memref<400x256xf32, #tpu.memory_space<vmem>>, vector<16x256xf32>,
    %c0_50 = arith.constant 0 : index
    %c36 = arith.constant 36 : index
    %64 = vector.load %arg13[%c0_50, %c36] : memref<16x324xf32, #tpu.memory_space<vmem>>, vector<16x256xf32>
    %65 = vector.broadcast %7 : vector<1x256xf32> to vector<16x256xf32>
    %66 = arith.mulf %64, %65 : vector<16x256xf32>
    %c224 = arith.constant 224 : index
    %c0_51 = arith.constant 0 : index
    %67 = vector.load %arg14[%c224, %c0_51] : memref<400x256xf32, #tpu.memory_space<vmem>>, vector<16x256xf32>
    tpu.vector_store %arg14[%c224, %c0_51], %66 {strides = array<i32>} : memref<400x256xf32, #tpu.memory_space<vmem>>, vector<16x256xf32>,
    %c0_52 = arith.constant 0 : index
    %c48_53 = arith.constant 48 : index
    %68 = vector.load %arg13[%c0_52, %c48_53] : memref<16x324xf32, #tpu.memory_space<vmem>>, vector<16x256xf32>
    %69 = vector.broadcast %4 : vector<1x256xf32> to vector<16x256xf32>
    %70 = arith.mulf %68, %69 : vector<16x256xf32>
    %c240 = arith.constant 240 : index
    %c0_54 = arith.constant 0 : index
    %71 = vector.load %arg14[%c240, %c0_54] : memref<400x256xf32, #tpu.memory_space<vmem>>, vector<16x256xf32>
    tpu.vector_store %arg14[%c240, %c0_54], %70 {strides = array<i32>} : memref<400x256xf32, #tpu.memory_space<vmem>>, vector<16x256xf32>,
    %c0_55 = arith.constant 0 : index
    %c49 = arith.constant 49 : index
    %72 = vector.load %arg13[%c0_55, %c49] : memref<16x324xf32, #tpu.memory_space<vmem>>, vector<16x256xf32>
    %73 = vector.broadcast %5 : vector<1x256xf32> to vector<16x256xf32>
    %74 = arith.mulf %72, %73 : vector<16x256xf32>
    %c256 = arith.constant 256 : index
    %c0_56 = arith.constant 0 : index
    %75 = vector.load %arg14[%c256, %c0_56] : memref<400x256xf32, #tpu.memory_space<vmem>>, vector<16x256xf32>
    tpu.vector_store %arg14[%c256, %c0_56], %74 {strides = array<i32>} : memref<400x256xf32, #tpu.memory_space<vmem>>, vector<16x256xf32>,
    %c0_57 = arith.constant 0 : index
    %c50 = arith.constant 50 : index
    %76 = vector.load %arg13[%c0_57, %c50] : memref<16x324xf32, #tpu.memory_space<vmem>>, vector<16x256xf32>
    %c272 = arith.constant 272 : index
    %c0_58 = arith.constant 0 : index
    %77 = vector.load %arg14[%c272, %c0_58] : memref<400x256xf32, #tpu.memory_space<vmem>>, vector<16x256xf32>
    tpu.vector_store %arg14[%c272, %c0_58], %76 {strides = array<i32>} : memref<400x256xf32, #tpu.memory_space<vmem>>, vector<16x256xf32>,
    %c0_59 = arith.constant 0 : index
    %c51 = arith.constant 51 : index
    %78 = vector.load %arg13[%c0_59, %c51] : memref<16x324xf32, #tpu.memory_space<vmem>>, vector<16x256xf32>
    %79 = vector.broadcast %6 : vector<1x256xf32> to vector<16x256xf32>
    %80 = arith.mulf %78, %79 : vector<16x256xf32>
    %c288 = arith.constant 288 : index
    %c0_60 = arith.constant 0 : index
    %81 = vector.load %arg14[%c288, %c0_60] : memref<400x256xf32, #tpu.memory_space<vmem>>, vector<16x256xf32>
    tpu.vector_store %arg14[%c288, %c0_60], %80 {strides = array<i32>} : memref<400x256xf32, #tpu.memory_space<vmem>>, vector<16x256xf32>,
    %c0_61 = arith.constant 0 : index
    %c52 = arith.constant 52 : index
    %82 = vector.load %arg13[%c0_61, %c52] : memref<16x324xf32, #tpu.memory_space<vmem>>, vector<16x256xf32>
    %83 = vector.broadcast %7 : vector<1x256xf32> to vector<16x256xf32>
    %84 = arith.mulf %82, %83 : vector<16x256xf32>
    %c304 = arith.constant 304 : index
    %c0_62 = arith.constant 0 : index
    %85 = vector.load %arg14[%c304, %c0_62] : memref<400x256xf32, #tpu.memory_space<vmem>>, vector<16x256xf32>
    tpu.vector_store %arg14[%c304, %c0_62], %84 {strides = array<i32>} : memref<400x256xf32, #tpu.memory_space<vmem>>, vector<16x256xf32>,
    %c0_63 = arith.constant 0 : index
    %c64_64 = arith.constant 64 : index
    %86 = vector.load %arg13[%c0_63, %c64_64] : memref<16x324xf32, #tpu.memory_space<vmem>>, vector<16x256xf32>
    %87 = vector.broadcast %4 : vector<1x256xf32> to vector<16x256xf32>
    %88 = arith.mulf %86, %87 : vector<16x256xf32>
    %c320 = arith.constant 320 : index
    %c0_65 = arith.constant 0 : index
    %89 = vector.load %arg14[%c320, %c0_65] : memref<400x256xf32, #tpu.memory_space<vmem>>, vector<16x256xf32>
    tpu.vector_store %arg14[%c320, %c0_65], %88 {strides = array<i32>} : memref<400x256xf32, #tpu.memory_space<vmem>>, vector<16x256xf32>,
    %c0_66 = arith.constant 0 : index
    %c65 = arith.constant 65 : index
    %90 = vector.load %arg13[%c0_66, %c65] : memref<16x324xf32, #tpu.memory_space<vmem>>, vector<16x256xf32>
    %91 = vector.broadcast %5 : vector<1x256xf32> to vector<16x256xf32>
    %92 = arith.mulf %90, %91 : vector<16x256xf32>
    %c336 = arith.constant 336 : index
    %c0_67 = arith.constant 0 : index
    %93 = vector.load %arg14[%c336, %c0_67] : memref<400x256xf32, #tpu.memory_space<vmem>>, vector<16x256xf32>
    tpu.vector_store %arg14[%c336, %c0_67], %92 {strides = array<i32>} : memref<400x256xf32, #tpu.memory_space<vmem>>, vector<16x256xf32>,
    %c0_68 = arith.constant 0 : index
    %c66 = arith.constant 66 : index
    %94 = vector.load %arg13[%c0_68, %c66] : memref<16x324xf32, #tpu.memory_space<vmem>>, vector<16x256xf32>
    %c352 = arith.constant 352 : index
    %c0_69 = arith.constant 0 : index
    %95 = vector.load %arg14[%c352, %c0_69] : memref<400x256xf32, #tpu.memory_space<vmem>>, vector<16x256xf32>
    tpu.vector_store %arg14[%c352, %c0_69], %94 {strides = array<i32>} : memref<400x256xf32, #tpu.memory_space<vmem>>, vector<16x256xf32>,
    %c0_70 = arith.constant 0 : index
    %c67 = arith.constant 67 : index
    %96 = vector.load %arg13[%c0_70, %c67] : memref<16x324xf32, #tpu.memory_space<vmem>>, vector<16x256xf32>
    %97 = vector.broadcast %6 : vector<1x256xf32> to vector<16x256xf32>
    %98 = arith.mulf %96, %97 : vector<16x256xf32>
    %c368 = arith.constant 368 : index
    %c0_71 = arith.constant 0 : index
    %99 = vector.load %arg14[%c368, %c0_71] : memref<400x256xf32, #tpu.memory_space<vmem>>, vector<16x256xf32>
    tpu.vector_store %arg14[%c368, %c0_71], %98 {strides = array<i32>} : memref<400x256xf32, #tpu.memory_space<vmem>>, vector<16x256xf32>,
    %c0_72 = arith.constant 0 : index
    %c68 = arith.constant 68 : index
    %100 = vector.load %arg13[%c0_72, %c68] : memref<16x324xf32, #tpu.memory_space<vmem>>, vector<16x256xf32>
    %101 = vector.broadcast %7 : vector<1x256xf32> to vector<16x256xf32>
    %102 = arith.mulf %100, %101 : vector<16x256xf32>
    %c384 = arith.constant 384 : index
    %c0_73 = arith.constant 0 : index
    %103 = vector.load %arg14[%c384, %c0_73] : memref<400x256xf32, #tpu.memory_space<vmem>>, vector<16x256xf32>
    tpu.vector_store %arg14[%c384, %c0_73], %102 {strides = array<i32>} : memref<400x256xf32, #tpu.memory_space<vmem>>, vector<16x256xf32>,
    %c0_74 = arith.constant 0 : index
    %c0_75 = arith.constant 0 : index
    %104 = vector.load %arg4[%c0_74, %c0_75] : memref<16x400xf32, #tpu.memory_space<vmem>>, vector<16x400xf32>
    %c0_76 = arith.constant 0 : index
    %c0_77 = arith.constant 0 : index
    %105 = vector.load %arg14[%c0_76, %c0_77] : memref<400x256xf32, #tpu.memory_space<vmem>>, vector<400x256xf32>
    %cst_78 = arith.constant dense<0.000000e+00> : vector<16x256xf32>
    %106 = tpu.matmul %104, %105, %cst_78 {dimension_numbers = #tpu.dot_dimension_numbers<[1], [0], [0], [1], [0, 0, 1, 1], [], []>} : vector<16x400xf32>, vector<400x256xf32>, vector<16x256xf32> -> vector<16x256xf32>
    %c0_79 = arith.constant 0 : index
    %c0_80 = arith.constant 0 : index
    %107 = vector.load %arg5[%c0_79, %c0_80] : memref<16x1xf32, #tpu.memory_space<vmem>>, vector<16x1xf32>
    %108 = vector.broadcast %107 : vector<16x1xf32> to vector<16x256xf32>
    %109 = arith.addf %106, %108 : vector<16x256xf32>
    %cst_81 = arith.constant 0.000000e+00 : f32
    %110 = vector.broadcast %cst_81 : f32 to vector<16x256xf32>
    %111 = arith.maximumf %109, %110 : vector<16x256xf32>
    %c0_82 = arith.constant 0 : index
    %c34_83 = arith.constant 34 : index
    %112 = vector.load %arg13[%c0_82, %c34_83] : memref<16x324xf32, #tpu.memory_space<vmem>>, vector<16x256xf32>
    tpu.vector_store %arg13[%c0_82, %c34_83], %111 {strides = array<i32>} : memref<16x324xf32, #tpu.memory_space<vmem>>, vector<16x256xf32>,
    %c0_84 = arith.constant 0 : index
    %c0_85 = arith.constant 0 : index
    %113 = vector.load %arg13[%c0_84, %c0_85] : memref<16x324xf32, #tpu.memory_space<vmem>>, vector<16x256xf32>
    %114 = vector.broadcast %4 : vector<1x256xf32> to vector<16x256xf32>
    %115 = arith.mulf %113, %114 : vector<16x256xf32>
    %c0_86 = arith.constant 0 : index
    %c0_87 = arith.constant 0 : index
    %116 = vector.load %arg14[%c0_86, %c0_87] : memref<400x256xf32, #tpu.memory_space<vmem>>, vector<16x256xf32>
    tpu.vector_store %arg14[%c0_86, %c0_87], %115 {strides = array<i32>} : memref<400x256xf32, #tpu.memory_space<vmem>>, vector<16x256xf32>,
    %c0_88 = arith.constant 0 : index
    %c1_89 = arith.constant 1 : index
    %117 = vector.load %arg13[%c0_88, %c1_89] : memref<16x324xf32, #tpu.memory_space<vmem>>, vector<16x256xf32>
    %118 = vector.broadcast %5 : vector<1x256xf32> to vector<16x256xf32>
    %119 = arith.mulf %117, %118 : vector<16x256xf32>
    %c16_90 = arith.constant 16 : index
    %c0_91 = arith.constant 0 : index
    %120 = vector.load %arg14[%c16_90, %c0_91] : memref<400x256xf32, #tpu.memory_space<vmem>>, vector<16x256xf32>
    tpu.vector_store %arg14[%c16_90, %c0_91], %119 {strides = array<i32>} : memref<400x256xf32, #tpu.memory_space<vmem>>, vector<16x256xf32>,
    %c0_92 = arith.constant 0 : index
    %c2_93 = arith.constant 2 : index
    %121 = vector.load %arg13[%c0_92, %c2_93] : memref<16x324xf32, #tpu.memory_space<vmem>>, vector<16x256xf32>
    %c32_94 = arith.constant 32 : index
    %c0_95 = arith.constant 0 : index
    %122 = vector.load %arg14[%c32_94, %c0_95] : memref<400x256xf32, #tpu.memory_space<vmem>>, vector<16x256xf32>
    tpu.vector_store %arg14[%c32_94, %c0_95], %121 {strides = array<i32>} : memref<400x256xf32, #tpu.memory_space<vmem>>, vector<16x256xf32>,
    %c0_96 = arith.constant 0 : index
    %c3_97 = arith.constant 3 : index
    %123 = vector.load %arg13[%c0_96, %c3_97] : memref<16x324xf32, #tpu.memory_space<vmem>>, vector<16x256xf32>
    %124 = vector.broadcast %6 : vector<1x256xf32> to vector<16x256xf32>
    %125 = arith.mulf %123, %124 : vector<16x256xf32>
    %c48_98 = arith.constant 48 : index
    %c0_99 = arith.constant 0 : index
    %126 = vector.load %arg14[%c48_98, %c0_99] : memref<400x256xf32, #tpu.memory_space<vmem>>, vector<16x256xf32>
    tpu.vector_store %arg14[%c48_98, %c0_99], %125 {strides = array<i32>} : memref<400x256xf32, #tpu.memory_space<vmem>>, vector<16x256xf32>,
    %c0_100 = arith.constant 0 : index
    %c4_101 = arith.constant 4 : index
    %127 = vector.load %arg13[%c0_100, %c4_101] : memref<16x324xf32, #tpu.memory_space<vmem>>, vector<16x256xf32>
    %128 = vector.broadcast %7 : vector<1x256xf32> to vector<16x256xf32>
    %129 = arith.mulf %127, %128 : vector<16x256xf32>
    %c64_102 = arith.constant 64 : index
    %c0_103 = arith.constant 0 : index
    %130 = vector.load %arg14[%c64_102, %c0_103] : memref<400x256xf32, #tpu.memory_space<vmem>>, vector<16x256xf32>
    tpu.vector_store %arg14[%c64_102, %c0_103], %129 {strides = array<i32>} : memref<400x256xf32, #tpu.memory_space<vmem>>, vector<16x256xf32>,
    %c0_104 = arith.constant 0 : index
    %c16_105 = arith.constant 16 : index
    %131 = vector.load %arg13[%c0_104, %c16_105] : memref<16x324xf32, #tpu.memory_space<vmem>>, vector<16x256xf32>
    %132 = vector.broadcast %4 : vector<1x256xf32> to vector<16x256xf32>
    %133 = arith.mulf %131, %132 : vector<16x256xf32>
    %c80_106 = arith.constant 80 : index
    %c0_107 = arith.constant 0 : index
    %134 = vector.load %arg14[%c80_106, %c0_107] : memref<400x256xf32, #tpu.memory_space<vmem>>, vector<16x256xf32>
    tpu.vector_store %arg14[%c80_106, %c0_107], %133 {strides = array<i32>} : memref<400x256xf32, #tpu.memory_space<vmem>>, vector<16x256xf32>,
    %c0_108 = arith.constant 0 : index
    %c17_109 = arith.constant 17 : index
    %135 = vector.load %arg13[%c0_108, %c17_109] : memref<16x324xf32, #tpu.memory_space<vmem>>, vector<16x256xf32>
    %136 = vector.broadcast %5 : vector<1x256xf32> to vector<16x256xf32>
    %137 = arith.mulf %135, %136 : vector<16x256xf32>
    %c96_110 = arith.constant 96 : index
    %c0_111 = arith.constant 0 : index
    %138 = vector.load %arg14[%c96_110, %c0_111] : memref<400x256xf32, #tpu.memory_space<vmem>>, vector<16x256xf32>
    tpu.vector_store %arg14[%c96_110, %c0_111], %137 {strides = array<i32>} : memref<400x256xf32, #tpu.memory_space<vmem>>, vector<16x256xf32>,
    %c0_112 = arith.constant 0 : index
    %c18_113 = arith.constant 18 : index
    %139 = vector.load %arg13[%c0_112, %c18_113] : memref<16x324xf32, #tpu.memory_space<vmem>>, vector<16x256xf32>
    %c112_114 = arith.constant 112 : index
    %c0_115 = arith.constant 0 : index
    %140 = vector.load %arg14[%c112_114, %c0_115] : memref<400x256xf32, #tpu.memory_space<vmem>>, vector<16x256xf32>
    tpu.vector_store %arg14[%c112_114, %c0_115], %139 {strides = array<i32>} : memref<400x256xf32, #tpu.memory_space<vmem>>, vector<16x256xf32>,
    %c0_116 = arith.constant 0 : index
    %c19_117 = arith.constant 19 : index
    %141 = vector.load %arg13[%c0_116, %c19_117] : memref<16x324xf32, #tpu.memory_space<vmem>>, vector<16x256xf32>
    %142 = vector.broadcast %6 : vector<1x256xf32> to vector<16x256xf32>
    %143 = arith.mulf %141, %142 : vector<16x256xf32>
    %c128_118 = arith.constant 128 : index
    %c0_119 = arith.constant 0 : index
    %144 = vector.load %arg14[%c128_118, %c0_119] : memref<400x256xf32, #tpu.memory_space<vmem>>, vector<16x256xf32>
    tpu.vector_store %arg14[%c128_118, %c0_119], %143 {strides = array<i32>} : memref<400x256xf32, #tpu.memory_space<vmem>>, vector<16x256xf32>,
    %c0_120 = arith.constant 0 : index
    %c20_121 = arith.constant 20 : index
    %145 = vector.load %arg13[%c0_120, %c20_121] : memref<16x324xf32, #tpu.memory_space<vmem>>, vector<16x256xf32>
    %146 = vector.broadcast %7 : vector<1x256xf32> to vector<16x256xf32>
    %147 = arith.mulf %145, %146 : vector<16x256xf32>
    %c144_122 = arith.constant 144 : index
    %c0_123 = arith.constant 0 : index
    %148 = vector.load %arg14[%c144_122, %c0_123] : memref<400x256xf32, #tpu.memory_space<vmem>>, vector<16x256xf32>
    tpu.vector_store %arg14[%c144_122, %c0_123], %147 {strides = array<i32>} : memref<400x256xf32, #tpu.memory_space<vmem>>, vector<16x256xf32>,
    %c0_124 = arith.constant 0 : index
    %c32_125 = arith.constant 32 : index
    %149 = vector.load %arg13[%c0_124, %c32_125] : memref<16x324xf32, #tpu.memory_space<vmem>>, vector<16x256xf32>
    %150 = vector.broadcast %4 : vector<1x256xf32> to vector<16x256xf32>
    %151 = arith.mulf %149, %150 : vector<16x256xf32>
    %c160_126 = arith.constant 160 : index
    %c0_127 = arith.constant 0 : index
    %152 = vector.load %arg14[%c160_126, %c0_127] : memref<400x256xf32, #tpu.memory_space<vmem>>, vector<16x256xf32>
    tpu.vector_store %arg14[%c160_126, %c0_127], %151 {strides = array<i32>} : memref<400x256xf32, #tpu.memory_space<vmem>>, vector<16x256xf32>,
    %c0_128 = arith.constant 0 : index
    %c33_129 = arith.constant 33 : index
    %153 = vector.load %arg13[%c0_128, %c33_129] : memref<16x324xf32, #tpu.memory_space<vmem>>, vector<16x256xf32>
    %154 = vector.broadcast %5 : vector<1x256xf32> to vector<16x256xf32>
    %155 = arith.mulf %153, %154 : vector<16x256xf32>
    %c176_130 = arith.constant 176 : index
    %c0_131 = arith.constant 0 : index
    %156 = vector.load %arg14[%c176_130, %c0_131] : memref<400x256xf32, #tpu.memory_space<vmem>>, vector<16x256xf32>
    tpu.vector_store %arg14[%c176_130, %c0_131], %155 {strides = array<i32>} : memref<400x256xf32, #tpu.memory_space<vmem>>, vector<16x256xf32>,
    %c0_132 = arith.constant 0 : index
    %c34_133 = arith.constant 34 : index
    %157 = vector.load %arg13[%c0_132, %c34_133] : memref<16x324xf32, #tpu.memory_space<vmem>>, vector<16x256xf32>
    %c192_134 = arith.constant 192 : index
    %c0_135 = arith.constant 0 : index
    %158 = vector.load %arg14[%c192_134, %c0_135] : memref<400x256xf32, #tpu.memory_space<vmem>>, vector<16x256xf32>
    tpu.vector_store %arg14[%c192_134, %c0_135], %157 {strides = array<i32>} : memref<400x256xf32, #tpu.memory_space<vmem>>, vector<16x256xf32>,
    %c0_136 = arith.constant 0 : index
    %c35_137 = arith.constant 35 : index
    %159 = vector.load %arg13[%c0_136, %c35_137] : memref<16x324xf32, #tpu.memory_space<vmem>>, vector<16x256xf32>
    %160 = vector.broadcast %6 : vector<1x256xf32> to vector<16x256xf32>
    %161 = arith.mulf %159, %160 : vector<16x256xf32>
    %c208_138 = arith.constant 208 : index
    %c0_139 = arith.constant 0 : index
    %162 = vector.load %arg14[%c208_138, %c0_139] : memref<400x256xf32, #tpu.memory_space<vmem>>, vector<16x256xf32>
    tpu.vector_store %arg14[%c208_138, %c0_139], %161 {strides = array<i32>} : memref<400x256xf32, #tpu.memory_space<vmem>>, vector<16x256xf32>,
    %c0_140 = arith.constant 0 : index
    %c36_141 = arith.constant 36 : index
    %163 = vector.load %arg13[%c0_140, %c36_141] : memref<16x324xf32, #tpu.memory_space<vmem>>, vector<16x256xf32>
    %164 = vector.broadcast %7 : vector<1x256xf32> to vector<16x256xf32>
    %165 = arith.mulf %163, %164 : vector<16x256xf32>
    %c224_142 = arith.constant 224 : index
    %c0_143 = arith.constant 0 : index
    %166 = vector.load %arg14[%c224_142, %c0_143] : memref<400x256xf32, #tpu.memory_space<vmem>>, vector<16x256xf32>
    tpu.vector_store %arg14[%c224_142, %c0_143], %165 {strides = array<i32>} : memref<400x256xf32, #tpu.memory_space<vmem>>, vector<16x256xf32>,
    %c0_144 = arith.constant 0 : index
    %c48_145 = arith.constant 48 : index
    %167 = vector.load %arg13[%c0_144, %c48_145] : memref<16x324xf32, #tpu.memory_space<vmem>>, vector<16x256xf32>
    %168 = vector.broadcast %4 : vector<1x256xf32> to vector<16x256xf32>
    %169 = arith.mulf %167, %168 : vector<16x256xf32>
    %c240_146 = arith.constant 240 : index
    %c0_147 = arith.constant 0 : index
    %170 = vector.load %arg14[%c240_146, %c0_147] : memref<400x256xf32, #tpu.memory_space<vmem>>, vector<16x256xf32>
    tpu.vector_store %arg14[%c240_146, %c0_147], %169 {strides = array<i32>} : memref<400x256xf32, #tpu.memory_space<vmem>>, vector<16x256xf32>,
    %c0_148 = arith.constant 0 : index
    %c49_149 = arith.constant 49 : index
    %171 = vector.load %arg13[%c0_148, %c49_149] : memref<16x324xf32, #tpu.memory_space<vmem>>, vector<16x256xf32>
    %172 = vector.broadcast %5 : vector<1x256xf32> to vector<16x256xf32>
    %173 = arith.mulf %171, %172 : vector<16x256xf32>
    %c256_150 = arith.constant 256 : index
    %c0_151 = arith.constant 0 : index
    %174 = vector.load %arg14[%c256_150, %c0_151] : memref<400x256xf32, #tpu.memory_space<vmem>>, vector<16x256xf32>
    tpu.vector_store %arg14[%c256_150, %c0_151], %173 {strides = array<i32>} : memref<400x256xf32, #tpu.memory_space<vmem>>, vector<16x256xf32>,
    %c0_152 = arith.constant 0 : index
    %c50_153 = arith.constant 50 : index
    %175 = vector.load %arg13[%c0_152, %c50_153] : memref<16x324xf32, #tpu.memory_space<vmem>>, vector<16x256xf32>
    %c272_154 = arith.constant 272 : index
    %c0_155 = arith.constant 0 : index
    %176 = vector.load %arg14[%c272_154, %c0_155] : memref<400x256xf32, #tpu.memory_space<vmem>>, vector<16x256xf32>
    tpu.vector_store %arg14[%c272_154, %c0_155], %175 {strides = array<i32>} : memref<400x256xf32, #tpu.memory_space<vmem>>, vector<16x256xf32>,
    %c0_156 = arith.constant 0 : index
    %c51_157 = arith.constant 51 : index
    %177 = vector.load %arg13[%c0_156, %c51_157] : memref<16x324xf32, #tpu.memory_space<vmem>>, vector<16x256xf32>
    %178 = vector.broadcast %6 : vector<1x256xf32> to vector<16x256xf32>
    %179 = arith.mulf %177, %178 : vector<16x256xf32>
    %c288_158 = arith.constant 288 : index
    %c0_159 = arith.constant 0 : index
    %180 = vector.load %arg14[%c288_158, %c0_159] : memref<400x256xf32, #tpu.memory_space<vmem>>, vector<16x256xf32>
    tpu.vector_store %arg14[%c288_158, %c0_159], %179 {strides = array<i32>} : memref<400x256xf32, #tpu.memory_space<vmem>>, vector<16x256xf32>,
    %c0_160 = arith.constant 0 : index
    %c52_161 = arith.constant 52 : index
    %181 = vector.load %arg13[%c0_160, %c52_161] : memref<16x324xf32, #tpu.memory_space<vmem>>, vector<16x256xf32>
    %182 = vector.broadcast %7 : vector<1x256xf32> to vector<16x256xf32>
    %183 = arith.mulf %181, %182 : vector<16x256xf32>
    %c304_162 = arith.constant 304 : index
    %c0_163 = arith.constant 0 : index
    %184 = vector.load %arg14[%c304_162, %c0_163] : memref<400x256xf32, #tpu.memory_space<vmem>>, vector<16x256xf32>
    tpu.vector_store %arg14[%c304_162, %c0_163], %183 {strides = array<i32>} : memref<400x256xf32, #tpu.memory_space<vmem>>, vector<16x256xf32>,
    %c0_164 = arith.constant 0 : index
    %c64_165 = arith.constant 64 : index
    %185 = vector.load %arg13[%c0_164, %c64_165] : memref<16x324xf32, #tpu.memory_space<vmem>>, vector<16x256xf32>
    %186 = vector.broadcast %4 : vector<1x256xf32> to vector<16x256xf32>
    %187 = arith.mulf %185, %186 : vector<16x256xf32>
    %c320_166 = arith.constant 320 : index
    %c0_167 = arith.constant 0 : index
    %188 = vector.load %arg14[%c320_166, %c0_167] : memref<400x256xf32, #tpu.memory_space<vmem>>, vector<16x256xf32>
    tpu.vector_store %arg14[%c320_166, %c0_167], %187 {strides = array<i32>} : memref<400x256xf32, #tpu.memory_space<vmem>>, vector<16x256xf32>,
    %c0_168 = arith.constant 0 : index
    %c65_169 = arith.constant 65 : index
    %189 = vector.load %arg13[%c0_168, %c65_169] : memref<16x324xf32, #tpu.memory_space<vmem>>, vector<16x256xf32>
    %190 = vector.broadcast %5 : vector<1x256xf32> to vector<16x256xf32>
    %191 = arith.mulf %189, %190 : vector<16x256xf32>
    %c336_170 = arith.constant 336 : index
    %c0_171 = arith.constant 0 : index
    %192 = vector.load %arg14[%c336_170, %c0_171] : memref<400x256xf32, #tpu.memory_space<vmem>>, vector<16x256xf32>
    tpu.vector_store %arg14[%c336_170, %c0_171], %191 {strides = array<i32>} : memref<400x256xf32, #tpu.memory_space<vmem>>, vector<16x256xf32>,
    %c0_172 = arith.constant 0 : index
    %c66_173 = arith.constant 66 : index
    %193 = vector.load %arg13[%c0_172, %c66_173] : memref<16x324xf32, #tpu.memory_space<vmem>>, vector<16x256xf32>
    %c352_174 = arith.constant 352 : index
    %c0_175 = arith.constant 0 : index
    %194 = vector.load %arg14[%c352_174, %c0_175] : memref<400x256xf32, #tpu.memory_space<vmem>>, vector<16x256xf32>
    tpu.vector_store %arg14[%c352_174, %c0_175], %193 {strides = array<i32>} : memref<400x256xf32, #tpu.memory_space<vmem>>, vector<16x256xf32>,
    %c0_176 = arith.constant 0 : index
    %c67_177 = arith.constant 67 : index
    %195 = vector.load %arg13[%c0_176, %c67_177] : memref<16x324xf32, #tpu.memory_space<vmem>>, vector<16x256xf32>
    %196 = vector.broadcast %6 : vector<1x256xf32> to vector<16x256xf32>
    %197 = arith.mulf %195, %196 : vector<16x256xf32>
    %c368_178 = arith.constant 368 : index
    %c0_179 = arith.constant 0 : index
    %198 = vector.load %arg14[%c368_178, %c0_179] : memref<400x256xf32, #tpu.memory_space<vmem>>, vector<16x256xf32>
    tpu.vector_store %arg14[%c368_178, %c0_179], %197 {strides = array<i32>} : memref<400x256xf32, #tpu.memory_space<vmem>>, vector<16x256xf32>,
    %c0_180 = arith.constant 0 : index
    %c68_181 = arith.constant 68 : index
    %199 = vector.load %arg13[%c0_180, %c68_181] : memref<16x324xf32, #tpu.memory_space<vmem>>, vector<16x256xf32>
    %200 = vector.broadcast %7 : vector<1x256xf32> to vector<16x256xf32>
    %201 = arith.mulf %199, %200 : vector<16x256xf32>
    %c384_182 = arith.constant 384 : index
    %c0_183 = arith.constant 0 : index
    %202 = vector.load %arg14[%c384_182, %c0_183] : memref<400x256xf32, #tpu.memory_space<vmem>>, vector<16x256xf32>
    tpu.vector_store %arg14[%c384_182, %c0_183], %201 {strides = array<i32>} : memref<400x256xf32, #tpu.memory_space<vmem>>, vector<16x256xf32>,
    %c0_184 = arith.constant 0 : index
    %c0_185 = arith.constant 0 : index
    %203 = vector.load %arg6[%c0_184, %c0_185] : memref<16x400xf32, #tpu.memory_space<vmem>>, vector<16x400xf32>
    %c0_186 = arith.constant 0 : index
    %c0_187 = arith.constant 0 : index
    %204 = vector.load %arg14[%c0_186, %c0_187] : memref<400x256xf32, #tpu.memory_space<vmem>>, vector<400x256xf32>
    %cst_188 = arith.constant dense<0.000000e+00> : vector<16x256xf32>
    %205 = tpu.matmul %203, %204, %cst_188 {dimension_numbers = #tpu.dot_dimension_numbers<[1], [0], [0], [1], [0, 0, 1, 1], [], []>} : vector<16x400xf32>, vector<400x256xf32>, vector<16x256xf32> -> vector<16x256xf32>
    %c0_189 = arith.constant 0 : index
    %c0_190 = arith.constant 0 : index
    %206 = vector.load %arg7[%c0_189, %c0_190] : memref<16x1xf32, #tpu.memory_space<vmem>>, vector<16x1xf32>
    %207 = vector.broadcast %206 : vector<16x1xf32> to vector<16x256xf32>
    %208 = arith.addf %205, %207 : vector<16x256xf32>
    %cst_191 = arith.constant 0.000000e+00 : f32
    %209 = vector.broadcast %cst_191 : f32 to vector<16x256xf32>
    %210 = arith.maximumf %208, %209 : vector<16x256xf32>
    %c0_192 = arith.constant 0 : index
    %c34_193 = arith.constant 34 : index
    %211 = vector.load %arg13[%c0_192, %c34_193] : memref<16x324xf32, #tpu.memory_space<vmem>>, vector<16x256xf32>
    tpu.vector_store %arg13[%c0_192, %c34_193], %210 {strides = array<i32>} : memref<16x324xf32, #tpu.memory_space<vmem>>, vector<16x256xf32>,
    %c0_194 = arith.constant 0 : index
    %c0_195 = arith.constant 0 : index
    %212 = vector.load %arg13[%c0_194, %c0_195] : memref<16x324xf32, #tpu.memory_space<vmem>>, vector<16x256xf32>
    %213 = vector.broadcast %4 : vector<1x256xf32> to vector<16x256xf32>
    %214 = arith.mulf %212, %213 : vector<16x256xf32>
    %c0_196 = arith.constant 0 : index
    %c0_197 = arith.constant 0 : index
    %215 = vector.load %arg14[%c0_196, %c0_197] : memref<400x256xf32, #tpu.memory_space<vmem>>, vector<16x256xf32>
    tpu.vector_store %arg14[%c0_196, %c0_197], %214 {strides = array<i32>} : memref<400x256xf32, #tpu.memory_space<vmem>>, vector<16x256xf32>,
    %c0_198 = arith.constant 0 : index
    %c1_199 = arith.constant 1 : index
    %216 = vector.load %arg13[%c0_198, %c1_199] : memref<16x324xf32, #tpu.memory_space<vmem>>, vector<16x256xf32>
    %217 = vector.broadcast %5 : vector<1x256xf32> to vector<16x256xf32>
    %218 = arith.mulf %216, %217 : vector<16x256xf32>
    %c16_200 = arith.constant 16 : index
    %c0_201 = arith.constant 0 : index
    %219 = vector.load %arg14[%c16_200, %c0_201] : memref<400x256xf32, #tpu.memory_space<vmem>>, vector<16x256xf32>
    tpu.vector_store %arg14[%c16_200, %c0_201], %218 {strides = array<i32>} : memref<400x256xf32, #tpu.memory_space<vmem>>, vector<16x256xf32>,
    %c0_202 = arith.constant 0 : index
    %c2_203 = arith.constant 2 : index
    %220 = vector.load %arg13[%c0_202, %c2_203] : memref<16x324xf32, #tpu.memory_space<vmem>>, vector<16x256xf32>
    %c32_204 = arith.constant 32 : index
    %c0_205 = arith.constant 0 : index
    %221 = vector.load %arg14[%c32_204, %c0_205] : memref<400x256xf32, #tpu.memory_space<vmem>>, vector<16x256xf32>
    tpu.vector_store %arg14[%c32_204, %c0_205], %220 {strides = array<i32>} : memref<400x256xf32, #tpu.memory_space<vmem>>, vector<16x256xf32>,
    %c0_206 = arith.constant 0 : index
    %c3_207 = arith.constant 3 : index
    %222 = vector.load %arg13[%c0_206, %c3_207] : memref<16x324xf32, #tpu.memory_space<vmem>>, vector<16x256xf32>
    %223 = vector.broadcast %6 : vector<1x256xf32> to vector<16x256xf32>
    %224 = arith.mulf %222, %223 : vector<16x256xf32>
    %c48_208 = arith.constant 48 : index
    %c0_209 = arith.constant 0 : index
    %225 = vector.load %arg14[%c48_208, %c0_209] : memref<400x256xf32, #tpu.memory_space<vmem>>, vector<16x256xf32>
    tpu.vector_store %arg14[%c48_208, %c0_209], %224 {strides = array<i32>} : memref<400x256xf32, #tpu.memory_space<vmem>>, vector<16x256xf32>,
    %c0_210 = arith.constant 0 : index
    %c4_211 = arith.constant 4 : index
    %226 = vector.load %arg13[%c0_210, %c4_211] : memref<16x324xf32, #tpu.memory_space<vmem>>, vector<16x256xf32>
    %227 = vector.broadcast %7 : vector<1x256xf32> to vector<16x256xf32>
    %228 = arith.mulf %226, %227 : vector<16x256xf32>
    %c64_212 = arith.constant 64 : index
    %c0_213 = arith.constant 0 : index
    %229 = vector.load %arg14[%c64_212, %c0_213] : memref<400x256xf32, #tpu.memory_space<vmem>>, vector<16x256xf32>
    tpu.vector_store %arg14[%c64_212, %c0_213], %228 {strides = array<i32>} : memref<400x256xf32, #tpu.memory_space<vmem>>, vector<16x256xf32>,
    %c0_214 = arith.constant 0 : index
    %c16_215 = arith.constant 16 : index
    %230 = vector.load %arg13[%c0_214, %c16_215] : memref<16x324xf32, #tpu.memory_space<vmem>>, vector<16x256xf32>
    %231 = vector.broadcast %4 : vector<1x256xf32> to vector<16x256xf32>
    %232 = arith.mulf %230, %231 : vector<16x256xf32>
    %c80_216 = arith.constant 80 : index
    %c0_217 = arith.constant 0 : index
    %233 = vector.load %arg14[%c80_216, %c0_217] : memref<400x256xf32, #tpu.memory_space<vmem>>, vector<16x256xf32>
    tpu.vector_store %arg14[%c80_216, %c0_217], %232 {strides = array<i32>} : memref<400x256xf32, #tpu.memory_space<vmem>>, vector<16x256xf32>,
    %c0_218 = arith.constant 0 : index
    %c17_219 = arith.constant 17 : index
    %234 = vector.load %arg13[%c0_218, %c17_219] : memref<16x324xf32, #tpu.memory_space<vmem>>, vector<16x256xf32>
    %235 = vector.broadcast %5 : vector<1x256xf32> to vector<16x256xf32>
    %236 = arith.mulf %234, %235 : vector<16x256xf32>
    %c96_220 = arith.constant 96 : index
    %c0_221 = arith.constant 0 : index
    %237 = vector.load %arg14[%c96_220, %c0_221] : memref<400x256xf32, #tpu.memory_space<vmem>>, vector<16x256xf32>
    tpu.vector_store %arg14[%c96_220, %c0_221], %236 {strides = array<i32>} : memref<400x256xf32, #tpu.memory_space<vmem>>, vector<16x256xf32>,
    %c0_222 = arith.constant 0 : index
    %c18_223 = arith.constant 18 : index
    %238 = vector.load %arg13[%c0_222, %c18_223] : memref<16x324xf32, #tpu.memory_space<vmem>>, vector<16x256xf32>
    %c112_224 = arith.constant 112 : index
    %c0_225 = arith.constant 0 : index
    %239 = vector.load %arg14[%c112_224, %c0_225] : memref<400x256xf32, #tpu.memory_space<vmem>>, vector<16x256xf32>
    tpu.vector_store %arg14[%c112_224, %c0_225], %238 {strides = array<i32>} : memref<400x256xf32, #tpu.memory_space<vmem>>, vector<16x256xf32>,
    %c0_226 = arith.constant 0 : index
    %c19_227 = arith.constant 19 : index
    %240 = vector.load %arg13[%c0_226, %c19_227] : memref<16x324xf32, #tpu.memory_space<vmem>>, vector<16x256xf32>
    %241 = vector.broadcast %6 : vector<1x256xf32> to vector<16x256xf32>
    %242 = arith.mulf %240, %241 : vector<16x256xf32>
    %c128_228 = arith.constant 128 : index
    %c0_229 = arith.constant 0 : index
    %243 = vector.load %arg14[%c128_228, %c0_229] : memref<400x256xf32, #tpu.memory_space<vmem>>, vector<16x256xf32>
    tpu.vector_store %arg14[%c128_228, %c0_229], %242 {strides = array<i32>} : memref<400x256xf32, #tpu.memory_space<vmem>>, vector<16x256xf32>,
    %c0_230 = arith.constant 0 : index
    %c20_231 = arith.constant 20 : index
    %244 = vector.load %arg13[%c0_230, %c20_231] : memref<16x324xf32, #tpu.memory_space<vmem>>, vector<16x256xf32>
    %245 = vector.broadcast %7 : vector<1x256xf32> to vector<16x256xf32>
    %246 = arith.mulf %244, %245 : vector<16x256xf32>
    %c144_232 = arith.constant 144 : index
    %c0_233 = arith.constant 0 : index
    %247 = vector.load %arg14[%c144_232, %c0_233] : memref<400x256xf32, #tpu.memory_space<vmem>>, vector<16x256xf32>
    tpu.vector_store %arg14[%c144_232, %c0_233], %246 {strides = array<i32>} : memref<400x256xf32, #tpu.memory_space<vmem>>, vector<16x256xf32>,
    %c0_234 = arith.constant 0 : index
    %c32_235 = arith.constant 32 : index
    %248 = vector.load %arg13[%c0_234, %c32_235] : memref<16x324xf32, #tpu.memory_space<vmem>>, vector<16x256xf32>
    %249 = vector.broadcast %4 : vector<1x256xf32> to vector<16x256xf32>
    %250 = arith.mulf %248, %249 : vector<16x256xf32>
    %c160_236 = arith.constant 160 : index
    %c0_237 = arith.constant 0 : index
    %251 = vector.load %arg14[%c160_236, %c0_237] : memref<400x256xf32, #tpu.memory_space<vmem>>, vector<16x256xf32>
    tpu.vector_store %arg14[%c160_236, %c0_237], %250 {strides = array<i32>} : memref<400x256xf32, #tpu.memory_space<vmem>>, vector<16x256xf32>,
    %c0_238 = arith.constant 0 : index
    %c33_239 = arith.constant 33 : index
    %252 = vector.load %arg13[%c0_238, %c33_239] : memref<16x324xf32, #tpu.memory_space<vmem>>, vector<16x256xf32>
    %253 = vector.broadcast %5 : vector<1x256xf32> to vector<16x256xf32>
    %254 = arith.mulf %252, %253 : vector<16x256xf32>
    %c176_240 = arith.constant 176 : index
    %c0_241 = arith.constant 0 : index
    %255 = vector.load %arg14[%c176_240, %c0_241] : memref<400x256xf32, #tpu.memory_space<vmem>>, vector<16x256xf32>
    tpu.vector_store %arg14[%c176_240, %c0_241], %254 {strides = array<i32>} : memref<400x256xf32, #tpu.memory_space<vmem>>, vector<16x256xf32>,
    %c0_242 = arith.constant 0 : index
    %c34_243 = arith.constant 34 : index
    %256 = vector.load %arg13[%c0_242, %c34_243] : memref<16x324xf32, #tpu.memory_space<vmem>>, vector<16x256xf32>
    %c192_244 = arith.constant 192 : index
    %c0_245 = arith.constant 0 : index
    %257 = vector.load %arg14[%c192_244, %c0_245] : memref<400x256xf32, #tpu.memory_space<vmem>>, vector<16x256xf32>
    tpu.vector_store %arg14[%c192_244, %c0_245], %256 {strides = array<i32>} : memref<400x256xf32, #tpu.memory_space<vmem>>, vector<16x256xf32>,
    %c0_246 = arith.constant 0 : index
    %c35_247 = arith.constant 35 : index
    %258 = vector.load %arg13[%c0_246, %c35_247] : memref<16x324xf32, #tpu.memory_space<vmem>>, vector<16x256xf32>
    %259 = vector.broadcast %6 : vector<1x256xf32> to vector<16x256xf32>
    %260 = arith.mulf %258, %259 : vector<16x256xf32>
    %c208_248 = arith.constant 208 : index
    %c0_249 = arith.constant 0 : index
    %261 = vector.load %arg14[%c208_248, %c0_249] : memref<400x256xf32, #tpu.memory_space<vmem>>, vector<16x256xf32>
    tpu.vector_store %arg14[%c208_248, %c0_249], %260 {strides = array<i32>} : memref<400x256xf32, #tpu.memory_space<vmem>>, vector<16x256xf32>,
    %c0_250 = arith.constant 0 : index
    %c36_251 = arith.constant 36 : index
    %262 = vector.load %arg13[%c0_250, %c36_251] : memref<16x324xf32, #tpu.memory_space<vmem>>, vector<16x256xf32>
    %263 = vector.broadcast %7 : vector<1x256xf32> to vector<16x256xf32>
    %264 = arith.mulf %262, %263 : vector<16x256xf32>
    %c224_252 = arith.constant 224 : index
    %c0_253 = arith.constant 0 : index
    %265 = vector.load %arg14[%c224_252, %c0_253] : memref<400x256xf32, #tpu.memory_space<vmem>>, vector<16x256xf32>
    tpu.vector_store %arg14[%c224_252, %c0_253], %264 {strides = array<i32>} : memref<400x256xf32, #tpu.memory_space<vmem>>, vector<16x256xf32>,
    %c0_254 = arith.constant 0 : index
    %c48_255 = arith.constant 48 : index
    %266 = vector.load %arg13[%c0_254, %c48_255] : memref<16x324xf32, #tpu.memory_space<vmem>>, vector<16x256xf32>
    %267 = vector.broadcast %4 : vector<1x256xf32> to vector<16x256xf32>
    %268 = arith.mulf %266, %267 : vector<16x256xf32>
    %c240_256 = arith.constant 240 : index
    %c0_257 = arith.constant 0 : index
    %269 = vector.load %arg14[%c240_256, %c0_257] : memref<400x256xf32, #tpu.memory_space<vmem>>, vector<16x256xf32>
    tpu.vector_store %arg14[%c240_256, %c0_257], %268 {strides = array<i32>} : memref<400x256xf32, #tpu.memory_space<vmem>>, vector<16x256xf32>,
    %c0_258 = arith.constant 0 : index
    %c49_259 = arith.constant 49 : index
    %270 = vector.load %arg13[%c0_258, %c49_259] : memref<16x324xf32, #tpu.memory_space<vmem>>, vector<16x256xf32>
    %271 = vector.broadcast %5 : vector<1x256xf32> to vector<16x256xf32>
    %272 = arith.mulf %270, %271 : vector<16x256xf32>
    %c256_260 = arith.constant 256 : index
    %c0_261 = arith.constant 0 : index
    %273 = vector.load %arg14[%c256_260, %c0_261] : memref<400x256xf32, #tpu.memory_space<vmem>>, vector<16x256xf32>
    tpu.vector_store %arg14[%c256_260, %c0_261], %272 {strides = array<i32>} : memref<400x256xf32, #tpu.memory_space<vmem>>, vector<16x256xf32>,
    %c0_262 = arith.constant 0 : index
    %c50_263 = arith.constant 50 : index
    %274 = vector.load %arg13[%c0_262, %c50_263] : memref<16x324xf32, #tpu.memory_space<vmem>>, vector<16x256xf32>
    %c272_264 = arith.constant 272 : index
    %c0_265 = arith.constant 0 : index
    %275 = vector.load %arg14[%c272_264, %c0_265] : memref<400x256xf32, #tpu.memory_space<vmem>>, vector<16x256xf32>
    tpu.vector_store %arg14[%c272_264, %c0_265], %274 {strides = array<i32>} : memref<400x256xf32, #tpu.memory_space<vmem>>, vector<16x256xf32>,
    %c0_266 = arith.constant 0 : index
    %c51_267 = arith.constant 51 : index
    %276 = vector.load %arg13[%c0_266, %c51_267] : memref<16x324xf32, #tpu.memory_space<vmem>>, vector<16x256xf32>
    %277 = vector.broadcast %6 : vector<1x256xf32> to vector<16x256xf32>
    %278 = arith.mulf %276, %277 : vector<16x256xf32>
    %c288_268 = arith.constant 288 : index
    %c0_269 = arith.constant 0 : index
    %279 = vector.load %arg14[%c288_268, %c0_269] : memref<400x256xf32, #tpu.memory_space<vmem>>, vector<16x256xf32>
    tpu.vector_store %arg14[%c288_268, %c0_269], %278 {strides = array<i32>} : memref<400x256xf32, #tpu.memory_space<vmem>>, vector<16x256xf32>,
    %c0_270 = arith.constant 0 : index
    %c52_271 = arith.constant 52 : index
    %280 = vector.load %arg13[%c0_270, %c52_271] : memref<16x324xf32, #tpu.memory_space<vmem>>, vector<16x256xf32>
    %281 = vector.broadcast %7 : vector<1x256xf32> to vector<16x256xf32>
    %282 = arith.mulf %280, %281 : vector<16x256xf32>
    %c304_272 = arith.constant 304 : index
    %c0_273 = arith.constant 0 : index
    %283 = vector.load %arg14[%c304_272, %c0_273] : memref<400x256xf32, #tpu.memory_space<vmem>>, vector<16x256xf32>
    tpu.vector_store %arg14[%c304_272, %c0_273], %282 {strides = array<i32>} : memref<400x256xf32, #tpu.memory_space<vmem>>, vector<16x256xf32>,
    %c0_274 = arith.constant 0 : index
    %c64_275 = arith.constant 64 : index
    %284 = vector.load %arg13[%c0_274, %c64_275] : memref<16x324xf32, #tpu.memory_space<vmem>>, vector<16x256xf32>
    %285 = vector.broadcast %4 : vector<1x256xf32> to vector<16x256xf32>
    %286 = arith.mulf %284, %285 : vector<16x256xf32>
    %c320_276 = arith.constant 320 : index
    %c0_277 = arith.constant 0 : index
    %287 = vector.load %arg14[%c320_276, %c0_277] : memref<400x256xf32, #tpu.memory_space<vmem>>, vector<16x256xf32>
    tpu.vector_store %arg14[%c320_276, %c0_277], %286 {strides = array<i32>} : memref<400x256xf32, #tpu.memory_space<vmem>>, vector<16x256xf32>,
    %c0_278 = arith.constant 0 : index
    %c65_279 = arith.constant 65 : index
    %288 = vector.load %arg13[%c0_278, %c65_279] : memref<16x324xf32, #tpu.memory_space<vmem>>, vector<16x256xf32>
    %289 = vector.broadcast %5 : vector<1x256xf32> to vector<16x256xf32>
    %290 = arith.mulf %288, %289 : vector<16x256xf32>
    %c336_280 = arith.constant 336 : index
    %c0_281 = arith.constant 0 : index
    %291 = vector.load %arg14[%c336_280, %c0_281] : memref<400x256xf32, #tpu.memory_space<vmem>>, vector<16x256xf32>
    tpu.vector_store %arg14[%c336_280, %c0_281], %290 {strides = array<i32>} : memref<400x256xf32, #tpu.memory_space<vmem>>, vector<16x256xf32>,
    %c0_282 = arith.constant 0 : index
    %c66_283 = arith.constant 66 : index
    %292 = vector.load %arg13[%c0_282, %c66_283] : memref<16x324xf32, #tpu.memory_space<vmem>>, vector<16x256xf32>
    %c352_284 = arith.constant 352 : index
    %c0_285 = arith.constant 0 : index
    %293 = vector.load %arg14[%c352_284, %c0_285] : memref<400x256xf32, #tpu.memory_space<vmem>>, vector<16x256xf32>
    tpu.vector_store %arg14[%c352_284, %c0_285], %292 {strides = array<i32>} : memref<400x256xf32, #tpu.memory_space<vmem>>, vector<16x256xf32>,
    %c0_286 = arith.constant 0 : index
    %c67_287 = arith.constant 67 : index
    %294 = vector.load %arg13[%c0_286, %c67_287] : memref<16x324xf32, #tpu.memory_space<vmem>>, vector<16x256xf32>
    %295 = vector.broadcast %6 : vector<1x256xf32> to vector<16x256xf32>
    %296 = arith.mulf %294, %295 : vector<16x256xf32>
    %c368_288 = arith.constant 368 : index
    %c0_289 = arith.constant 0 : index
    %297 = vector.load %arg14[%c368_288, %c0_289] : memref<400x256xf32, #tpu.memory_space<vmem>>, vector<16x256xf32>
    tpu.vector_store %arg14[%c368_288, %c0_289], %296 {strides = array<i32>} : memref<400x256xf32, #tpu.memory_space<vmem>>, vector<16x256xf32>,
    %c0_290 = arith.constant 0 : index
    %c68_291 = arith.constant 68 : index
    %298 = vector.load %arg13[%c0_290, %c68_291] : memref<16x324xf32, #tpu.memory_space<vmem>>, vector<16x256xf32>
    %299 = vector.broadcast %7 : vector<1x256xf32> to vector<16x256xf32>
    %300 = arith.mulf %298, %299 : vector<16x256xf32>
    %c384_292 = arith.constant 384 : index
    %c0_293 = arith.constant 0 : index
    %301 = vector.load %arg14[%c384_292, %c0_293] : memref<400x256xf32, #tpu.memory_space<vmem>>, vector<16x256xf32>
    tpu.vector_store %arg14[%c384_292, %c0_293], %300 {strides = array<i32>} : memref<400x256xf32, #tpu.memory_space<vmem>>, vector<16x256xf32>,
    %c0_294 = arith.constant 0 : index
    %c0_295 = arith.constant 0 : index
    %302 = vector.load %arg8[%c0_294, %c0_295] : memref<16x400xf32, #tpu.memory_space<vmem>>, vector<16x400xf32>
    %c0_296 = arith.constant 0 : index
    %c0_297 = arith.constant 0 : index
    %303 = vector.load %arg14[%c0_296, %c0_297] : memref<400x256xf32, #tpu.memory_space<vmem>>, vector<400x256xf32>
    %cst_298 = arith.constant dense<0.000000e+00> : vector<16x256xf32>
    %304 = tpu.matmul %302, %303, %cst_298 {dimension_numbers = #tpu.dot_dimension_numbers<[1], [0], [0], [1], [0, 0, 1, 1], [], []>} : vector<16x400xf32>, vector<400x256xf32>, vector<16x256xf32> -> vector<16x256xf32>
    %c0_299 = arith.constant 0 : index
    %c0_300 = arith.constant 0 : index
    %305 = vector.load %arg9[%c0_299, %c0_300] : memref<16x1xf32, #tpu.memory_space<vmem>>, vector<16x1xf32>
    %306 = vector.broadcast %305 : vector<16x1xf32> to vector<16x256xf32>
    %307 = arith.addf %304, %306 : vector<16x256xf32>
    %cst_301 = arith.constant 0.000000e+00 : f32
    %308 = vector.broadcast %cst_301 : f32 to vector<16x256xf32>
    %309 = arith.maximumf %307, %308 : vector<16x256xf32>
    %c0_302 = arith.constant 0 : index
    %c34_303 = arith.constant 34 : index
    %310 = vector.load %arg13[%c0_302, %c34_303] : memref<16x324xf32, #tpu.memory_space<vmem>>, vector<16x256xf32>
    tpu.vector_store %arg13[%c0_302, %c34_303], %309 {strides = array<i32>} : memref<16x324xf32, #tpu.memory_space<vmem>>, vector<16x256xf32>,
    %c0_304 = arith.constant 0 : index
    %c17_305 = arith.constant 17 : index
    %311 = vector.load %arg13[%c0_304, %c17_305] : memref<16x324xf32, #tpu.memory_space<vmem>>, vector<16x256xf32>
    %312 = vector.broadcast %5 : vector<1x256xf32> to vector<16x256xf32>
    %313 = arith.mulf %311, %312 : vector<16x256xf32>
    %c0_306 = arith.constant 0 : index
    %c0_307 = arith.constant 0 : index
    %314 = vector.load %arg14[%c0_306, %c0_307] : memref<400x256xf32, #tpu.memory_space<vmem>>, vector<16x256xf32>
    tpu.vector_store %arg14[%c0_306, %c0_307], %313 {strides = array<i32>} : memref<400x256xf32, #tpu.memory_space<vmem>>, vector<16x256xf32>,
    %c0_308 = arith.constant 0 : index
    %c18_309 = arith.constant 18 : index
    %315 = vector.load %arg13[%c0_308, %c18_309] : memref<16x324xf32, #tpu.memory_space<vmem>>, vector<16x256xf32>
    %c16_310 = arith.constant 16 : index
    %c0_311 = arith.constant 0 : index
    %316 = vector.load %arg14[%c16_310, %c0_311] : memref<400x256xf32, #tpu.memory_space<vmem>>, vector<16x256xf32>
    tpu.vector_store %arg14[%c16_310, %c0_311], %315 {strides = array<i32>} : memref<400x256xf32, #tpu.memory_space<vmem>>, vector<16x256xf32>,
    %c0_312 = arith.constant 0 : index
    %c19_313 = arith.constant 19 : index
    %317 = vector.load %arg13[%c0_312, %c19_313] : memref<16x324xf32, #tpu.memory_space<vmem>>, vector<16x256xf32>
    %318 = vector.broadcast %6 : vector<1x256xf32> to vector<16x256xf32>
    %319 = arith.mulf %317, %318 : vector<16x256xf32>
    %c32_314 = arith.constant 32 : index
    %c0_315 = arith.constant 0 : index
    %320 = vector.load %arg14[%c32_314, %c0_315] : memref<400x256xf32, #tpu.memory_space<vmem>>, vector<16x256xf32>
    tpu.vector_store %arg14[%c32_314, %c0_315], %319 {strides = array<i32>} : memref<400x256xf32, #tpu.memory_space<vmem>>, vector<16x256xf32>,
    %c0_316 = arith.constant 0 : index
    %c33_317 = arith.constant 33 : index
    %321 = vector.load %arg13[%c0_316, %c33_317] : memref<16x324xf32, #tpu.memory_space<vmem>>, vector<16x256xf32>
    %322 = vector.broadcast %5 : vector<1x256xf32> to vector<16x256xf32>
    %323 = arith.mulf %321, %322 : vector<16x256xf32>
    %c48_318 = arith.constant 48 : index
    %c0_319 = arith.constant 0 : index
    %324 = vector.load %arg14[%c48_318, %c0_319] : memref<400x256xf32, #tpu.memory_space<vmem>>, vector<16x256xf32>
    tpu.vector_store %arg14[%c48_318, %c0_319], %323 {strides = array<i32>} : memref<400x256xf32, #tpu.memory_space<vmem>>, vector<16x256xf32>,
    %c0_320 = arith.constant 0 : index
    %c34_321 = arith.constant 34 : index
    %325 = vector.load %arg13[%c0_320, %c34_321] : memref<16x324xf32, #tpu.memory_space<vmem>>, vector<16x256xf32>
    %c64_322 = arith.constant 64 : index
    %c0_323 = arith.constant 0 : index
    %326 = vector.load %arg14[%c64_322, %c0_323] : memref<400x256xf32, #tpu.memory_space<vmem>>, vector<16x256xf32>
    tpu.vector_store %arg14[%c64_322, %c0_323], %325 {strides = array<i32>} : memref<400x256xf32, #tpu.memory_space<vmem>>, vector<16x256xf32>,
    %c0_324 = arith.constant 0 : index
    %c35_325 = arith.constant 35 : index
    %327 = vector.load %arg13[%c0_324, %c35_325] : memref<16x324xf32, #tpu.memory_space<vmem>>, vector<16x256xf32>
    %328 = vector.broadcast %6 : vector<1x256xf32> to vector<16x256xf32>
    %329 = arith.mulf %327, %328 : vector<16x256xf32>
    %c80_326 = arith.constant 80 : index
    %c0_327 = arith.constant 0 : index
    %330 = vector.load %arg14[%c80_326, %c0_327] : memref<400x256xf32, #tpu.memory_space<vmem>>, vector<16x256xf32>
    tpu.vector_store %arg14[%c80_326, %c0_327], %329 {strides = array<i32>} : memref<400x256xf32, #tpu.memory_space<vmem>>, vector<16x256xf32>,
    %c0_328 = arith.constant 0 : index
    %c49_329 = arith.constant 49 : index
    %331 = vector.load %arg13[%c0_328, %c49_329] : memref<16x324xf32, #tpu.memory_space<vmem>>, vector<16x256xf32>
    %332 = vector.broadcast %5 : vector<1x256xf32> to vector<16x256xf32>
    %333 = arith.mulf %331, %332 : vector<16x256xf32>
    %c96_330 = arith.constant 96 : index
    %c0_331 = arith.constant 0 : index
    %334 = vector.load %arg14[%c96_330, %c0_331] : memref<400x256xf32, #tpu.memory_space<vmem>>, vector<16x256xf32>
    tpu.vector_store %arg14[%c96_330, %c0_331], %333 {strides = array<i32>} : memref<400x256xf32, #tpu.memory_space<vmem>>, vector<16x256xf32>,
    %c0_332 = arith.constant 0 : index
    %c50_333 = arith.constant 50 : index
    %335 = vector.load %arg13[%c0_332, %c50_333] : memref<16x324xf32, #tpu.memory_space<vmem>>, vector<16x256xf32>
    %c112_334 = arith.constant 112 : index
    %c0_335 = arith.constant 0 : index
    %336 = vector.load %arg14[%c112_334, %c0_335] : memref<400x256xf32, #tpu.memory_space<vmem>>, vector<16x256xf32>
    tpu.vector_store %arg14[%c112_334, %c0_335], %335 {strides = array<i32>} : memref<400x256xf32, #tpu.memory_space<vmem>>, vector<16x256xf32>,
    %c0_336 = arith.constant 0 : index
    %c51_337 = arith.constant 51 : index
    %337 = vector.load %arg13[%c0_336, %c51_337] : memref<16x324xf32, #tpu.memory_space<vmem>>, vector<16x256xf32>
    %338 = vector.broadcast %6 : vector<1x256xf32> to vector<16x256xf32>
    %339 = arith.mulf %337, %338 : vector<16x256xf32>
    %c128_338 = arith.constant 128 : index
    %c0_339 = arith.constant 0 : index
    %340 = vector.load %arg14[%c128_338, %c0_339] : memref<400x256xf32, #tpu.memory_space<vmem>>, vector<16x256xf32>
    tpu.vector_store %arg14[%c128_338, %c0_339], %339 {strides = array<i32>} : memref<400x256xf32, #tpu.memory_space<vmem>>, vector<16x256xf32>,
    %c0_340 = arith.constant 0 : index
    %c0_341 = arith.constant 0 : index
    %341 = vector.load %arg10[%c0_340, %c0_341] : memref<4x144xf32, #tpu.memory_space<vmem>>, vector<4x144xf32>
    %c0_342 = arith.constant 0 : index
    %c0_343 = arith.constant 0 : index
    %342 = vector.load %arg14[%c0_342, %c0_343] : memref<400x256xf32, #tpu.memory_space<vmem>>, vector<144x256xf32>
    %cst_344 = arith.constant dense<0.000000e+00> : vector<4x256xf32>
    %343 = tpu.matmul %341, %342, %cst_344 {dimension_numbers = #tpu.dot_dimension_numbers<[1], [0], [0], [1], [0, 0, 1, 1], [], []>} : vector<4x144xf32>, vector<144x256xf32>, vector<4x256xf32> -> vector<4x256xf32>
    %c0_345 = arith.constant 0 : index
    %c0_346 = arith.constant 0 : index
    %344 = vector.load %arg11[%c0_345, %c0_346] : memref<4x1xf32, #tpu.memory_space<vmem>>, vector<4x1xf32>
    %345 = vector.broadcast %344 : vector<4x1xf32> to vector<4x256xf32>
    %346 = arith.addf %343, %345 : vector<4x256xf32>
    %347 = vector.shape_cast %346 : vector<4x256xf32> to vector<1x4x256xf32>
    %c0_347 = arith.constant 0 : index
    %c0_348 = arith.constant 0 : index
    %c0_349 = arith.constant 0 : index
    %348 = vector.load %arg12[%c0_347, %c0_348, %c0_349] : memref<1x4x256xf32, #tpu.memory_space<vmem>>, vector<1x4x256xf32>
    tpu.vector_store %arg12[%c0_347, %c0_348, %c0_349], %347 {strides = array<i32>} : memref<1x4x256xf32, #tpu.memory_space<vmem>>, vector<1x4x256xf32>,
    return
  }
  func.func @transform_0(%arg0: i32) -> (i32, i32, i32) {
    %c0_i32 = arith.constant 0 : i32
    %c0_i32_0 = arith.constant 0 : i32
    %c0_i32_1 = arith.constant 0 : i32
    return %arg0, %c0_i32, %c0_i32_0 : i32, i32, i32
  }
  func.func @transform_1(%arg0: i32) -> (i32, i32) {
    %c0_i32 = arith.constant 0 : i32
    %c0_i32_0 = arith.constant 0 : i32
    %c0_i32_1 = arith.constant 0 : i32
    return %c0_i32, %c0_i32_0 : i32, i32
  }
  func.func @transform_2(%arg0: i32) -> (i32, i32) {
    %c0_i32 = arith.constant 0 : i32
    %c0_i32_0 = arith.constant 0 : i32
    %c0_i32_1 = arith.constant 0 : i32
    return %c0_i32, %c0_i32_0 : i32, i32
  }
  func.func @transform_3(%arg0: i32) -> (i32, i32) {
    %c0_i32 = arith.constant 0 : i32
    %c0_i32_0 = arith.constant 0 : i32
    %c0_i32_1 = arith.constant 0 : i32
    return %c0_i32, %c0_i32_0 : i32, i32
  }
  func.func @transform_4(%arg0: i32) -> (i32, i32) {
    %c0_i32 = arith.constant 0 : i32
    %c0_i32_0 = arith.constant 0 : i32
    %c0_i32_1 = arith.constant 0 : i32
    return %c0_i32, %c0_i32_0 : i32, i32
  }
  func.func @transform_5(%arg0: i32) -> (i32, i32) {
    %c0_i32 = arith.constant 0 : i32
    %c0_i32_0 = arith.constant 0 : i32
    %c0_i32_1 = arith.constant 0 : i32
    return %c0_i32, %c0_i32_0 : i32, i32
  }
  func.func @transform_6(%arg0: i32) -> (i32, i32) {
    %c0_i32 = arith.constant 0 : i32
    %c0_i32_0 = arith.constant 0 : i32
    %c0_i32_1 = arith.constant 0 : i32
    return %c0_i32, %c0_i32_0 : i32, i32
  }
  func.func @transform_7(%arg0: i32) -> (i32, i32) {
    %c0_i32 = arith.constant 0 : i32
    %c0_i32_0 = arith.constant 0 : i32
    %c0_i32_1 = arith.constant 0 : i32
    return %c0_i32, %c0_i32_0 : i32, i32
  }
  func.func @transform_8(%arg0: i32) -> (i32, i32) {
    %c0_i32 = arith.constant 0 : i32
    %c0_i32_0 = arith.constant 0 : i32
    %c0_i32_1 = arith.constant 0 : i32
    return %c0_i32, %c0_i32_0 : i32, i32
  }
  func.func @transform_9(%arg0: i32) -> (i32, i32) {
    %c0_i32 = arith.constant 0 : i32
    %c0_i32_0 = arith.constant 0 : i32
    %c0_i32_1 = arith.constant 0 : i32
    return %c0_i32, %c0_i32_0 : i32, i32
  }
  func.func @transform_10(%arg0: i32) -> (i32, i32) {
    %c0_i32 = arith.constant 0 : i32
    %c0_i32_0 = arith.constant 0 : i32
    %c0_i32_1 = arith.constant 0 : i32
    return %c0_i32, %c0_i32_0 : i32, i32
  }
  func.func @transform_11(%arg0: i32) -> (i32, i32, i32) {
    %c0_i32 = arith.constant 0 : i32
    %c0_i32_0 = arith.constant 0 : i32
    %c0_i32_1 = arith.constant 0 : i32
    return %arg0, %c0_i32, %c0_i32_0 : i32, i32, i32
  }
}

</mosaic_0001>

<llo_original>
// kernel: decoder_forward.1
$region0: #{decoder_forward.1}
  #allocation0 [shape = 'u32[]', space=smem, size = 0x4, offset = 0x4, fixed_abs, tag = 'smem constant byte address 0x4 - core index']
  #allocation1 [shape = 'u32[144,128]{1,0:T(1,128)}', space=vmem, size = 0x12000, scoped, tag = 'internal scratch']
  #allocation2 [shape = 'f32[16,324]{1,0:T(8,128)}', space=vmem, size = 0x6000, scoped, tag = 'scratch operand']
  #allocation3 [shape = 'f32[400,256]{1,0:T(8,128)}', space=vmem, size = 0x64000, scoped, tag = 'scratch operand']
  %s0 = inlined_call_operand.vmem [shape: f32[2,16,256], index: 0, kind: input, shape index: {}]
  %s1 = inlined_call_operand.vmem [shape: f32[5,256], index: 1, kind: input, shape index: {}]
  %s2 = inlined_call_operand.vmem [shape: f32[16,1], index: 2, kind: input, shape index: {}]
  %s3 = inlined_call_operand.vmem [shape: f32[16,400], index: 3, kind: input, shape index: {}]
  %s4 = inlined_call_operand.vmem [shape: f32[16,1], index: 4, kind: input, shape index: {}]
  %s5 = inlined_call_operand.vmem [shape: f32[16,400], index: 5, kind: input, shape index: {}]
  %s6 = inlined_call_operand.vmem [shape: f32[16,1], index: 6, kind: input, shape index: {}]
  %s7 = inlined_call_operand.vmem [shape: f32[16,400], index: 7, kind: input, shape index: {}]
  %s8 = inlined_call_operand.vmem [shape: f32[16,1], index: 8, kind: input, shape index: {}]
  %s9 = inlined_call_operand.vmem [shape: f32[4,144], index: 9, kind: input, shape index: {}]
  %s10 = inlined_call_operand.vmem [shape: f32[4,1], index: 10, kind: input, shape index: {}]
  %s11 = inlined_call_operand.vmem [shape: f32[2,4,256], index: 11, kind: output, shape index: {}]
  %s12 = sld [smem:[#allocation0]]
  $region77: #{decoder_forward.1} parent=0
    _
  %s14 = ssub.s32 1, %s12
  %s15 = scalar_select 0, %s14, %s12
  loop: start=0, step=1, limit=4
  $region2: #{decoder_forward.1} parent=0 // loop_pre_header
    _
  $region3: #{decoder_forward.1} parent=0 // loop_header
    %s17 = sphi 0, %s21
    %p18 = scmp.ge.s32.totalorder %s17, 4
    %s27 = sphi 0, %s29
    %s30 = sphi 0, %s27
    %s31 = sphi 0, %s30
    %s47 = sphi 0, %s31
    %s51 = sphi 0, %s51
    %s53 = sphi 0, %s51
    %s54 = sphi 0, %s53
    %s68 = sphi 0, %s54
    %s72 = sphi 0, %s72
    %s74 = sphi 0, %s72
    %s75 = sphi 0, %s74
    %s89 = sphi 0, %s75
    %s93 = sphi 0, %s93
    %s95 = sphi 0, %s93
    %s96 = sphi 0, %s95
    %s110 = sphi 0, %s96
    %s114 = sphi 0, %s114
    %s116 = sphi 0, %s114
    %s117 = sphi 0, %s116
    %s131 = sphi 0, %s117
    %s135 = sphi 0, %s135
    %s137 = sphi 0, %s135
    %s138 = sphi 0, %s137
    %s152 = sphi 0, %s138
    %s156 = sphi 0, %s156
    %s158 = sphi 0, %s156
    %s159 = sphi 0, %s158
    %s173 = sphi 0, %s159
    %s177 = sphi 0, %s177
    %s179 = sphi 0, %s177
    %s180 = sphi 0, %s179
    %s194 = sphi 0, %s180
    %s198 = sphi 0, %s198
    %s200 = sphi 0, %s198
    %s201 = sphi 0, %s200
    %s215 = sphi 0, %s201
    %s219 = sphi 0, %s219
    %s221 = sphi 0, %s219
    %s222 = sphi 0, %s221
    %s236 = sphi 0, %s222
    %s240 = sphi 0, %s240
    %s242 = sphi 0, %s240
    %s243 = sphi 0, %s242
    %s257 = sphi 0, %s243
    %s263 = sphi 0, %s265
    %s266 = sphi 0, %s263
    %s267 = sphi 0, %s266
    %s283 = sphi 0, %s267
  $region4: #{decoder_forward.1} parent=0 // loop_header_branch
    %20 = sbr.rel (%p18) target = $region8
  $region5: #{decoder_forward.1} parent=0 // loop_body
    %s22 = ssub.s32 %s17, 1
    %s23 = ssub.s32 %s17, 2
    %s24 = sadd.s32 %s17, 1
    %s25 = ssub.s32 %s17, %s24
    %p26 = scmp.eq.s32.totalorder %s25, 0
    %s28 = sadd.s32 %s27, 1
    %s29 = scalar_select %p26, %s27, %s28
    %p32 = pneg %p26
    %p33 = scmp.eq.s32.totalorder %s17, 1
    %p34 = por %p32, %p33
    %p35 = scmp.ne.s32.totalorder %s27, %s30
    %p36 = scmp.eq.s32.totalorder %s17, 0
    %p37 = por %p35, %p36
    %p38 = scmp.ne.s32.totalorder %s27, %s30
    %p39 = scmp.eq.s32.totalorder %s22, 1
    %p40 = por %p38, %p39
    %p41 = scmp.ne.s32.totalorder %s30, %s31
    %p42 = scmp.eq.s32.totalorder %s22, 0
    %p43 = por %p41, %p42
    %p44 = scmp.ne.s32.totalorder %s30, %s31
    %p45 = scmp.eq.s32.totalorder %s23, 1
    %p46 = por %p44, %p45
    %p48 = scmp.ne.s32.totalorder %s31, %s47
    %p49 = scmp.eq.s32.totalorder %s23, 0
    %p50 = por %p48, %p49
    %s52 = sadd.s32 %s51, 1
    %p55 = scmp.eq.s32.totalorder %s17, 1
    %p56 = scmp.ne.s32.totalorder %s51, %s53
    %p57 = scmp.eq.s32.totalorder %s17, 0
    %p58 = por %p56, %p57
    %p59 = scmp.ne.s32.totalorder %s51, %s53
    %p60 = scmp.eq.s32.totalorder %s22, 1
    %p61 = por %p59, %p60
    %p62 = scmp.ne.s32.totalorder %s53, %s54
    %p63 = scmp.eq.s32.totalorder %s22, 0
    %p64 = por %p62, %p63
    %p65 = scmp.ne.s32.totalorder %s53, %s54
    %p66 = scmp.eq.s32.totalorder %s23, 1
    %p67 = por %p65, %p66
    %p69 = scmp.ne.s32.totalorder %s54, %s68
    %p70 = scmp.eq.s32.totalorder %s23, 0
    %p71 = por %p69, %p70
    %s73 = sadd.s32 %s72, 1
    %p76 = scmp.eq.s32.totalorder %s17, 1
    %p77 = scmp.ne.s32.totalorder %s72, %s74
    %p78 = scmp.eq.s32.totalorder %s17, 0
    %p79 = por %p77, %p78
    %p80 = scmp.ne.s32.totalorder %s72, %s74
    %p81 = scmp.eq.s32.totalorder %s22, 1
    %p82 = por %p80, %p81
    %p83 = scmp.ne.s32.totalorder %s74, %s75
    %p84 = scmp.eq.s32.totalorder %s22, 0
    %p85 = por %p83, %p84
    %p86 = scmp.ne.s32.totalorder %s74, %s75
    %p87 = scmp.eq.s32.totalorder %s23, 1
    %p88 = por %p86, %p87
    %p90 = scmp.ne.s32.totalorder %s75, %s89
    %p91 = scmp.eq.s32.totalorder %s23, 0
    %p92 = por %p90, %p91
    %s94 = sadd.s32 %s93, 1
    %p97 = scmp.eq.s32.totalorder %s17, 1
    %p98 = scmp.ne.s32.totalorder %s93, %s95
    %p99 = scmp.eq.s32.totalorder %s17, 0
    %p100 = por %p98, %p99
    %p101 = scmp.ne.s32.totalorder %s93, %s95
    %p102 = scmp.eq.s32.totalorder %s22, 1
    %p103 = por %p101, %p102
    %p104 = scmp.ne.s32.totalorder %s95, %s96
    %p105 = scmp.eq.s32.totalorder %s22, 0
    %p106 = por %p104, %p105
    %p107 = scmp.ne.s32.totalorder %s95, %s96
    %p108 = scmp.eq.s32.totalorder %s23, 1
    %p109 = por %p107, %p108
    %p111 = scmp.ne.s32.totalorder %s96, %s110
    %p112 = scmp.eq.s32.totalorder %s23, 0
    %p113 = por %p111, %p112
    %s115 = sadd.s32 %s114, 1
    %p118 = scmp.eq.s32.totalorder %s17, 1
    %p119 = scmp.ne.s32.totalorder %s114, %s116
    %p120 = scmp.eq.s32.totalorder %s17, 0
    %p121 = por %p119, %p120
    %p122 = scmp.ne.s32.totalorder %s114, %s116
    %p123 = scmp.eq.s32.totalorder %s22, 1
    %p124 = por %p122, %p123
    %p125 = scmp.ne.s32.totalorder %s116, %s117
    %p126 = scmp.eq.s32.totalorder %s22, 0
    %p127 = por %p125, %p126
    %p128 = scmp.ne.s32.totalorder %s116, %s117
    %p129 = scmp.eq.s32.totalorder %s23, 1
    %p130 = por %p128, %p129
    %p132 = scmp.ne.s32.totalorder %s117, %s131
    %p133 = scmp.eq.s32.totalorder %s23, 0
    %p134 = por %p132, %p133
    %s136 = sadd.s32 %s135, 1
    %p139 = scmp.eq.s32.totalorder %s17, 1
    %p140 = scmp.ne.s32.totalorder %s135, %s137
    %p141 = scmp.eq.s32.totalorder %s17, 0
    %p142 = por %p140, %p141
    %p143 = scmp.ne.s32.totalorder %s135, %s137
    %p144 = scmp.eq.s32.totalorder %s22, 1
    %p145 = por %p143, %p144
    %p146 = scmp.ne.s32.totalorder %s137, %s138
    %p147 = scmp.eq.s32.totalorder %s22, 0
    %p148 = por %p146, %p147
    %p149 = scmp.ne.s32.totalorder %s137, %s138
    %p150 = scmp.eq.s32.totalorder %s23, 1
    %p151 = por %p149, %p150
    %p153 = scmp.ne.s32.totalorder %s138, %s152
    %p154 = scmp.eq.s32.totalorder %s23, 0
    %p155 = por %p153, %p154
    %s157 = sadd.s32 %s156, 1
    %p160 = scmp.eq.s32.totalorder %s17, 1
    %p161 = scmp.ne.s32.totalorder %s156, %s158
    %p162 = scmp.eq.s32.totalorder %s17, 0
    %p163 = por %p161, %p162
    %p164 = scmp.ne.s32.totalorder %s156, %s158
    %p165 = scmp.eq.s32.totalorder %s22, 1
    %p166 = por %p164, %p165
    %p167 = scmp.ne.s32.totalorder %s158, %s159
    %p168 = scmp.eq.s32.totalorder %s22, 0
    %p169 = por %p167, %p168
    %p170 = scmp.ne.s32.totalorder %s158, %s159
    %p171 = scmp.eq.s32.totalorder %s23, 1
    %p172 = por %p170, %p171
    %p174 = scmp.ne.s32.totalorder %s159, %s173
    %p175 = scmp.eq.s32.totalorder %s23, 0
    %p176 = por %p174, %p175
    %s178 = sadd.s32 %s177, 1
    %p181 = scmp.eq.s32.totalorder %s17, 1
    %p182 = scmp.ne.s32.totalorder %s177, %s179
    %p183 = scmp.eq.s32.totalorder %s17, 0
    %p184 = por %p182, %p183
    %p185 = scmp.ne.s32.totalorder %s177, %s179
    %p186 = scmp.eq.s32.totalorder %s22, 1
    %p187 = por %p185, %p186
    %p188 = scmp.ne.s32.totalorder %s179, %s180
    %p189 = scmp.eq.s32.totalorder %s22, 0
    %p190 = por %p188, %p189
    %p191 = scmp.ne.s32.totalorder %s179, %s180
    %p192 = scmp.eq.s32.totalorder %s23, 1
    %p193 = por %p191, %p192
    %p195 = scmp.ne.s32.totalorder %s180, %s194
    %p196 = scmp.eq.s32.totalorder %s23, 0
    %p197 = por %p195, %p196
    %s199 = sadd.s32 %s198, 1
    %p202 = scmp.eq.s32.totalorder %s17, 1
    %p203 = scmp.ne.s32.totalorder %s198, %s200
    %p204 = scmp.eq.s32.totalorder %s17, 0
    %p205 = por %p203, %p204
    %p206 = scmp.ne.s32.totalorder %s198, %s200
    %p207 = scmp.eq.s32.totalorder %s22, 1
    %p208 = por %p206, %p207
    %p209 = scmp.ne.s32.totalorder %s200, %s201
    %p210 = scmp.eq.s32.totalorder %s22, 0
    %p211 = por %p209, %p210
    %p212 = scmp.ne.s32.totalorder %s200, %s201
    %p213 = scmp.eq.s32.totalorder %s23, 1
    %p214 = por %p212, %p213
    %p216 = scmp.ne.s32.totalorder %s201, %s215
    %p217 = scmp.eq.s32.totalorder %s23, 0
    %p218 = por %p216, %p217
    %s220 = sadd.s32 %s219, 1
    %p223 = scmp.eq.s32.totalorder %s17, 1
    %p224 = scmp.ne.s32.totalorder %s219, %s221
    %p225 = scmp.eq.s32.totalorder %s17, 0
    %p226 = por %p224, %p225
    %p227 = scmp.ne.s32.totalorder %s219, %s221
    %p228 = scmp.eq.s32.totalorder %s22, 1
    %p229 = por %p227, %p228
    %p230 = scmp.ne.s32.totalorder %s221, %s222
    %p231 = scmp.eq.s32.totalorder %s22, 0
    %p232 = por %p230, %p231
    %p233 = scmp.ne.s32.totalorder %s221, %s222
    %p234 = scmp.eq.s32.totalorder %s23, 1
    %p235 = por %p233, %p234
    %p237 = scmp.ne.s32.totalorder %s222, %s236
    %p238 = scmp.eq.s32.totalorder %s23, 0
    %p239 = por %p237, %p238
    %s241 = sadd.s32 %s240, 1
    %p244 = scmp.eq.s32.totalorder %s17, 1
    %p245 = scmp.ne.s32.totalorder %s240, %s242
    %p246 = scmp.eq.s32.totalorder %s17, 0
    %p247 = por %p245, %p246
    %p248 = scmp.ne.s32.totalorder %s240, %s242
    %p249 = scmp.eq.s32.totalorder %s22, 1
    %p250 = por %p248, %p249
    %p251 = scmp.ne.s32.totalorder %s242, %s243
    %p252 = scmp.eq.s32.totalorder %s22, 0
    %p253 = por %p251, %p252
    %p254 = scmp.ne.s32.totalorder %s242, %s243
    %p255 = scmp.eq.s32.totalorder %s23, 1
    %p256 = por %p254, %p255
    %p258 = scmp.ne.s32.totalorder %s243, %s257
    %p259 = scmp.eq.s32.totalorder %s23, 0
    %p260 = por %p258, %p259
    %s261 = ssub.s32 %s17, %s24
    %p262 = scmp.eq.s32.totalorder %s261, 0
    %s264 = sadd.s32 %s263, 1
    %s265 = scalar_select %p262, %s263, %s264
    %p268 = pneg %p262
    %p269 = scmp.eq.s32.totalorder %s17, 1
    %p270 = por %p268, %p269
    %p271 = scmp.ne.s32.totalorder %s263, %s266
    %p272 = scmp.eq.s32.totalorder %s17, 0
    %p273 = por %p271, %p272
    %p274 = scmp.ne.s32.totalorder %s263, %s266
    %p275 = scmp.eq.s32.totalorder %s22, 1
    %p276 = por %p274, %p275
    %p277 = scmp.ne.s32.totalorder %s266, %s267
    %p278 = scmp.eq.s32.totalorder %s22, 0
    %p279 = por %p277, %p278
    %p280 = scmp.ne.s32.totalorder %s266, %s267
    %p281 = scmp.eq.s32.totalorder %s23, 1
    %p282 = por %p280, %p281
    %p284 = scmp.ne.s32.totalorder %s267, %s283
    %p285 = scmp.eq.s32.totalorder %s23, 0
    %p286 = por %p284, %p285
    %p287 = scmp.le.s32.totalorder 1, %s17
    %p288 = scmp.lt.s32.totalorder %s17, 3
    %p289 = pnand %p287, %p288
    %p290 = pneg %p289
    // Predicated region
    $region9: #{decoder_forward.1} parent=5 // pred_check
      _
    $region10: #{decoder_forward.1} parent=5 // pred_check_branch
      %292 = sbr.rel (%p289) target = $region12
    $region11: #{decoder_forward.1} parent=5 // pred_region
      %s293 = ssub.s32 %s17, 1
      // Predicated region
      $region13: #{decoder_forward.1} parent=11 // pred_check
        %p294 = pneg %p64
      $region14: #{decoder_forward.1} parent=11 // pred_check_branch
        %296 = sbr.rel (%p294) target = $region16
      $region15: #{decoder_forward.1} parent=11 // pred_region
        _
      $region16: #{decoder_forward.1} parent=11 // pred_fallthru
        _
      // Predicated region
      $region17: #{decoder_forward.1} parent=11 // pred_check
        %p297 = pneg %p85
      $region18: #{decoder_forward.1} parent=11 // pred_check_branch
        %299 = sbr.rel (%p297) target = $region20
      $region19: #{decoder_forward.1} parent=11 // pred_region
        _
      $region20: #{decoder_forward.1} parent=11 // pred_fallthru
        _
      // Predicated region
      $region21: #{decoder_forward.1} parent=11 // pred_check
        %p300 = pneg %p106
      $region22: #{decoder_forward.1} parent=11 // pred_check_branch
        %302 = sbr.rel (%p300) target = $region24
      $region23: #{decoder_forward.1} parent=11 // pred_region
        _
      $region24: #{decoder_forward.1} parent=11 // pred_fallthru
        _
      // Predicated region
      $region25: #{decoder_forward.1} parent=11 // pred_check
        %p303 = pneg %p127
      $region26: #{decoder_forward.1} parent=11 // pred_check_branch
        %305 = sbr.rel (%p303) target = $region28
      $region27: #{decoder_forward.1} parent=11 // pred_region
        _
      $region28: #{decoder_forward.1} parent=11 // pred_fallthru
        _
      // Predicated region
      $region29: #{decoder_forward.1} parent=11 // pred_check
        %p306 = pneg %p148
      $region30: #{decoder_forward.1} parent=11 // pred_check_branch
        %308 = sbr.rel (%p306) target = $region32
      $region31: #{decoder_forward.1} parent=11 // pred_region
        _
      $region32: #{decoder_forward.1} parent=11 // pred_fallthru
        _
      // Predicated region
      $region33: #{decoder_forward.1} parent=11 // pred_check
        %p309 = pneg %p169
      $region34: #{decoder_forward.1} parent=11 // pred_check_branch
        %311 = sbr.rel (%p309) target = $region36
      $region35: #{decoder_forward.1} parent=11 // pred_region
        _
      $region36: #{decoder_forward.1} parent=11 // pred_fallthru
        _
      // Predicated region
      $region37: #{decoder_forward.1} parent=11 // pred_check
        %p312 = pneg %p190
      $region38: #{decoder_forward.1} parent=11 // pred_check_branch
        %314 = sbr.rel (%p312) target = $region40
      $region39: #{decoder_forward.1} parent=11 // pred_region
        _
      $region40: #{decoder_forward.1} parent=11 // pred_fallthru
        _
      // Predicated region
      $region41: #{decoder_forward.1} parent=11 // pred_check
        %p315 = pneg %p211
      $region42: #{decoder_forward.1} parent=11 // pred_check_branch
        %317 = sbr.rel (%p315) target = $region44
      $region43: #{decoder_forward.1} parent=11 // pred_region
        _
      $region44: #{decoder_forward.1} parent=11 // pred_fallthru
        _
      // Predicated region
      $region45: #{decoder_forward.1} parent=11 // pred_check
        %p318 = pneg %p232
      $region46: #{decoder_forward.1} parent=11 // pred_check_branch
        %320 = sbr.rel (%p318) target = $region48
      $region47: #{decoder_forward.1} parent=11 // pred_region
        _
      $region48: #{decoder_forward.1} parent=11 // pred_fallthru
        _
      // Predicated region
      $region49: #{decoder_forward.1} parent=11 // pred_check
        %p321 = pneg %p253
      $region50: #{decoder_forward.1} parent=11 // pred_check_branch
        %323 = sbr.rel (%p321) target = $region52
      $region51: #{decoder_forward.1} parent=11 // pred_region
        _
      $region52: #{decoder_forward.1} parent=11 // pred_fallthru
        _
    $region12: #{decoder_forward.1} parent=5 // pred_fallthru
      _
    %p324 = scmp.lt.s32.totalorder %s17, 2
    // Predicated region
    $region53: #{decoder_forward.1} parent=5 // pred_check
      %p325 = pneg %p324
    $region54: #{decoder_forward.1} parent=5 // pred_check_branch
      %327 = sbr.rel (%p325) target = $region56
    $region55: #{decoder_forward.1} parent=5 // pred_region
      // Predicated region
      $region57: #{decoder_forward.1} parent=55 // pred_check
        %p328 = pneg %p37
      $region58: #{decoder_forward.1} parent=55 // pred_check_branch
        %330 = sbr.rel (%p328) target = $region60
      $region59: #{decoder_forward.1} parent=55 // pred_region
        %p331 = scmp.lt.s32.totalorder %s17, 1
        %s332 = scalar_select %p331, %s17, 1
        %s333 = smul.addr %s332, 4
        %s334 = smul.addr %s333, 8
        %s335 = scalar_lea.vmem %s0, %s334
      $region60: #{decoder_forward.1} parent=55 // pred_fallthru
        _
    $region56: #{decoder_forward.1} parent=5 // pred_fallthru
      _
    %p336 = scmp.le.s32.totalorder 1, %s17
    %p337 = scmp.lt.s32.totalorder %s17, 3
    %p338 = pnand %p336, %p337
    %p339 = pneg %p338
    // Predicated region
    $region61: #{decoder_forward.1} parent=5 // pred_check
      _
    $region62: #{decoder_forward.1} parent=5 // pred_check_branch
      %341 = sbr.rel (%p338) target = $region64
    $region63: #{decoder_forward.1} parent=5 // pred_region
      %s342 = ssub.s32 %s17, 1
      %p343 = scmp.lt.s32.totalorder %s22, 1
      %s344 = scalar_select %p343, %s22, 1
      %s345 = smul.addr %s344, 4
      %s346 = smul.addr %s345, 8
      %s347 = scalar_lea.vmem %s0, %s346
      %p348 = pneg %p43
      %p349 = pneg %p40
      %p350 = pneg %p64
      %p351 = pneg %p61
      %p352 = pneg %p85
      %p353 = pneg %p82
      %p354 = pneg %p106
      %p355 = pneg %p103
      %p356 = pneg %p127
      %p357 = pneg %p124
      %p358 = pneg %p148
      %p359 = pneg %p145
      %p360 = pneg %p169
      %p361 = pneg %p166
      %p362 = pneg %p190
      %p363 = pneg %p187
      %p364 = pneg %p211
      %p365 = pneg %p208
      %p366 = pneg %p232
      %p367 = pneg %p229
      %p368 = pneg %p253
      %p369 = pneg %p250
      %p370 = pneg %p279
      %p371 = pneg %p276
      %p372 = scmp.lt.s32.totalorder %s22, 1
      %s373 = scalar_select %p372, %s22, 1
      %s374 = smul.addr %s373, 2
      %s375 = smul.addr %s374, 4
      %s376 = scalar_lea.vmem %s11, %s375
      %p377 = scmp.lt.s32.totalorder %s22, 1
      %s378 = scalar_select %p377, %s22, 1
      %s379 = smul.addr %s378, 4
      %s380 = smul.addr %s379, 8
      %s381 = scalar_lea.vmem %s0, %s380
      %p382 = scmp.lt.s32.totalorder %s22, 1
      %s383 = scalar_select %p382, %s22, 1
      %s384 = smul.addr %s383, 2
      %s385 = smul.addr %s384, 4
      %s386 = scalar_lea.vmem %s11, %s385
      %vm387 = vcmask 277504
      %388 = vst.msk [vmem:[#allocation2] sm:$0xff] %vm387, 0.0
      %389 = vst.msk [vmem:[#allocation2 + $0x18] sm:$0xff] %vm387, 0.0
      %vm390 = vcmask 556304
      %391 = vst.msk [vmem:[#allocation2 + $0x10] sm:$0xff] %vm390, 0.0
      %392 = vst.msk [vmem:[#allocation2 + $0x28] sm:$0xff] %vm390, 0.0
      %v393 = vld [vmem:[%s1] ss:$8 sm:$0x3]
      %s394 = scalar_lea.vmem %s1, 1
      %v395 = vld [vmem:[%s394] ss:$8 sm:$0x3]
      %s396 = scalar_lea.vmem %s1, 3
      %v397 = vld [vmem:[%s396] ss:$8 sm:$0x3]
      %s398 = scalar_lea.vmem %s1, 4
      %v399 = vld [vmem:[%s398] ss:$8 sm:$0x3]
      %v400 = vld [vmem:[%s381] sm:$0xff]
      %v401 = vld [vmem:[%s381 + $0x8] sm:$0xff]
      %v402 = vld [vmem:[%s381 + $0x10] sm:$0xff]
      %v403 = vld [vmem:[%s381 + $0x18] sm:$0xff]
      %v404 = vld [vmem:[%s2] sm:$0xff]
      %v405 = vld [vmem:[%s2 + $0x8] sm:$0xff]
      %407 = vset.pattern.permute.xlu0 0
      %408 = vperm.xlu0 %407, %v404
      %v409 = vpop.permute.xlu0 %408
      %412 = vset.pattern.permute.xlu0 0
      %413 = vperm.xlu0 %412, %v405
      %v414 = vpop.permute.xlu0 %413
      %v416 = vadd.f32 %v400, %v409
      %v417 = vadd.f32 %v401, %v409
      %v418 = vadd.f32 %v402, %v414
      %v419 = vadd.f32 %v403, %v414
      %424 = vrot.lane.b32.xlu0 %v416, 34
      %v425 = vpop.permute.xlu0 %424
      %426 = vrot.lane.b32.xlu0 %v417, 34
      %v427 = vpop.permute.xlu0 %426
      %428 = vrot.lane.b32.xlu0 %v418, 34
      %v429 = vpop.permute.xlu0 %428
      %430 = vrot.lane.b32.xlu0 %v419, 34
      %v431 = vpop.permute.xlu0 %430
      %v432 = vsel %vm387, %v425, %v427
      %v433 = vsel %vm387, %v429, %v431
      %vm440 = vcmask 1047824
      %441 = vst.msk [vmem:[#allocation2] sm:$0xff] %vm440, %v425
      %442 = vst [vmem:[#allocation2 + $0x8] sm:$0xff] %v432
      %443 = vst.msk [vmem:[#allocation2 + $0x10] sm:$0xff] %vm387, %v427
      %444 = vst.msk [vmem:[#allocation2 + $0x18] sm:$0xff] %vm440, %v429
      %445 = vst [vmem:[#allocation2 + $0x20] sm:$0xff] %v433
      %446 = vst.msk [vmem:[#allocation2 + $0x28] sm:$0xff] %vm387, %v431
      %v447 = vld [vmem:[#allocation2] sm:$0xff]
      %v448 = vld [vmem:[#allocation2 + $0x8] sm:$0xff]
      %v449 = vld [vmem:[#allocation2 + $0x18] sm:$0xff]
      %v450 = vld [vmem:[#allocation2 + $0x20] sm:$0xff]
      %v452 = vlaneseq
      %v453 = vshrl.u32 %v452, 7
      %v454 = vsub.s32 0, %v453
      %v455 = vrot.slane %v393, %v454
      %v456 = vlaneseq
      %v457 = vshrl.u32 %v456, 7
      %v458 = vsub.s32 1, %v457
      %v459 = vrot.slane %v393, %v458
      %v462 = vmul.f32 %v447, %v455
      %v463 = vmul.f32 %v448, %v459
      %v464 = vmul.f32 %v449, %v455
      %v465 = vmul.f32 %v450, %v459
      %466 = vst [vmem:[#allocation3] sm:$0xff] %v462
      %467 = vst [vmem:[#allocation3 + $0x8] sm:$0xff] %v463
      %468 = vst [vmem:[#allocation3 + $0x10] sm:$0xff] %v464
      %469 = vst [vmem:[#allocation3 + $0x18] sm:$0xff] %v465
      %v470 = vld [vmem:[#allocation2] sm:$0xff]
      %v471 = vld [vmem:[#allocation2 + $0x8] sm:$0xff]
      %v472 = vld [vmem:[#allocation2 + $0x10] sm:$0xff]
      %v473 = vld [vmem:[#allocation2 + $0x18] sm:$0xff]
      %v474 = vld [vmem:[#allocation2 + $0x20] sm:$0xff]
      %v475 = vld [vmem:[#allocation2 + $0x28] sm:$0xff]
      %v477 = vlaneseq
      %v478 = vshrl.u32 %v477, 7
      %v479 = vsub.s32 0, %v478
      %v480 = vrot.slane %v395, %v479
      %v481 = vlaneseq
      %v482 = vshrl.u32 %v481, 7
      %v483 = vsub.s32 1, %v482
      %v484 = vrot.slane %v395, %v483
      %485 = vrot.lane.b32.xlu0 %v480, 1
      %v486 = vpop.permute.xlu0 %485
      %487 = vrot.lane.b32.xlu0 %v484, 1
      %v488 = vpop.permute.xlu0 %487
      %vm489 = vcmask 7168
      %v490 = vsel %vm489, %v486, %v488
      %v494 = vmul.f32 %v470, %v486
      %v495 = vmul.f32 %v471, %v490
      %v496 = vmul.f32 %v472, %v488
      %v497 = vmul.f32 %v473, %v486
      %v498 = vmul.f32 %v474, %v490
      %v499 = vmul.f32 %v475, %v488
      %506 = vrot.lane.b32.xlu0 %v494, 127
      %v507 = vpop.permute.xlu0 %506
      %508 = vrot.lane.b32.xlu0 %v495, 127
      %v509 = vpop.permute.xlu0 %508
      %510 = vrot.lane.b32.xlu0 %v496, 127
      %v511 = vpop.permute.xlu0 %510
      %512 = vrot.lane.b32.xlu0 %v497, 127
      %v513 = vpop.permute.xlu0 %512
      %514 = vrot.lane.b32.xlu0 %v498, 127
      %v515 = vpop.permute.xlu0 %514
      %516 = vrot.lane.b32.xlu0 %v499, 127
      %v517 = vpop.permute.xlu0 %516
      %vm518 = vcmask 1039360
      %v519 = vsel %vm518, %v507, %v509
      %v520 = vsel %vm518, %v509, %v511
      %v521 = vsel %vm518, %v513, %v515
      %v522 = vsel %vm518, %v515, %v517
      %527 = vst [vmem:[#allocation3 + $0x20] sm:$0xff] %v519
      %528 = vst [vmem:[#allocation3 + $0x28] sm:$0xff] %v520
      %529 = vst [vmem:[#allocation3 + $0x30] sm:$0xff] %v521
      %530 = vst [vmem:[#allocation3 + $0x38] sm:$0xff] %v522
      %v531 = vld [vmem:[#allocation2] sm:$0xff]
      %v532 = vld [vmem:[#allocation2 + $0x8] sm:$0xff]
      %v533 = vld [vmem:[#allocation2 + $0x10] sm:$0xff]
      %v534 = vld [vmem:[#allocation2 + $0x18] sm:$0xff]
      %v535 = vld [vmem:[#allocation2 + $0x20] sm:$0xff]
      %v536 = vld [vmem:[#allocation2 + $0x28] sm:$0xff]
      %543 = vrot.lane.b32.xlu0 %v531, 126
      %v544 = vpop.permute.xlu0 %543
      %545 = vrot.lane.b32.xlu0 %v532, 126
      %v546 = vpop.permute.xlu0 %545
      %547 = vrot.lane.b32.xlu0 %v533, 126
      %v548 = vpop.permute.xlu0 %547
      %549 = vrot.lane.b32.xlu0 %v534, 126
      %v550 = vpop.permute.xlu0 %549
      %551 = vrot.lane.b32.xlu0 %v535, 126
      %v552 = vpop.permute.xlu0 %551
      %553 = vrot.lane.b32.xlu0 %v536, 126
      %v554 = vpop.permute.xlu0 %553
      %vm555 = vcmask 1031168
      %v556 = vsel %vm555, %v544, %v546
      %v557 = vsel %vm555, %v546, %v548
      %v558 = vsel %vm555, %v550, %v552
      %v559 = vsel %vm555, %v552, %v554
      %564 = vst [vmem:[#allocation3 + $0x40] sm:$0xff] %v556
      %565 = vst [vmem:[#allocation3 + $0x48] sm:$0xff] %v557
      %566 = vst [vmem:[#allocation3 + $0x50] sm:$0xff] %v558
      %567 = vst [vmem:[#allocation3 + $0x58] sm:$0xff] %v559
      %v568 = vld [vmem:[#allocation2] sm:$0xff]
      %v569 = vld [vmem:[#allocation2 + $0x8] sm:$0xff]
      %v570 = vld [vmem:[#allocation2 + $0x10] sm:$0xff]
      %v571 = vld [vmem:[#allocation2 + $0x18] sm:$0xff]
      %v572 = vld [vmem:[#allocation2 + $0x20] sm:$0xff]
      %v573 = vld [vmem:[#allocation2 + $0x28] sm:$0xff]
      %v575 = vlaneseq
      %v576 = vshrl.u32 %v575, 7
      %v577 = vsub.s32 0, %v576
      %v578 = vrot.slane %v397, %v577
      %v579 = vlaneseq
      %v580 = vshrl.u32 %v579, 7
      %v581 = vsub.s32 1, %v580
      %v582 = vrot.slane %v397, %v581
      %583 = vrot.lane.b32.xlu0 %v578, 3
      %v584 = vpop.permute.xlu0 %583
      %585 = vrot.lane.b32.xlu0 %v582, 3
      %v586 = vpop.permute.xlu0 %585
      %vm587 = vcmask 23552
      %v588 = vsel %vm587, %v584, %v586
      %v592 = vmul.f32 %v568, %v584
      %v593 = vmul.f32 %v569, %v588
      %v594 = vmul.f32 %v570, %v586
      %v595 = vmul.f32 %v571, %v584
      %v596 = vmul.f32 %v572, %v588
      %v597 = vmul.f32 %v573, %v586
      %604 = vrot.lane.b32.xlu0 %v592, 125
      %v605 = vpop.permute.xlu0 %604
      %606 = vrot.lane.b32.xlu0 %v593, 125
      %v607 = vpop.permute.xlu0 %606
      %608 = vrot.lane.b32.xlu0 %v594, 125
      %v609 = vpop.permute.xlu0 %608
      %610 = vrot.lane.b32.xlu0 %v595, 125
      %v611 = vpop.permute.xlu0 %610
      %612 = vrot.lane.b32.xlu0 %v596, 125
      %v613 = vpop.permute.xlu0 %612
      %614 = vrot.lane.b32.xlu0 %v597, 125
      %v615 = vpop.permute.xlu0 %614
      %vm616 = vcmask 1022976
      %v617 = vsel %vm616, %v605, %v607
      %v618 = vsel %vm616, %v607, %v609
      %v619 = vsel %vm616, %v611, %v613
      %v620 = vsel %vm616, %v613, %v615
      %625 = vst [vmem:[#allocation3 + $0x60] sm:$0xff] %v617
      %626 = vst [vmem:[#allocation3 + $0x68] sm:$0xff] %v618
      %627 = vst [vmem:[#allocation3 + $0x70] sm:$0xff] %v619
      %628 = vst [vmem:[#allocation3 + $0x78] sm:$0xff] %v620
      %v629 = vld [vmem:[#allocation2] sm:$0xff]
      %v630 = vld [vmem:[#allocation2 + $0x8] sm:$0xff]
      %v631 = vld [vmem:[#allocation2 + $0x10] sm:$0xff]
      %v632 = vld [vmem:[#allocation2 + $0x18] sm:$0xff]
      %v633 = vld [vmem:[#allocation2 + $0x20] sm:$0xff]
      %v634 = vld [vmem:[#allocation2 + $0x28] sm:$0xff]
      %v636 = vlaneseq
      %v637 = vshrl.u32 %v636, 7
      %v638 = vsub.s32 0, %v637
      %v639 = vrot.slane %v399, %v638
      %v640 = vlaneseq
      %v641 = vshrl.u32 %v640, 7
      %v642 = vsub.s32 1, %v641
      %v643 = vrot.slane %v399, %v642
      %644 = vrot.lane.b32.xlu0 %v639, 4
      %v645 = vpop.permute.xlu0 %644
      %646 = vrot.lane.b32.xlu0 %v643, 4
      %v647 = vpop.permute.xlu0 %646
      %vm648 = vcmask 31744
      %v649 = vsel %vm648, %v645, %v647
      %v653 = vmul.f32 %v629, %v645
      %v654 = vmul.f32 %v630, %v649
      %v655 = vmul.f32 %v631, %v647
      %v656 = vmul.f32 %v632, %v645
      %v657 = vmul.f32 %v633, %v649
      %v658 = vmul.f32 %v634, %v647
      %665 = vrot.lane.b32.xlu0 %v653, 124
      %v666 = vpop.permute.xlu0 %665
      %667 = vrot.lane.b32.xlu0 %v654, 124
      %v668 = vpop.permute.xlu0 %667
      %669 = vrot.lane.b32.xlu0 %v655, 124
      %v670 = vpop.permute.xlu0 %669
      %671 = vrot.lane.b32.xlu0 %v656, 124
      %v672 = vpop.permute.xlu0 %671
      %673 = vrot.lane.b32.xlu0 %v657, 124
      %v674 = vpop.permute.xlu0 %673
      %675 = vrot.lane.b32.xlu0 %v658, 124
      %v676 = vpop.permute.xlu0 %675
      %vm677 = vcmask 1014784
      %v678 = vsel %vm677, %v666, %v668
      %v679 = vsel %vm677, %v668, %v670
      %v680 = vsel %vm677, %v672, %v674
      %v681 = vsel %vm677, %v674, %v676
      %686 = vst [vmem:[#allocation3 + $0x80] sm:$0xff] %v678
      %687 = vst [vmem:[#allocation3 + $0x88] sm:$0xff] %v679
      %688 = vst [vmem:[#allocation3 + $0x90] sm:$0xff] %v680
      %689 = vst [vmem:[#allocation3 + $0x98] sm:$0xff] %v681
      %v690 = vld [vmem:[#allocation2] sm:$0xff]
      %v691 = vld [vmem:[#allocation2 + $0x8] sm:$0xff]
      %v692 = vld [vmem:[#allocation2 + $0x10] sm:$0xff]
      %v693 = vld [vmem:[#allocation2 + $0x18] sm:$0xff]
      %v694 = vld [vmem:[#allocation2 + $0x20] sm:$0xff]
      %v695 = vld [vmem:[#allocation2 + $0x28] sm:$0xff]
      %696 = vrot.lane.b32.xlu0 %v455, 16
      %v697 = vpop.permute.xlu0 %696
      %698 = vrot.lane.b32.xlu0 %v459, 16
      %v699 = vpop.permute.xlu0 %698
      %vm700 = vcmask 130048
      %v701 = vsel %vm700, %v697, %v699
      %v705 = vmul.f32 %v690, %v697
      %v706 = vmul.f32 %v691, %v701
      %v707 = vmul.f32 %v692, %v699
      %v708 = vmul.f32 %v693, %v697
      %v709 = vmul.f32 %v694, %v701
      %v710 = vmul.f32 %v695, %v699
      %717 = vrot.lane.b32.xlu0 %v705, 112
      %v718 = vpop.permute.xlu0 %717
      %719 = vrot.lane.b32.xlu0 %v706, 112
      %v720 = vpop.permute.xlu0 %719
      %721 = vrot.lane.b32.xlu0 %v707, 112
      %v722 = vpop.permute.xlu0 %721
      %723 = vrot.lane.b32.xlu0 %v708, 112
      %v724 = vpop.permute.xlu0 %723
      %725 = vrot.lane.b32.xlu0 %v709, 112
      %v726 = vpop.permute.xlu0 %725
      %727 = vrot.lane.b32.xlu0 %v710, 112
      %v728 = vpop.permute.xlu0 %727
      %vm729 = vcmask 916480
      %v730 = vsel %vm729, %v718, %v720
      %v731 = vsel %vm729, %v720, %v722
      %v732 = vsel %vm729, %v724, %v726
      %v733 = vsel %vm729, %v726, %v728
      %738 = vst [vmem:[#allocation3 + $0xa0] sm:$0xff] %v730
      %739 = vst [vmem:[#allocation3 + $0xa8] sm:$0xff] %v731
      %740 = vst [vmem:[#allocation3 + $0xb0] sm:$0xff] %v732
      %741 = vst [vmem:[#allocation3 + $0xb8] sm:$0xff] %v733
      %v742 = vld [vmem:[#allocation2] sm:$0xff]
      %v743 = vld [vmem:[#allocation2 + $0x8] sm:$0xff]
      %v744 = vld [vmem:[#allocation2 + $0x10] sm:$0xff]
      %v745 = vld [vmem:[#allocation2 + $0x18] sm:$0xff]
      %v746 = vld [vmem:[#allocation2 + $0x20] sm:$0xff]
      %v747 = vld [vmem:[#allocation2 + $0x28] sm:$0xff]
      %748 = vrot.lane.b32.xlu0 %v480, 17
      %v749 = vpop.permute.xlu0 %748
      %750 = vrot.lane.b32.xlu0 %v484, 17
      %v751 = vpop.permute.xlu0 %750
      %vm752 = vcmask 138240
      %v753 = vsel %vm752, %v749, %v751
      %v757 = vmul.f32 %v742, %v749
      %v758 = vmul.f32 %v743, %v753
      %v759 = vmul.f32 %v744, %v751
      %v760 = vmul.f32 %v745, %v749
      %v761 = vmul.f32 %v746, %v753
      %v762 = vmul.f32 %v747, %v751
      %769 = vrot.lane.b32.xlu0 %v757, 111
      %v770 = vpop.permute.xlu0 %769
      %771 = vrot.lane.b32.xlu0 %v758, 111
      %v772 = vpop.permute.xlu0 %771
      %773 = vrot.lane.b32.xlu0 %v759, 111
      %v774 = vpop.permute.xlu0 %773
      %775 = vrot.lane.b32.xlu0 %v760, 111
      %v776 = vpop.permute.xlu0 %775
      %777 = vrot.lane.b32.xlu0 %v761, 111
      %v778 = vpop.permute.xlu0 %777
      %779 = vrot.lane.b32.xlu0 %v762, 111
      %v780 = vpop.permute.xlu0 %779
      %vm781 = vcmask 908288
      %v782 = vsel %vm781, %v770, %v772
      %v783 = vsel %vm781, %v772, %v774
      %v784 = vsel %vm781, %v776, %v778
      %v785 = vsel %vm781, %v778, %v780
      %790 = vst [vmem:[#allocation3 + $0xc0] sm:$0xff] %v782
      %791 = vst [vmem:[#allocation3 + $0xc8] sm:$0xff] %v783
      %792 = vst [vmem:[#allocation3 + $0xd0] sm:$0xff] %v784
      %793 = vst [vmem:[#allocation3 + $0xd8] sm:$0xff] %v785
      %v794 = vld [vmem:[#allocation2] sm:$0xff]
      %v795 = vld [vmem:[#allocation2 + $0x8] sm:$0xff]
      %v796 = vld [vmem:[#allocation2 + $0x10] sm:$0xff]
      %v797 = vld [vmem:[#allocation2 + $0x18] sm:$0xff]
      %v798 = vld [vmem:[#allocation2 + $0x20] sm:$0xff]
      %v799 = vld [vmem:[#allocation2 + $0x28] sm:$0xff]
      %806 = vrot.lane.b32.xlu0 %v794, 110
      %v807 = vpop.permute.xlu0 %806
      %808 = vrot.lane.b32.xlu0 %v795, 110
      %v809 = vpop.permute.xlu0 %808
      %810 = vrot.lane.b32.xlu0 %v796, 110
      %v811 = vpop.permute.xlu0 %810
      %812 = vrot.lane.b32.xlu0 %v797, 110
      %v813 = vpop.permute.xlu0 %812
      %814 = vrot.lane.b32.xlu0 %v798, 110
      %v815 = vpop.permute.xlu0 %814
      %816 = vrot.lane.b32.xlu0 %v799, 110
      %v817 = vpop.permute.xlu0 %816
      %vm818 = vcmask 900096
      %v819 = vsel %vm818, %v807, %v809
      %v820 = vsel %vm818, %v809, %v811
      %v821 = vsel %vm818, %v813, %v815
      %v822 = vsel %vm818, %v815, %v817
      %827 = vst [vmem:[#allocation3 + $0xe0] sm:$0xff] %v819
      %828 = vst [vmem:[#allocation3 + $0xe8] sm:$0xff] %v820
      %829 = vst [vmem:[#allocation3 + $0xf0] sm:$0xff] %v821
      %830 = vst [vmem:[#allocation3 + $0xf8] sm:$0xff] %v822
      %v831 = vld [vmem:[#allocation2] sm:$0xff]
      %v832 = vld [vmem:[#allocation2 + $0x8] sm:$0xff]
      %v833 = vld [vmem:[#allocation2 + $0x10] sm:$0xff]
      %v834 = vld [vmem:[#allocation2 + $0x18] sm:$0xff]
      %v835 = vld [vmem:[#allocation2 + $0x20] sm:$0xff]
      %v836 = vld [vmem:[#allocation2 + $0x28] sm:$0xff]
      %837 = vrot.lane.b32.xlu0 %v578, 19
      %v838 = vpop.permute.xlu0 %837
      %839 = vrot.lane.b32.xlu0 %v582, 19
      %v840 = vpop.permute.xlu0 %839
      %vm841 = vcmask 154624
      %v842 = vsel %vm841, %v838, %v840
      %v846 = vmul.f32 %v831, %v838
      %v847 = vmul.f32 %v832, %v842
      %v848 = vmul.f32 %v833, %v840
      %v849 = vmul.f32 %v834, %v838
      %v850 = vmul.f32 %v835, %v842
      %v851 = vmul.f32 %v836, %v840
      %858 = vrot.lane.b32.xlu0 %v846, 109
      %v859 = vpop.permute.xlu0 %858
      %860 = vrot.lane.b32.xlu0 %v847, 109
      %v861 = vpop.permute.xlu0 %860
      %862 = vrot.lane.b32.xlu0 %v848, 109
      %v863 = vpop.permute.xlu0 %862
      %864 = vrot.lane.b32.xlu0 %v849, 109
      %v865 = vpop.permute.xlu0 %864
      %866 = vrot.lane.b32.xlu0 %v850, 109
      %v867 = vpop.permute.xlu0 %866
      %868 = vrot.lane.b32.xlu0 %v851, 109
      %v869 = vpop.permute.xlu0 %868
      %vm870 = vcmask 891904
      %v871 = vsel %vm870, %v859, %v861
      %v872 = vsel %vm870, %v861, %v863
      %v873 = vsel %vm870, %v865, %v867
      %v874 = vsel %vm870, %v867, %v869
      %879 = vst [vmem:[#allocation3 + $0x100] sm:$0xff] %v871
      %880 = vst [vmem:[#allocation3 + $0x108] sm:$0xff] %v872
      %881 = vst [vmem:[#allocation3 + $0x110] sm:$0xff] %v873
      %882 = vst [vmem:[#allocation3 + $0x118] sm:$0xff] %v874
      %v883 = vld [vmem:[#allocation2] sm:$0xff]
      %v884 = vld [vmem:[#allocation2 + $0x8] sm:$0xff]
      %v885 = vld [vmem:[#allocation2 + $0x10] sm:$0xff]
      %v886 = vld [vmem:[#allocation2 + $0x18] sm:$0xff]
      %v887 = vld [vmem:[#allocation2 + $0x20] sm:$0xff]
      %v888 = vld [vmem:[#allocation2 + $0x28] sm:$0xff]
      %889 = vrot.lane.b32.xlu0 %v639, 20
      %v890 = vpop.permute.xlu0 %889
      %891 = vrot.lane.b32.xlu0 %v643, 20
      %v892 = vpop.permute.xlu0 %891
      %vm893 = vcmask 162816
      %v894 = vsel %vm893, %v890, %v892
      %v898 = vmul.f32 %v883, %v890
      %v899 = vmul.f32 %v884, %v894
      %v900 = vmul.f32 %v885, %v892
      %v901 = vmul.f32 %v886, %v890
      %v902 = vmul.f32 %v887, %v894
      %v903 = vmul.f32 %v888, %v892
      %910 = vrot.lane.b32.xlu0 %v898, 108
      %v911 = vpop.permute.xlu0 %910
      %912 = vrot.lane.b32.xlu0 %v899, 108
      %v913 = vpop.permute.xlu0 %912
      %914 = vrot.lane.b32.xlu0 %v900, 108
      %v915 = vpop.permute.xlu0 %914
      %916 = vrot.lane.b32.xlu0 %v901, 108
      %v917 = vpop.permute.xlu0 %916
      %918 = vrot.lane.b32.xlu0 %v902, 108
      %v919 = vpop.permute.xlu0 %918
      %920 = vrot.lane.b32.xlu0 %v903, 108
      %v921 = vpop.permute.xlu0 %920
      %vm922 = vcmask 883712
      %v923 = vsel %vm922, %v911, %v913
      %v924 = vsel %vm922, %v913, %v915
      %v925 = vsel %vm922, %v917, %v919
      %v926 = vsel %vm922, %v919, %v921
      %931 = vst [vmem:[#allocation3 + $0x120] sm:$0xff] %v923
      %932 = vst [vmem:[#allocation3 + $0x128] sm:$0xff] %v924
      %933 = vst [vmem:[#allocation3 + $0x130] sm:$0xff] %v925
      %934 = vst [vmem:[#allocation3 + $0x138] sm:$0xff] %v926
      %v935 = vld [vmem:[#allocation2] sm:$0xff]
      %v936 = vld [vmem:[#allocation2 + $0x8] sm:$0xff]
      %v937 = vld [vmem:[#allocation2 + $0x10] sm:$0xff]
      %v938 = vld [vmem:[#allocation2 + $0x18] sm:$0xff]
      %v939 = vld [vmem:[#allocation2 + $0x20] sm:$0xff]
      %v940 = vld [vmem:[#allocation2 + $0x28] sm:$0xff]
      %941 = vrot.lane.b32.xlu0 %v455, 32
      %v942 = vpop.permute.xlu0 %941
      %943 = vrot.lane.b32.xlu0 %v459, 32
      %v944 = vpop.permute.xlu0 %943
      %vm945 = vcmask 261120
      %v946 = vsel %vm945, %v942, %v944
      %v950 = vmul.f32 %v935, %v942
      %v951 = vmul.f32 %v936, %v946
      %v952 = vmul.f32 %v937, %v944
      %v953 = vmul.f32 %v938, %v942
      %v954 = vmul.f32 %v939, %v946
      %v955 = vmul.f32 %v940, %v944
      %962 = vrot.lane.b32.xlu0 %v950, 96
      %v963 = vpop.permute.xlu0 %962
      %964 = vrot.lane.b32.xlu0 %v951, 96
      %v965 = vpop.permute.xlu0 %964
      %966 = vrot.lane.b32.xlu0 %v952, 96
      %v967 = vpop.permute.xlu0 %966
      %968 = vrot.lane.b32.xlu0 %v953, 96
      %v969 = vpop.permute.xlu0 %968
      %970 = vrot.lane.b32.xlu0 %v954, 96
      %v971 = vpop.permute.xlu0 %970
      %972 = vrot.lane.b32.xlu0 %v955, 96
      %v973 = vpop.permute.xlu0 %972
      %vm974 = vcmask 785408
      %v975 = vsel %vm974, %v963, %v965
      %v976 = vsel %vm974, %v965, %v967
      %v977 = vsel %vm974, %v969, %v971
      %v978 = vsel %vm974, %v971, %v973
      %983 = vst [vmem:[#allocation3 + $0x140] sm:$0xff] %v975
      %984 = vst [vmem:[#allocation3 + $0x148] sm:$0xff] %v976
      %985 = vst [vmem:[#allocation3 + $0x150] sm:$0xff] %v977
      %986 = vst [vmem:[#allocation3 + $0x158] sm:$0xff] %v978
      %v987 = vld [vmem:[#allocation2] sm:$0xff]
      %v988 = vld [vmem:[#allocation2 + $0x8] sm:$0xff]
      %v989 = vld [vmem:[#allocation2 + $0x10] sm:$0xff]
      %v990 = vld [vmem:[#allocation2 + $0x18] sm:$0xff]
      %v991 = vld [vmem:[#allocation2 + $0x20] sm:$0xff]
      %v992 = vld [vmem:[#allocation2 + $0x28] sm:$0xff]
      %993 = vrot.lane.b32.xlu0 %v480, 33
      %v994 = vpop.permute.xlu0 %993
      %995 = vrot.lane.b32.xlu0 %v484, 33
      %v996 = vpop.permute.xlu0 %995
      %vm997 = vcmask 269312
      %v998 = vsel %vm997, %v994, %v996
      %v1002 = vmul.f32 %v987, %v994
      %v1003 = vmul.f32 %v988, %v998
      %v1004 = vmul.f32 %v989, %v996
      %v1005 = vmul.f32 %v990, %v994
      %v1006 = vmul.f32 %v991, %v998
      %v1007 = vmul.f32 %v992, %v996
      %1014 = vrot.lane.b32.xlu0 %v1002, 95
      %v1015 = vpop.permute.xlu0 %1014
      %1016 = vrot.lane.b32.xlu0 %v1003, 95
      %v1017 = vpop.permute.xlu0 %1016
      %1018 = vrot.lane.b32.xlu0 %v1004, 95
      %v1019 = vpop.permute.xlu0 %1018
      %1020 = vrot.lane.b32.xlu0 %v1005, 95
      %v1021 = vpop.permute.xlu0 %1020
      %1022 = vrot.lane.b32.xlu0 %v1006, 95
      %v1023 = vpop.permute.xlu0 %1022
      %1024 = vrot.lane.b32.xlu0 %v1007, 95
      %v1025 = vpop.permute.xlu0 %1024
      %vm1026 = vcmask 777216
      %v1027 = vsel %vm1026, %v1015, %v1017
      %v1028 = vsel %vm1026, %v1017, %v1019
      %v1029 = vsel %vm1026, %v1021, %v1023
      %v1030 = vsel %vm1026, %v1023, %v1025
      %1035 = vst [vmem:[#allocation3 + $0x160] sm:$0xff] %v1027
      %1036 = vst [vmem:[#allocation3 + $0x168] sm:$0xff] %v1028
      %1037 = vst [vmem:[#allocation3 + $0x170] sm:$0xff] %v1029
      %1038 = vst [vmem:[#allocation3 + $0x178] sm:$0xff] %v1030
      %v1039 = vld [vmem:[#allocation2] sm:$0xff]
      %v1040 = vld [vmem:[#allocation2 + $0x8] sm:$0xff]
      %v1041 = vld [vmem:[#allocation2 + $0x10] sm:$0xff]
      %v1042 = vld [vmem:[#allocation2 + $0x18] sm:$0xff]
      %v1043 = vld [vmem:[#allocation2 + $0x20] sm:$0xff]
      %v1044 = vld [vmem:[#allocation2 + $0x28] sm:$0xff]
      %1051 = vrot.lane.b32.xlu0 %v1039, 94
      %v1052 = vpop.permute.xlu0 %1051
      %1053 = vrot.lane.b32.xlu0 %v1040, 94
      %v1054 = vpop.permute.xlu0 %1053
      %1055 = vrot.lane.b32.xlu0 %v1041, 94
      %v1056 = vpop.permute.xlu0 %1055
      %1057 = vrot.lane.b32.xlu0 %v1042, 94
      %v1058 = vpop.permute.xlu0 %1057
      %1059 = vrot.lane.b32.xlu0 %v1043, 94
      %v1060 = vpop.permute.xlu0 %1059
      %1061 = vrot.lane.b32.xlu0 %v1044, 94
      %v1062 = vpop.permute.xlu0 %1061
      %vm1063 = vcmask 769024
      %v1064 = vsel %vm1063, %v1052, %v1054
      %v1065 = vsel %vm1063, %v1054, %v1056
      %v1066 = vsel %vm1063, %v1058, %v1060
      %v1067 = vsel %vm1063, %v1060, %v1062
      %1072 = vst [vmem:[#allocation3 + $0x180] sm:$0xff] %v1064
      %1073 = vst [vmem:[#allocation3 + $0x188] sm:$0xff] %v1065
      %1074 = vst [vmem:[#allocation3 + $0x190] sm:$0xff] %v1066
      %1075 = vst [vmem:[#allocation3 + $0x198] sm:$0xff] %v1067
      %v1076 = vld [vmem:[#allocation2] sm:$0xff]
      %v1077 = vld [vmem:[#allocation2 + $0x8] sm:$0xff]
      %v1078 = vld [vmem:[#allocation2 + $0x10] sm:$0xff]
      %v1079 = vld [vmem:[#allocation2 + $0x18] sm:$0xff]
      %v1080 = vld [vmem:[#allocation2 + $0x20] sm:$0xff]
      %v1081 = vld [vmem:[#allocation2 + $0x28] sm:$0xff]
      %1082 = vrot.lane.b32.xlu0 %v578, 35
      %v1083 = vpop.permute.xlu0 %1082
      %1084 = vrot.lane.b32.xlu0 %v582, 35
      %v1085 = vpop.permute.xlu0 %1084
      %vm1086 = vcmask 285696
      %v1087 = vsel %vm1086, %v1083, %v1085
      %v1091 = vmul.f32 %v1076, %v1083
      %v1092 = vmul.f32 %v1077, %v1087
      %v1093 = vmul.f32 %v1078, %v1085
      %v1094 = vmul.f32 %v1079, %v1083
      %v1095 = vmul.f32 %v1080, %v1087
      %v1096 = vmul.f32 %v1081, %v1085
      %1103 = vrot.lane.b32.xlu0 %v1091, 93
      %v1104 = vpop.permute.xlu0 %1103
      %1105 = vrot.lane.b32.xlu0 %v1092, 93
      %v1106 = vpop.permute.xlu0 %1105
      %1107 = vrot.lane.b32.xlu0 %v1093, 93
      %v1108 = vpop.permute.xlu0 %1107
      %1109 = vrot.lane.b32.xlu0 %v1094, 93
      %v1110 = vpop.permute.xlu0 %1109
      %1111 = vrot.lane.b32.xlu0 %v1095, 93
      %v1112 = vpop.permute.xlu0 %1111
      %1113 = vrot.lane.b32.xlu0 %v1096, 93
      %v1114 = vpop.permute.xlu0 %1113
      %vm1115 = vcmask 760832
      %v1116 = vsel %vm1115, %v1104, %v1106
      %v1117 = vsel %vm1115, %v1106, %v1108
      %v1118 = vsel %vm1115, %v1110, %v1112
      %v1119 = vsel %vm1115, %v1112, %v1114
      %1124 = vst [vmem:[#allocation3 + $0x1a0] sm:$0xff] %v1116
      %1125 = vst [vmem:[#allocation3 + $0x1a8] sm:$0xff] %v1117
      %1126 = vst [vmem:[#allocation3 + $0x1b0] sm:$0xff] %v1118
      %1127 = vst [vmem:[#allocation3 + $0x1b8] sm:$0xff] %v1119
      %v1128 = vld [vmem:[#allocation2] sm:$0xff]
      %v1129 = vld [vmem:[#allocation2 + $0x8] sm:$0xff]
      %v1130 = vld [vmem:[#allocation2 + $0x10] sm:$0xff]
      %v1131 = vld [vmem:[#allocation2 + $0x18] sm:$0xff]
      %v1132 = vld [vmem:[#allocation2 + $0x20] sm:$0xff]
      %v1133 = vld [vmem:[#allocation2 + $0x28] sm:$0xff]
      %1134 = vrot.lane.b32.xlu0 %v639, 36
      %v1135 = vpop.permute.xlu0 %1134
      %1136 = vrot.lane.b32.xlu0 %v643, 36
      %v1137 = vpop.permute.xlu0 %1136
      %vm1138 = vcmask 293888
      %v1139 = vsel %vm1138, %v1135, %v1137
      %v1143 = vmul.f32 %v1128, %v1135
      %v1144 = vmul.f32 %v1129, %v1139
      %v1145 = vmul.f32 %v1130, %v1137
      %v1146 = vmul.f32 %v1131, %v1135
      %v1147 = vmul.f32 %v1132, %v1139
      %v1148 = vmul.f32 %v1133, %v1137
      %1155 = vrot.lane.b32.xlu0 %v1143, 92
      %v1156 = vpop.permute.xlu0 %1155
      %1157 = vrot.lane.b32.xlu0 %v1144, 92
      %v1158 = vpop.permute.xlu0 %1157
      %1159 = vrot.lane.b32.xlu0 %v1145, 92
      %v1160 = vpop.permute.xlu0 %1159
      %1161 = vrot.lane.b32.xlu0 %v1146, 92
      %v1162 = vpop.permute.xlu0 %1161
      %1163 = vrot.lane.b32.xlu0 %v1147, 92
      %v1164 = vpop.permute.xlu0 %1163
      %1165 = vrot.lane.b32.xlu0 %v1148, 92
      %v1166 = vpop.permute.xlu0 %1165
      %vm1167 = vcmask 752640
      %v1168 = vsel %vm1167, %v1156, %v1158
      %v1169 = vsel %vm1167, %v1158, %v1160
      %v1170 = vsel %vm1167, %v1162, %v1164
      %v1171 = vsel %vm1167, %v1164, %v1166
      %1176 = vst [vmem:[#allocation3 + $0x1c0] sm:$0xff] %v1168
      %1177 = vst [vmem:[#allocation3 + $0x1c8] sm:$0xff] %v1169
      %1178 = vst [vmem:[#allocation3 + $0x1d0] sm:$0xff] %v1170
      %1179 = vst [vmem:[#allocation3 + $0x1d8] sm:$0xff] %v1171
      %v1180 = vld [vmem:[#allocation2] sm:$0xff]
      %v1181 = vld [vmem:[#allocation2 + $0x8] sm:$0xff]
      %v1182 = vld [vmem:[#allocation2 + $0x10] sm:$0xff]
      %v1183 = vld [vmem:[#allocation2 + $0x18] sm:$0xff]
      %v1184 = vld [vmem:[#allocation2 + $0x20] sm:$0xff]
      %v1185 = vld [vmem:[#allocation2 + $0x28] sm:$0xff]
      %1186 = vrot.lane.b32.xlu0 %v455, 48
      %v1187 = vpop.permute.xlu0 %1186
      %1188 = vrot.lane.b32.xlu0 %v459, 48
      %v1189 = vpop.permute.xlu0 %1188
      %vm1190 = vcmask 392192
      %v1191 = vsel %vm1190, %v1187, %v1189
      %v1195 = vmul.f32 %v1180, %v1187
      %v1196 = vmul.f32 %v1181, %v1191
      %v1197 = vmul.f32 %v1182, %v1189
      %v1198 = vmul.f32 %v1183, %v1187
      %v1199 = vmul.f32 %v1184, %v1191
      %v1200 = vmul.f32 %v1185, %v1189
      %1207 = vrot.lane.b32.xlu0 %v1195, 80
      %v1208 = vpop.permute.xlu0 %1207
      %1209 = vrot.lane.b32.xlu0 %v1196, 80
      %v1210 = vpop.permute.xlu0 %1209
      %1211 = vrot.lane.b32.xlu0 %v1197, 80
      %v1212 = vpop.permute.xlu0 %1211
      %1213 = vrot.lane.b32.xlu0 %v1198, 80
      %v1214 = vpop.permute.xlu0 %1213
      %1215 = vrot.lane.b32.xlu0 %v1199, 80
      %v1216 = vpop.permute.xlu0 %1215
      %1217 = vrot.lane.b32.xlu0 %v1200, 80
      %v1218 = vpop.permute.xlu0 %1217
      %vm1219 = vcmask 654336
      %v1220 = vsel %vm1219, %v1208, %v1210
      %v1221 = vsel %vm1219, %v1210, %v1212
      %v1222 = vsel %vm1219, %v1214, %v1216
      %v1223 = vsel %vm1219, %v1216, %v1218
      %1228 = vst [vmem:[#allocation3 + $0x1e0] sm:$0xff] %v1220
      %1229 = vst [vmem:[#allocation3 + $0x1e8] sm:$0xff] %v1221
      %1230 = vst [vmem:[#allocation3 + $0x1f0] sm:$0xff] %v1222
      %1231 = vst [vmem:[#allocation3 + $0x1f8] sm:$0xff] %v1223
      %v1232 = vld [vmem:[#allocation2] sm:$0xff]
      %v1233 = vld [vmem:[#allocation2 + $0x8] sm:$0xff]
      %v1234 = vld [vmem:[#allocation2 + $0x10] sm:$0xff]
      %v1235 = vld [vmem:[#allocation2 + $0x18] sm:$0xff]
      %v1236 = vld [vmem:[#allocation2 + $0x20] sm:$0xff]
      %v1237 = vld [vmem:[#allocation2 + $0x28] sm:$0xff]
      %1238 = vrot.lane.b32.xlu0 %v480, 49
      %v1239 = vpop.permute.xlu0 %1238
      %1240 = vrot.lane.b32.xlu0 %v484, 49
      %v1241 = vpop.permute.xlu0 %1240
      %vm1242 = vcmask 400384
      %v1243 = vsel %vm1242, %v1239, %v1241
      %v1247 = vmul.f32 %v1232, %v1239
      %v1248 = vmul.f32 %v1233, %v1243
      %v1249 = vmul.f32 %v1234, %v1241
      %v1250 = vmul.f32 %v1235, %v1239
      %v1251 = vmul.f32 %v1236, %v1243
      %v1252 = vmul.f32 %v1237, %v1241
      %1259 = vrot.lane.b32.xlu0 %v1247, 79
      %v1260 = vpop.permute.xlu0 %1259
      %1261 = vrot.lane.b32.xlu0 %v1248, 79
      %v1262 = vpop.permute.xlu0 %1261
      %1263 = vrot.lane.b32.xlu0 %v1249, 79
      %v1264 = vpop.permute.xlu0 %1263
      %1265 = vrot.lane.b32.xlu0 %v1250, 79
      %v1266 = vpop.permute.xlu0 %1265
      %1267 = vrot.lane.b32.xlu0 %v1251, 79
      %v1268 = vpop.permute.xlu0 %1267
      %1269 = vrot.lane.b32.xlu0 %v1252, 79
      %v1270 = vpop.permute.xlu0 %1269
      %vm1271 = vcmask 646144
      %v1272 = vsel %vm1271, %v1260, %v1262
      %v1273 = vsel %vm1271, %v1262, %v1264
      %v1274 = vsel %vm1271, %v1266, %v1268
      %v1275 = vsel %vm1271, %v1268, %v1270
      %1280 = vst [vmem:[#allocation3 + $0x200] sm:$0xff] %v1272
      %1281 = vst [vmem:[#allocation3 + $0x208] sm:$0xff] %v1273
      %1282 = vst [vmem:[#allocation3 + $0x210] sm:$0xff] %v1274
      %1283 = vst [vmem:[#allocation3 + $0x218] sm:$0xff] %v1275
      %v1284 = vld [vmem:[#allocation2] sm:$0xff]
      %v1285 = vld [vmem:[#allocation2 + $0x8] sm:$0xff]
      %v1286 = vld [vmem:[#allocation2 + $0x10] sm:$0xff]
      %v1287 = vld [vmem:[#allocation2 + $0x18] sm:$0xff]
      %v1288 = vld [vmem:[#allocation2 + $0x20] sm:$0xff]
      %v1289 = vld [vmem:[#allocation2 + $0x28] sm:$0xff]
      %1296 = vrot.lane.b32.xlu0 %v1284, 78
      %v1297 = vpop.permute.xlu0 %1296
      %1298 = vrot.lane.b32.xlu0 %v1285, 78
      %v1299 = vpop.permute.xlu0 %1298
      %1300 = vrot.lane.b32.xlu0 %v1286, 78
      %v1301 = vpop.permute.xlu0 %1300
      %1302 = vrot.lane.b32.xlu0 %v1287, 78
      %v1303 = vpop.permute.xlu0 %1302
      %1304 = vrot.lane.b32.xlu0 %v1288, 78
      %v1305 = vpop.permute.xlu0 %1304
      %1306 = vrot.lane.b32.xlu0 %v1289, 78
      %v1307 = vpop.permute.xlu0 %1306
      %vm1308 = vcmask 637952
      %v1309 = vsel %vm1308, %v1297, %v1299
      %v1310 = vsel %vm1308, %v1299, %v1301
      %v1311 = vsel %vm1308, %v1303, %v1305
      %v1312 = vsel %vm1308, %v1305, %v1307
      %1317 = vst [vmem:[#allocation3 + $0x220] sm:$0xff] %v1309
      %1318 = vst [vmem:[#allocation3 + $0x228] sm:$0xff] %v1310
      %1319 = vst [vmem:[#allocation3 + $0x230] sm:$0xff] %v1311
      %1320 = vst [vmem:[#allocation3 + $0x238] sm:$0xff] %v1312
      %v1321 = vld [vmem:[#allocation2] sm:$0xff]
      %v1322 = vld [vmem:[#allocation2 + $0x8] sm:$0xff]
      %v1323 = vld [vmem:[#allocation2 + $0x10] sm:$0xff]
      %v1324 = vld [vmem:[#allocation2 + $0x18] sm:$0xff]
      %v1325 = vld [vmem:[#allocation2 + $0x20] sm:$0xff]
      %v1326 = vld [vmem:[#allocation2 + $0x28] sm:$0xff]
      %1327 = vrot.lane.b32.xlu0 %v578, 51
      %v1328 = vpop.permute.xlu0 %1327
      %1329 = vrot.lane.b32.xlu0 %v582, 51
      %v1330 = vpop.permute.xlu0 %1329
      %vm1331 = vcmask 416768
      %v1332 = vsel %vm1331, %v1328, %v1330
      %v1336 = vmul.f32 %v1321, %v1328
      %v1337 = vmul.f32 %v1322, %v1332
      %v1338 = vmul.f32 %v1323, %v1330
      %v1339 = vmul.f32 %v1324, %v1328
      %v1340 = vmul.f32 %v1325, %v1332
      %v1341 = vmul.f32 %v1326, %v1330
      %1348 = vrot.lane.b32.xlu0 %v1336, 77
      %v1349 = vpop.permute.xlu0 %1348
      %1350 = vrot.lane.b32.xlu0 %v1337, 77
      %v1351 = vpop.permute.xlu0 %1350
      %1352 = vrot.lane.b32.xlu0 %v1338, 77
      %v1353 = vpop.permute.xlu0 %1352
      %1354 = vrot.lane.b32.xlu0 %v1339, 77
      %v1355 = vpop.permute.xlu0 %1354
      %1356 = vrot.lane.b32.xlu0 %v1340, 77
      %v1357 = vpop.permute.xlu0 %1356
      %1358 = vrot.lane.b32.xlu0 %v1341, 77
      %v1359 = vpop.permute.xlu0 %1358
      %vm1360 = vcmask 629760
      %v1361 = vsel %vm1360, %v1349, %v1351
      %v1362 = vsel %vm1360, %v1351, %v1353
      %v1363 = vsel %vm1360, %v1355, %v1357
      %v1364 = vsel %vm1360, %v1357, %v1359
      %1369 = vst [vmem:[#allocation3 + $0x240] sm:$0xff] %v1361
      %1370 = vst [vmem:[#allocation3 + $0x248] sm:$0xff] %v1362
      %1371 = vst [vmem:[#allocation3 + $0x250] sm:$0xff] %v1363
      %1372 = vst [vmem:[#allocation3 + $0x258] sm:$0xff] %v1364
      %v1373 = vld [vmem:[#allocation2] sm:$0xff]
      %v1374 = vld [vmem:[#allocation2 + $0x8] sm:$0xff]
      %v1375 = vld [vmem:[#allocation2 + $0x10] sm:$0xff]
      %v1376 = vld [vmem:[#allocation2 + $0x18] sm:$0xff]
      %v1377 = vld [vmem:[#allocation2 + $0x20] sm:$0xff]
      %v1378 = vld [vmem:[#allocation2 + $0x28] sm:$0xff]
      %1379 = vrot.lane.b32.xlu0 %v639, 52
      %v1380 = vpop.permute.xlu0 %1379
      %1381 = vrot.lane.b32.xlu0 %v643, 52
      %v1382 = vpop.permute.xlu0 %1381
      %vm1383 = vcmask 424960
      %v1384 = vsel %vm1383, %v1380, %v1382
      %v1388 = vmul.f32 %v1373, %v1380
      %v1389 = vmul.f32 %v1374, %v1384
      %v1390 = vmul.f32 %v1375, %v1382
      %v1391 = vmul.f32 %v1376, %v1380
      %v1392 = vmul.f32 %v1377, %v1384
      %v1393 = vmul.f32 %v1378, %v1382
      %1400 = vrot.lane.b32.xlu0 %v1388, 76
      %v1401 = vpop.permute.xlu0 %1400
      %1402 = vrot.lane.b32.xlu0 %v1389, 76
      %v1403 = vpop.permute.xlu0 %1402
      %1404 = vrot.lane.b32.xlu0 %v1390, 76
      %v1405 = vpop.permute.xlu0 %1404
      %1406 = vrot.lane.b32.xlu0 %v1391, 76
      %v1407 = vpop.permute.xlu0 %1406
      %1408 = vrot.lane.b32.xlu0 %v1392, 76
      %v1409 = vpop.permute.xlu0 %1408
      %1410 = vrot.lane.b32.xlu0 %v1393, 76
      %v1411 = vpop.permute.xlu0 %1410
      %vm1412 = vcmask 621568
      %v1413 = vsel %vm1412, %v1401, %v1403
      %v1414 = vsel %vm1412, %v1403, %v1405
      %v1415 = vsel %vm1412, %v1407, %v1409
      %v1416 = vsel %vm1412, %v1409, %v1411
      %1421 = vst [vmem:[#allocation3 + $0x260] sm:$0xff] %v1413
      %1422 = vst [vmem:[#allocation3 + $0x268] sm:$0xff] %v1414
      %1423 = vst [vmem:[#allocation3 + $0x270] sm:$0xff] %v1415
      %1424 = vst [vmem:[#allocation3 + $0x278] sm:$0xff] %v1416
      %v1425 = vld [vmem:[#allocation2] sm:$0xff]
      %v1426 = vld [vmem:[#allocation2 + $0x8] sm:$0xff]
      %v1427 = vld [vmem:[#allocation2 + $0x10] sm:$0xff]
      %v1428 = vld [vmem:[#allocation2 + $0x18] sm:$0xff]
      %v1429 = vld [vmem:[#allocation2 + $0x20] sm:$0xff]
      %v1430 = vld [vmem:[#allocation2 + $0x28] sm:$0xff]
      %1431 = vrot.lane.b32.xlu0 %v455, 64
      %v1432 = vpop.permute.xlu0 %1431
      %1433 = vrot.lane.b32.xlu0 %v459, 64
      %v1434 = vpop.permute.xlu0 %1433
      %vm1435 = vcmask 523264
      %v1436 = vsel %vm1435, %v1432, %v1434
      %v1440 = vmul.f32 %v1425, %v1432
      %v1441 = vmul.f32 %v1426, %v1436
      %v1442 = vmul.f32 %v1427, %v1434
      %v1443 = vmul.f32 %v1428, %v1432
      %v1444 = vmul.f32 %v1429, %v1436
      %v1445 = vmul.f32 %v1430, %v1434
      %1452 = vrot.lane.b32.xlu0 %v1440, 64
      %v1453 = vpop.permute.xlu0 %1452
      %1454 = vrot.lane.b32.xlu0 %v1441, 64
      %v1455 = vpop.permute.xlu0 %1454
      %1456 = vrot.lane.b32.xlu0 %v1442, 64
      %v1457 = vpop.permute.xlu0 %1456
      %1458 = vrot.lane.b32.xlu0 %v1443, 64
      %v1459 = vpop.permute.xlu0 %1458
      %1460 = vrot.lane.b32.xlu0 %v1444, 64
      %v1461 = vpop.permute.xlu0 %1460
      %1462 = vrot.lane.b32.xlu0 %v1445, 64
      %v1463 = vpop.permute.xlu0 %1462
      %v1464 = vsel %vm1435, %v1453, %v1455
      %v1465 = vsel %vm1435, %v1455, %v1457
      %v1466 = vsel %vm1435, %v1459, %v1461
      %v1467 = vsel %vm1435, %v1461, %v1463
      %1472 = vst [vmem:[#allocation3 + $0x280] sm:$0xff] %v1464
      %1473 = vst [vmem:[#allocation3 + $0x288] sm:$0xff] %v1465
      %1474 = vst [vmem:[#allocation3 + $0x290] sm:$0xff] %v1466
      %1475 = vst [vmem:[#allocation3 + $0x298] sm:$0xff] %v1467
      %v1476 = vld [vmem:[#allocation2] sm:$0xff]
      %v1477 = vld [vmem:[#allocation2 + $0x8] sm:$0xff]
      %v1478 = vld [vmem:[#allocation2 + $0x10] sm:$0xff]
      %v1479 = vld [vmem:[#allocation2 + $0x18] sm:$0xff]
      %v1480 = vld [vmem:[#allocation2 + $0x20] sm:$0xff]
      %v1481 = vld [vmem:[#allocation2 + $0x28] sm:$0xff]
      %1482 = vrot.lane.b32.xlu0 %v480, 65
      %v1483 = vpop.permute.xlu0 %1482
      %1484 = vrot.lane.b32.xlu0 %v484, 65
      %v1485 = vpop.permute.xlu0 %1484
      %vm1486 = vcmask 531456
      %v1487 = vsel %vm1486, %v1483, %v1485
      %v1491 = vmul.f32 %v1476, %v1483
      %v1492 = vmul.f32 %v1477, %v1487
      %v1493 = vmul.f32 %v1478, %v1485
      %v1494 = vmul.f32 %v1479, %v1483
      %v1495 = vmul.f32 %v1480, %v1487
      %v1496 = vmul.f32 %v1481, %v1485
      %1503 = vrot.lane.b32.xlu0 %v1491, 63
      %v1504 = vpop.permute.xlu0 %1503
      %1505 = vrot.lane.b32.xlu0 %v1492, 63
      %v1506 = vpop.permute.xlu0 %1505
      %1507 = vrot.lane.b32.xlu0 %v1493, 63
      %v1508 = vpop.permute.xlu0 %1507
      %1509 = vrot.lane.b32.xlu0 %v1494, 63
      %v1510 = vpop.permute.xlu0 %1509
      %1511 = vrot.lane.b32.xlu0 %v1495, 63
      %v1512 = vpop.permute.xlu0 %1511
      %1513 = vrot.lane.b32.xlu0 %v1496, 63
      %v1514 = vpop.permute.xlu0 %1513
      %vm1515 = vcmask 515072
      %v1516 = vsel %vm1515, %v1504, %v1506
      %v1517 = vsel %vm1515, %v1506, %v1508
      %v1518 = vsel %vm1515, %v1510, %v1512
      %v1519 = vsel %vm1515, %v1512, %v1514
      %1524 = vst [vmem:[#allocation3 + $0x2a0] sm:$0xff] %v1516
      %1525 = vst [vmem:[#allocation3 + $0x2a8] sm:$0xff] %v1517
      %1526 = vst [vmem:[#allocation3 + $0x2b0] sm:$0xff] %v1518
      %1527 = vst [vmem:[#allocation3 + $0x2b8] sm:$0xff] %v1519
      %v1528 = vld [vmem:[#allocation2] sm:$0xff]
      %v1529 = vld [vmem:[#allocation2 + $0x8] sm:$0xff]
      %v1530 = vld [vmem:[#allocation2 + $0x10] sm:$0xff]
      %v1531 = vld [vmem:[#allocation2 + $0x18] sm:$0xff]
      %v1532 = vld [vmem:[#allocation2 + $0x20] sm:$0xff]
      %v1533 = vld [vmem:[#allocation2 + $0x28] sm:$0xff]
      %1540 = vrot.lane.b32.xlu0 %v1528, 62
      %v1541 = vpop.permute.xlu0 %1540
      %1542 = vrot.lane.b32.xlu0 %v1529, 62
      %v1543 = vpop.permute.xlu0 %1542
      %1544 = vrot.lane.b32.xlu0 %v1530, 62
      %v1545 = vpop.permute.xlu0 %1544
      %1546 = vrot.lane.b32.xlu0 %v1531, 62
      %v1547 = vpop.permute.xlu0 %1546
      %1548 = vrot.lane.b32.xlu0 %v1532, 62
      %v1549 = vpop.permute.xlu0 %1548
      %1550 = vrot.lane.b32.xlu0 %v1533, 62
      %v1551 = vpop.permute.xlu0 %1550
      %vm1552 = vcmask 506880
      %v1553 = vsel %vm1552, %v1541, %v1543
      %v1554 = vsel %vm1552, %v1543, %v1545
      %v1555 = vsel %vm1552, %v1547, %v1549
      %v1556 = vsel %vm1552, %v1549, %v1551
      %1561 = vst [vmem:[#allocation3 + $0x2c0] sm:$0xff] %v1553
      %1562 = vst [vmem:[#allocation3 + $0x2c8] sm:$0xff] %v1554
      %1563 = vst [vmem:[#allocation3 + $0x2d0] sm:$0xff] %v1555
      %1564 = vst [vmem:[#allocation3 + $0x2d8] sm:$0xff] %v1556
      %v1565 = vld [vmem:[#allocation2] sm:$0xff]
      %v1566 = vld [vmem:[#allocation2 + $0x8] sm:$0xff]
      %v1567 = vld [vmem:[#allocation2 + $0x10] sm:$0xff]
      %v1568 = vld [vmem:[#allocation2 + $0x18] sm:$0xff]
      %v1569 = vld [vmem:[#allocation2 + $0x20] sm:$0xff]
      %v1570 = vld [vmem:[#allocation2 + $0x28] sm:$0xff]
      %1571 = vrot.lane.b32.xlu0 %v578, 67
      %v1572 = vpop.permute.xlu0 %1571
      %1573 = vrot.lane.b32.xlu0 %v582, 67
      %v1574 = vpop.permute.xlu0 %1573
      %vm1575 = vcmask 547840
      %v1576 = vsel %vm1575, %v1572, %v1574
      %v1580 = vmul.f32 %v1565, %v1572
      %v1581 = vmul.f32 %v1566, %v1576
      %v1582 = vmul.f32 %v1567, %v1574
      %v1583 = vmul.f32 %v1568, %v1572
      %v1584 = vmul.f32 %v1569, %v1576
      %v1585 = vmul.f32 %v1570, %v1574
      %1592 = vrot.lane.b32.xlu0 %v1580, 61
      %v1593 = vpop.permute.xlu0 %1592
      %1594 = vrot.lane.b32.xlu0 %v1581, 61
      %v1595 = vpop.permute.xlu0 %1594
      %1596 = vrot.lane.b32.xlu0 %v1582, 61
      %v1597 = vpop.permute.xlu0 %1596
      %1598 = vrot.lane.b32.xlu0 %v1583, 61
      %v1599 = vpop.permute.xlu0 %1598
      %1600 = vrot.lane.b32.xlu0 %v1584, 61
      %v1601 = vpop.permute.xlu0 %1600
      %1602 = vrot.lane.b32.xlu0 %v1585, 61
      %v1603 = vpop.permute.xlu0 %1602
      %vm1604 = vcmask 498688
      %v1605 = vsel %vm1604, %v1593, %v1595
      %v1606 = vsel %vm1604, %v1595, %v1597
      %v1607 = vsel %vm1604, %v1599, %v1601
      %v1608 = vsel %vm1604, %v1601, %v1603
      %1613 = vst [vmem:[#allocation3 + $0x2e0] sm:$0xff] %v1605
      %1614 = vst [vmem:[#allocation3 + $0x2e8] sm:$0xff] %v1606
      %1615 = vst [vmem:[#allocation3 + $0x2f0] sm:$0xff] %v1607
      %1616 = vst [vmem:[#allocation3 + $0x2f8] sm:$0xff] %v1608
      %v1617 = vld [vmem:[#allocation2] sm:$0xff]
      %v1618 = vld [vmem:[#allocation2 + $0x8] sm:$0xff]
      %v1619 = vld [vmem:[#allocation2 + $0x10] sm:$0xff]
      %v1620 = vld [vmem:[#allocation2 + $0x18] sm:$0xff]
      %v1621 = vld [vmem:[#allocation2 + $0x20] sm:$0xff]
      %v1622 = vld [vmem:[#allocation2 + $0x28] sm:$0xff]
      %1623 = vrot.lane.b32.xlu0 %v639, 68
      %v1624 = vpop.permute.xlu0 %1623
      %1625 = vrot.lane.b32.xlu0 %v643, 68
      %v1626 = vpop.permute.xlu0 %1625
      %vm1627 = vcmask 556032
      %v1628 = vsel %vm1627, %v1624, %v1626
      %v1632 = vmul.f32 %v1617, %v1624
      %v1633 = vmul.f32 %v1618, %v1628
      %v1634 = vmul.f32 %v1619, %v1626
      %v1635 = vmul.f32 %v1620, %v1624
      %v1636 = vmul.f32 %v1621, %v1628
      %v1637 = vmul.f32 %v1622, %v1626
      %1644 = vrot.lane.b32.xlu0 %v1632, 60
      %v1645 = vpop.permute.xlu0 %1644
      %1646 = vrot.lane.b32.xlu0 %v1633, 60
      %v1647 = vpop.permute.xlu0 %1646
      %1648 = vrot.lane.b32.xlu0 %v1634, 60
      %v1649 = vpop.permute.xlu0 %1648
      %1650 = vrot.lane.b32.xlu0 %v1635, 60
      %v1651 = vpop.permute.xlu0 %1650
      %1652 = vrot.lane.b32.xlu0 %v1636, 60
      %v1653 = vpop.permute.xlu0 %1652
      %1654 = vrot.lane.b32.xlu0 %v1637, 60
      %v1655 = vpop.permute.xlu0 %1654
      %vm1656 = vcmask 490496
      %v1657 = vsel %vm1656, %v1645, %v1647
      %v1658 = vsel %vm1656, %v1647, %v1649
      %v1659 = vsel %vm1656, %v1651, %v1653
      %v1660 = vsel %vm1656, %v1653, %v1655
      %1665 = vst [vmem:[#allocation3 + $0x300] sm:$0xff] %v1657
      %1666 = vst [vmem:[#allocation3 + $0x308] sm:$0xff] %v1658
      %1667 = vst [vmem:[#allocation3 + $0x310] sm:$0xff] %v1659
      %1668 = vst [vmem:[#allocation3 + $0x318] sm:$0xff] %v1660
      %v1669 = vld [vmem:[%s3] sm:$0xff]
      %v1670 = vld [vmem:[%s3 + $0x8] sm:$0xff]
      %v1671 = vld [vmem:[%s3 + $0x10] sm:$0xff]
      %v1672 = vld [vmem:[%s3 + $0x18] sm:$0xff]
      %v1673 = vld [vmem:[%s3 + $0x20] sm:$0xff]
      %v1674 = vld [vmem:[%s3 + $0x28] sm:$0xff]
      %v1675 = vld [vmem:[%s3 + $0x30] sm:$0xff]
      %v1676 = vld [vmem:[%s3 + $0x38] sm:$0xff]
      %v1677 = vld [vmem:[#allocation3] sm:$0xff]
      %v1678 = vld [vmem:[#allocation3 + $0x8] sm:$0xff]
      %v1679 = vld [vmem:[#allocation3 + $0x10] sm:$0xff]
      %v1680 = vld [vmem:[#allocation3 + $0x18] sm:$0xff]
      %v1681 = vld [vmem:[#allocation3 + $0x20] sm:$0xff]
      %v1682 = vld [vmem:[#allocation3 + $0x28] sm:$0xff]
      %v1683 = vld [vmem:[#allocation3 + $0x30] sm:$0xff]
      %v1684 = vld [vmem:[#allocation3 + $0x38] sm:$0xff]
      %v1685 = vld [vmem:[#allocation3 + $0x40] sm:$0xff]
      %v1686 = vld [vmem:[#allocation3 + $0x48] sm:$0xff]
      %v1687 = vld [vmem:[#allocation3 + $0x50] sm:$0xff]
      %v1688 = vld [vmem:[#allocation3 + $0x58] sm:$0xff]
      %v1689 = vld [vmem:[#allocation3 + $0x60] sm:$0xff]
      %v1690 = vld [vmem:[#allocation3 + $0x68] sm:$0xff]
      %v1691 = vld [vmem:[#allocation3 + $0x70] sm:$0xff]
      %v1692 = vld [vmem:[#allocation3 + $0x78] sm:$0xff]
      %v1693 = vld [vmem:[#allocation3 + $0x80] sm:$0xff]
      %v1694 = vld [vmem:[#allocation3 + $0x88] sm:$0xff]
      %v1695 = vld [vmem:[#allocation3 + $0x90] sm:$0xff]
      %v1696 = vld [vmem:[#allocation3 + $0x98] sm:$0xff]
      %v1697 = vld [vmem:[#allocation3 + $0xa0] sm:$0xff]
      %v1698 = vld [vmem:[#allocation3 + $0xa8] sm:$0xff]
      %v1699 = vld [vmem:[#allocation3 + $0xb0] sm:$0xff]
      %v1700 = vld [vmem:[#allocation3 + $0xb8] sm:$0xff]
      %v1701 = vld [vmem:[#allocation3 + $0xc0] sm:$0xff]
      %v1702 = vld [vmem:[#allocation3 + $0xc8] sm:$0xff]
      %v1703 = vld [vmem:[#allocation3 + $0xd0] sm:$0xff]
      %v1704 = vld [vmem:[#allocation3 + $0xd8] sm:$0xff]
      %v1705 = vld [vmem:[#allocation3 + $0xe0] sm:$0xff]
      %v1706 = vld [vmem:[#allocation3 + $0xe8] sm:$0xff]
      %v1707 = vld [vmem:[#allocation3 + $0xf0] sm:$0xff]
      %v1708 = vld [vmem:[#allocation3 + $0xf8] sm:$0xff]
      %v1709 = vld [vmem:[#allocation3 + $0x100] sm:$0xff]
      %v1710 = vld [vmem:[#allocation3 + $0x108] sm:$0xff]
      %v1711 = vld [vmem:[#allocation3 + $0x110] sm:$0xff]
      %v1712 = vld [vmem:[#allocation3 + $0x118] sm:$0xff]
      %v1713 = vld [vmem:[#allocation3 + $0x120] sm:$0xff]
      %v1714 = vld [vmem:[#allocation3 + $0x128] sm:$0xff]
      %v1715 = vld [vmem:[#allocation3 + $0x130] sm:$0xff]
      %v1716 = vld [vmem:[#allocation3 + $0x138] sm:$0xff]
      %v1717 = vld [vmem:[#allocation3 + $0x140] sm:$0xff]
      %v1718 = vld [vmem:[#allocation3 + $0x148] sm:$0xff]
      %v1719 = vld [vmem:[#allocation3 + $0x150] sm:$0xff]
      %v1720 = vld [vmem:[#allocation3 + $0x158] sm:$0xff]
      %v1721 = vld [vmem:[#allocation3 + $0x160] sm:$0xff]
      %v1722 = vld [vmem:[#allocation3 + $0x168] sm:$0xff]
      %v1723 = vld [vmem:[#allocation3 + $0x170] sm:$0xff]
      %v1724 = vld [vmem:[#allocation3 + $0x178] sm:$0xff]
      %v1725 = vld [vmem:[#allocation3 + $0x180] sm:$0xff]
      %v1726 = vld [vmem:[#allocation3 + $0x188] sm:$0xff]
      %v1727 = vld [vmem:[#allocation3 + $0x190] sm:$0xff]
      %v1728 = vld [vmem:[#allocation3 + $0x198] sm:$0xff]
      %v1729 = vld [vmem:[#allocation3 + $0x1a0] sm:$0xff]
      %v1730 = vld [vmem:[#allocation3 + $0x1a8] sm:$0xff]
      %v1731 = vld [vmem:[#allocation3 + $0x1b0] sm:$0xff]
      %v1732 = vld [vmem:[#allocation3 + $0x1b8] sm:$0xff]
      %v1733 = vld [vmem:[#allocation3 + $0x1c0] sm:$0xff]
      %v1734 = vld [vmem:[#allocation3 + $0x1c8] sm:$0xff]
      %v1735 = vld [vmem:[#allocation3 + $0x1d0] sm:$0xff]
      %v1736 = vld [vmem:[#allocation3 + $0x1d8] sm:$0xff]
      %v1737 = vld [vmem:[#allocation3 + $0x1e0] sm:$0xff]
      %v1738 = vld [vmem:[#allocation3 + $0x1e8] sm:$0xff]
      %v1739 = vld [vmem:[#allocation3 + $0x1f0] sm:$0xff]
      %v1740 = vld [vmem:[#allocation3 + $0x1f8] sm:$0xff]
      %v1741 = vld [vmem:[#allocation3 + $0x200] sm:$0xff]
      %v1742 = vld [vmem:[#allocation3 + $0x208] sm:$0xff]
      %v1743 = vld [vmem:[#allocation3 + $0x210] sm:$0xff]
      %v1744 = vld [vmem:[#allocation3 + $0x218] sm:$0xff]
      %v1745 = vld [vmem:[#allocation3 + $0x220] sm:$0xff]
      %v1746 = vld [vmem:[#allocation3 + $0x228] sm:$0xff]
      %v1747 = vld [vmem:[#allocation3 + $0x230] sm:$0xff]
      %v1748 = vld [vmem:[#allocation3 + $0x238] sm:$0xff]
      %v1749 = vld [vmem:[#allocation3 + $0x240] sm:$0xff]
      %v1750 = vld [vmem:[#allocation3 + $0x248] sm:$0xff]
      %v1751 = vld [vmem:[#allocation3 + $0x250] sm:$0xff]
      %v1752 = vld [vmem:[#allocation3 + $0x258] sm:$0xff]
      %v1753 = vld [vmem:[#allocation3 + $0x260] sm:$0xff]
      %v1754 = vld [vmem:[#allocation3 + $0x268] sm:$0xff]
      %v1755 = vld [vmem:[#allocation3 + $0x270] sm:$0xff]
      %v1756 = vld [vmem:[#allocation3 + $0x278] sm:$0xff]
      %v1757 = vld [vmem:[#allocation3 + $0x280] sm:$0xff]
      %v1758 = vld [vmem:[#allocation3 + $0x288] sm:$0xff]
      %v1759 = vld [vmem:[#allocation3 + $0x290] sm:$0xff]
      %v1760 = vld [vmem:[#allocation3 + $0x298] sm:$0xff]
      %v1761 = vld [vmem:[#allocation3 + $0x2a0] sm:$0xff]
      %v1762 = vld [vmem:[#allocation3 + $0x2a8] sm:$0xff]
      %v1763 = vld [vmem:[#allocation3 + $0x2b0] sm:$0xff]
      %v1764 = vld [vmem:[#allocation3 + $0x2b8] sm:$0xff]
      %v1765 = vld [vmem:[#allocation3 + $0x2c0] sm:$0xff]
      %v1766 = vld [vmem:[#allocation3 + $0x2c8] sm:$0xff]
      %v1767 = vld [vmem:[#allocation3 + $0x2d0] sm:$0xff]
      %v1768 = vld [vmem:[#allocation3 + $0x2d8] sm:$0xff]
      %v1769 = vld [vmem:[#allocation3 + $0x2e0] sm:$0xff]
      %v1770 = vld [vmem:[#allocation3 + $0x2e8] sm:$0xff]
      %v1771 = vld [vmem:[#allocation3 + $0x2f0] sm:$0xff]
      %v1772 = vld [vmem:[#allocation3 + $0x2f8] sm:$0xff]
      %v1773 = vld [vmem:[#allocation3 + $0x300] sm:$0xff]
      %v1774 = vld [vmem:[#allocation3 + $0x308] sm:$0xff]
      %v1775 = vld [vmem:[#allocation3 + $0x310] sm:$0xff]
      %v1776 = vld [vmem:[#allocation3 + $0x318] sm:$0xff]
      %v1777 = vld [vmem:[%s4] sm:$0xff]
      %v1778 = vld [vmem:[%s4 + $0x8] sm:$0xff]
      %1780 = vset.pattern.permute.xlu0 0
      %1781 = vperm.xlu0 %1780, %v1777
      %v1782 = vpop.permute.xlu0 %1781
      %1785 = vset.pattern.permute.xlu0 0
      %1786 = vperm.xlu0 %1785, %v1778
      %v1787 = vpop.permute.xlu0 %1786
      %v1790 = vsel %vm700, %v1672, 0
      %v1793 = vsel %vm700, %v1676, 0
      %1795 = vmatprep.subr.mxu0 %v1678
      %1796 = vmatpush1.msra.mxu0 %v1677
      %1797 = vmatprep.subr.mxu0 %v1680
      %1798 = vmatpush1.msra.mxu0 %v1679
      %1799 = vmatprep.subr.mxu0 %v1682
      %1800 = vmatpush1.msra.mxu0 %v1681
      %1801 = vmatprep.subr.mxu0 %v1684
      %1802 = vmatpush1.msra.mxu0 %v1683
      %1803 = vmatprep.subr.mxu0 %v1686
      %1804 = vmatpush1.msra.mxu0 %v1685
      %1805 = vmatprep.subr.mxu0 %v1688
      %1806 = vmatpush1.msra.mxu0 %v1687
      %1807 = vmatprep.subr.mxu0 %v1690
      %1808 = vmatpush1.msra.mxu0 %v1689
      %1809 = vmatprep.subr.mxu0 %v1692
      %1810 = vmatpush1.msra.mxu0 %v1691
      %1811 = vmatprep.subr.mxu0 %v1694
      %1812 = vmatpush1.msra.mxu0 %v1693
      %1813 = vmatprep.subr.mxu0 %v1696
      %1814 = vmatpush1.msra.mxu0 %v1695
      %1815 = vmatprep.subr.mxu0 %v1698
      %1816 = vmatpush1.msra.mxu0 %v1697
      %1817 = vmatprep.subr.mxu0 %v1700
      %1818 = vmatpush1.msra.mxu0 %v1699
      %1819 = vmatprep.subr.mxu0 %v1702
      %1820 = vmatpush1.msra.mxu0 %v1701
      %1821 = vmatprep.subr.mxu0 %v1704
      %1822 = vmatpush1.msra.mxu0 %v1703
      %1823 = vmatprep.subr.mxu0 %v1706
      %1824 = vmatpush1.msra.mxu0 %v1705
      %1825 = vmatprep.subr.mxu0 %v1708
      %1826 = vmatpush1.msra.mxu0 %v1707
      %1827 = vmatprep.subr.mxu0 %v1710
      %1828 = vmatpush1.msra.mxu0 %v1709
      %1829 = vmatprep.subr.mxu0 %v1712
      %1830 = vmatpush1.msra.mxu0 %v1711
      %1831 = vmatprep.subr.mxu0 %v1714
      %1832 = vmatpush1.msra.mxu0 %v1713
      %1833 = vmatprep.subr.mxu0 %v1716
      %1834 = vmatpush1.msra.mxu0 %v1715
      %1835 = vmatprep.subr.mxu0 %v1718
      %1836 = vmatpush1.msra.mxu0 %v1717
      %1837 = vmatprep.subr.mxu0 %v1720
      %1838 = vmatpush1.msra.mxu0 %v1719
      %1839 = vmatprep.subr.mxu0 %v1722
      %1840 = vmatpush1.msra.mxu0 %v1721
      %1841 = vmatprep.subr.mxu0 %v1724
      %1842 = vmatpush1.msra.mxu0 %v1723
      %1843 = vmatprep.subr.mxu0 %v1726
      %1844 = vmatpush1.msra.mxu0 %v1725
      %1845 = vmatprep.subr.mxu0 %v1728
      %1846 = vmatpush1.msra.mxu0 %v1727
      %1847 = vmatprep.subr.mxu0 %v1730
      %1848 = vmatpush1.msra.mxu0 %v1729
      %1849 = vmatprep.subr.mxu0 %v1732
      %1850 = vmatpush1.msra.mxu0 %v1731
      %1851 = vmatprep.subr.mxu0 %v1734
      %1852 = vmatpush1.msra.mxu0 %v1733
      %1853 = vmatprep.subr.mxu0 %v1736
      %1854 = vmatpush1.msra.mxu0 %v1735
      %1855 = vmatprep.subr.mxu0 %v1738
      %1856 = vmatpush1.msra.mxu0 %v1737
      %1857 = vmatprep.subr.mxu0 %v1740
      %1858 = vmatpush1.msra.mxu0 %v1739
      %1859 = vmatprep.mubr.f32.mxu0 %v1670
      %1860 = vmatmul.mubr.f32.gmra.mrb[0].mxu0 %v1669
      %v1861 = vpop.f32.mrb[0].mxu0
      %v1862 = vadd.f32 %v1782, %v1861
      %v1863 = vpop.f32.mrb[0].mxu0
      %v1864 = vadd.f32 %v1782, %v1863
      %1865 = vmatprep.mubr.f32.mxu0 %v1674
      %1866 = vmatmul.mubr.f32.gmra.mrb[0].mxu0 %v1673
      %v1867 = vpop.f32.mrb[0].mxu0
      %v1868 = vadd.f32 %v1787, %v1867
      %v1869 = vpop.f32.mrb[0].mxu0
      %v1870 = vadd.f32 %v1787, %v1869
      %1871 = vdwg.mxu0
      %1872 = vmatprep.subr.mxu0 %v1742
      %1873 = vmatpush1.msra.mxu0 %v1741
      %1874 = vmatprep.subr.mxu0 %v1744
      %1875 = vmatpush1.msra.mxu0 %v1743
      %1876 = vmatprep.subr.mxu0 %v1746
      %1877 = vmatpush1.msra.mxu0 %v1745
      %1878 = vmatprep.subr.mxu0 %v1748
      %1879 = vmatpush1.msra.mxu0 %v1747
      %1880 = vmatprep.subr.mxu0 %v1750
      %1881 = vmatpush1.msra.mxu0 %v1749
      %1882 = vmatprep.subr.mxu0 %v1752
      %1883 = vmatpush1.msra.mxu0 %v1751
      %1884 = vmatprep.subr.mxu0 %v1754
      %1885 = vmatpush1.msra.mxu0 %v1753
      %1886 = vmatprep.subr.mxu0 %v1756
      %1887 = vmatpush1.msra.mxu0 %v1755
      %1888 = vmatprep.subr.mxu0 %v1758
      %1889 = vmatpush1.msra.mxu0 %v1757
      %1890 = vmatprep.subr.mxu0 %v1760
      %1891 = vmatpush1.msra.mxu0 %v1759
      %1892 = vmatprep.subr.mxu0 %v1762
      %1893 = vmatpush1.msra.mxu0 %v1761
      %1894 = vmatprep.subr.mxu0 %v1764
      %1895 = vmatpush1.msra.mxu0 %v1763
      %1896 = vmatprep.subr.mxu0 %v1766
      %1897 = vmatpush1.msra.mxu0 %v1765
      %1898 = vmatprep.subr.mxu0 %v1768
      %1899 = vmatpush1.msra.mxu0 %v1767
      %1900 = vmatprep.subr.mxu0 %v1770
      %1901 = vmatpush1.msra.mxu0 %v1769
      %1902 = vmatprep.subr.mxu0 %v1772
      %1903 = vmatpush1.msra.mxu0 %v1771
      %1904 = vmatprep.subr.mxu0 %v1774
      %1905 = vmatpush1.msra.mxu0 %v1773
      %1906 = vmatprep.subr.mxu0 %v1776
      %1907 = vmatpush1.msra.mxu0 %v1775
      %1908 = vmatprep.subr.mxu0 0.0
      %1909 = vmatpush1.msra.mxu0 0.0
      %1910 = vmatprep.subr.mxu0 0.0
      %1911 = vmatpush1.msra.mxu0 0.0
      %1912 = vmatprep.subr.mxu0 0.0
      %1913 = vmatpush1.msra.mxu0 0.0
      %1914 = vmatprep.subr.mxu0 0.0
      %1915 = vmatpush1.msra.mxu0 0.0
      %1916 = vmatprep.subr.mxu0 0.0
      %1917 = vmatpush1.msra.mxu0 0.0
      %1918 = vmatprep.subr.mxu0 0.0
      %1919 = vmatpush1.msra.mxu0 0.0
      %1920 = vmatprep.subr.mxu0 0.0
      %1921 = vmatpush1.msra.mxu0 0.0
      %1922 = vmatprep.subr.mxu0 0.0
      %1923 = vmatpush1.msra.mxu0 0.0
      %1924 = vmatprep.subr.mxu0 0.0
      %1925 = vmatpush1.msra.mxu0 0.0
      %1926 = vmatprep.subr.mxu0 0.0
      %1927 = vmatpush1.msra.mxu0 0.0
      %1928 = vmatprep.subr.mxu0 0.0
      %1929 = vmatpush1.msra.mxu0 0.0
      %1930 = vmatprep.subr.mxu0 0.0
      %1931 = vmatpush1.msra.mxu0 0.0
      %1932 = vmatprep.subr.mxu0 0.0
      %1933 = vmatpush1.msra.mxu0 0.0
      %1934 = vmatprep.subr.mxu0 0.0
      %1935 = vmatpush1.msra.mxu0 0.0
      %1936 = vmatprep.mubr.f32.mxu0 %v1790
      %1937 = vmatmul.mubr.f32.gmra.mrb[0].mxu0 %v1671
      %v1938 = vpop.f32.mrb[0].mxu0
      %v1939 = vadd.f32 %v1862, %v1938
      %v1940 = vpop.f32.mrb[0].mxu0
      %v1941 = vadd.f32 %v1864, %v1940
      %1942 = vmatprep.mubr.f32.mxu0 %v1793
      %1943 = vmatmul.mubr.f32.gmra.mrb[0].mxu0 %v1675
      %v1944 = vpop.f32.mrb[0].mxu0
      %v1945 = vadd.f32 %v1868, %v1944
      %v1946 = vpop.f32.mrb[0].mxu0
      %v1947 = vadd.f32 %v1870, %v1946
      %1948 = vdwg.mxu0
      %v1949 = vmax.f32 %v1939, 0.0
      %v1950 = vmax.f32 %v1941, 0.0
      %v1951 = vmax.f32 %v1945, 0.0
      %v1952 = vmax.f32 %v1947, 0.0
      %1957 = vrot.lane.b32.xlu0 %v1949, 34
      %v1958 = vpop.permute.xlu0 %1957
      %1959 = vrot.lane.b32.xlu0 %v1950, 34
      %v1960 = vpop.permute.xlu0 %1959
      %1961 = vrot.lane.b32.xlu0 %v1951, 34
      %v1962 = vpop.permute.xlu0 %1961
      %1963 = vrot.lane.b32.xlu0 %v1952, 34
      %v1964 = vpop.permute.xlu0 %1963
      %v1965 = vsel %vm387, %v1958, %v1960
      %v1966 = vsel %vm387, %v1962, %v1964
      %1973 = vst.msk [vmem:[#allocation2] sm:$0xff] %vm440, %v1958
      %1974 = vst [vmem:[#allocation2 + $0x8] sm:$0xff] %v1965
      %1975 = vst.msk [vmem:[#allocation2 + $0x10] sm:$0xff] %vm387, %v1960
      %1976 = vst.msk [vmem:[#allocation2 + $0x18] sm:$0xff] %vm440, %v1962
      %1977 = vst [vmem:[#allocation2 + $0x20] sm:$0xff] %v1966
      %1978 = vst.msk [vmem:[#allocation2 + $0x28] sm:$0xff] %vm387, %v1964
      %v1979 = vld [vmem:[#allocation2] sm:$0xff]
      %v1980 = vld [vmem:[#allocation2 + $0x8] sm:$0xff]
      %v1981 = vld [vmem:[#allocation2 + $0x18] sm:$0xff]
      %v1982 = vld [vmem:[#allocation2 + $0x20] sm:$0xff]
      %v1983 = vmul.f32 %v1979, %v455
      %v1984 = vmul.f32 %v1980, %v459
      %v1985 = vmul.f32 %v1981, %v455
      %v1986 = vmul.f32 %v1982, %v459
      %1987 = vst [vmem:[#allocation3] sm:$0xff] %v1983
      %1988 = vst [vmem:[#allocation3 + $0x8] sm:$0xff] %v1984
      %1989 = vst [vmem:[#allocation3 + $0x10] sm:$0xff] %v1985
      %1990 = vst [vmem:[#allocation3 + $0x18] sm:$0xff] %v1986
      %v1991 = vld [vmem:[#allocation2] sm:$0xff]
      %v1992 = vld [vmem:[#allocation2 + $0x8] sm:$0xff]
      %v1993 = vld [vmem:[#allocation2 + $0x10] sm:$0xff]
      %v1994 = vld [vmem:[#allocation2 + $0x18] sm:$0xff]
      %v1995 = vld [vmem:[#allocation2 + $0x20] sm:$0xff]
      %v1996 = vld [vmem:[#allocation2 + $0x28] sm:$0xff]
      %v1997 = vmul.f32 %v1991, %v486
      %v1998 = vmul.f32 %v1992, %v490
      %v1999 = vmul.f32 %v1993, %v488
      %v2000 = vmul.f32 %v1994, %v486
      %v2001 = vmul.f32 %v1995, %v490
      %v2002 = vmul.f32 %v1996, %v488
      %2009 = vrot.lane.b32.xlu0 %v1997, 127
      %v2010 = vpop.permute.xlu0 %2009
      %2011 = vrot.lane.b32.xlu0 %v1998, 127
      %v2012 = vpop.permute.xlu0 %2011
      %2013 = vrot.lane.b32.xlu0 %v1999, 127
      %v2014 = vpop.permute.xlu0 %2013
      %2015 = vrot.lane.b32.xlu0 %v2000, 127
      %v2016 = vpop.permute.xlu0 %2015
      %2017 = vrot.lane.b32.xlu0 %v2001, 127
      %v2018 = vpop.permute.xlu0 %2017
      %2019 = vrot.lane.b32.xlu0 %v2002, 127
      %v2020 = vpop.permute.xlu0 %2019
      %v2021 = vsel %vm518, %v2010, %v2012
      %v2022 = vsel %vm518, %v2012, %v2014
      %v2023 = vsel %vm518, %v2016, %v2018
      %v2024 = vsel %vm518, %v2018, %v2020
      %2029 = vst [vmem:[#allocation3 + $0x20] sm:$0xff] %v2021
      %2030 = vst [vmem:[#allocation3 + $0x28] sm:$0xff] %v2022
      %2031 = vst [vmem:[#allocation3 + $0x30] sm:$0xff] %v2023
      %2032 = vst [vmem:[#allocation3 + $0x38] sm:$0xff] %v2024
      %v2033 = vld [vmem:[#allocation2] sm:$0xff]
      %v2034 = vld [vmem:[#allocation2 + $0x8] sm:$0xff]
      %v2035 = vld [vmem:[#allocation2 + $0x10] sm:$0xff]
      %v2036 = vld [vmem:[#allocation2 + $0x18] sm:$0xff]
      %v2037 = vld [vmem:[#allocation2 + $0x20] sm:$0xff]
      %v2038 = vld [vmem:[#allocation2 + $0x28] sm:$0xff]
      %2045 = vrot.lane.b32.xlu0 %v2033, 126
      %v2046 = vpop.permute.xlu0 %2045
      %2047 = vrot.lane.b32.xlu0 %v2034, 126
      %v2048 = vpop.permute.xlu0 %2047
      %2049 = vrot.lane.b32.xlu0 %v2035, 126
      %v2050 = vpop.permute.xlu0 %2049
      %2051 = vrot.lane.b32.xlu0 %v2036, 126
      %v2052 = vpop.permute.xlu0 %2051
      %2053 = vrot.lane.b32.xlu0 %v2037, 126
      %v2054 = vpop.permute.xlu0 %2053
      %2055 = vrot.lane.b32.xlu0 %v2038, 126
      %v2056 = vpop.permute.xlu0 %2055
      %v2057 = vsel %vm555, %v2046, %v2048
      %v2058 = vsel %vm555, %v2048, %v2050
      %v2059 = vsel %vm555, %v2052, %v2054
      %v2060 = vsel %vm555, %v2054, %v2056
      %2065 = vst [vmem:[#allocation3 + $0x40] sm:$0xff] %v2057
      %2066 = vst [vmem:[#allocation3 + $0x48] sm:$0xff] %v2058
      %2067 = vst [vmem:[#allocation3 + $0x50] sm:$0xff] %v2059
      %2068 = vst [vmem:[#allocation3 + $0x58] sm:$0xff] %v2060
      %v2069 = vld [vmem:[#allocation2] sm:$0xff]
      %v2070 = vld [vmem:[#allocation2 + $0x8] sm:$0xff]
      %v2071 = vld [vmem:[#allocation2 + $0x10] sm:$0xff]
      %v2072 = vld [vmem:[#allocation2 + $0x18] sm:$0xff]
      %v2073 = vld [vmem:[#allocation2 + $0x20] sm:$0xff]
      %v2074 = vld [vmem:[#allocation2 + $0x28] sm:$0xff]
      %v2075 = vmul.f32 %v2069, %v584
      %v2076 = vmul.f32 %v2070, %v588
      %v2077 = vmul.f32 %v2071, %v586
      %v2078 = vmul.f32 %v2072, %v584
      %v2079 = vmul.f32 %v2073, %v588
      %v2080 = vmul.f32 %v2074, %v586
      %2087 = vrot.lane.b32.xlu0 %v2075, 125
      %v2088 = vpop.permute.xlu0 %2087
      %2089 = vrot.lane.b32.xlu0 %v2076, 125
      %v2090 = vpop.permute.xlu0 %2089
      %2091 = vrot.lane.b32.xlu0 %v2077, 125
      %v2092 = vpop.permute.xlu0 %2091
      %2093 = vrot.lane.b32.xlu0 %v2078, 125
      %v2094 = vpop.permute.xlu0 %2093
      %2095 = vrot.lane.b32.xlu0 %v2079, 125
      %v2096 = vpop.permute.xlu0 %2095
      %2097 = vrot.lane.b32.xlu0 %v2080, 125
      %v2098 = vpop.permute.xlu0 %2097
      %v2099 = vsel %vm616, %v2088, %v2090
      %v2100 = vsel %vm616, %v2090, %v2092
      %v2101 = vsel %vm616, %v2094, %v2096
      %v2102 = vsel %vm616, %v2096, %v2098
      %2107 = vst [vmem:[#allocation3 + $0x60] sm:$0xff] %v2099
      %2108 = vst [vmem:[#allocation3 + $0x68] sm:$0xff] %v2100
      %2109 = vst [vmem:[#allocation3 + $0x70] sm:$0xff] %v2101
      %2110 = vst [vmem:[#allocation3 + $0x78] sm:$0xff] %v2102
      %v2111 = vld [vmem:[#allocation2] sm:$0xff]
      %v2112 = vld [vmem:[#allocation2 + $0x8] sm:$0xff]
      %v2113 = vld [vmem:[#allocation2 + $0x10] sm:$0xff]
      %v2114 = vld [vmem:[#allocation2 + $0x18] sm:$0xff]
      %v2115 = vld [vmem:[#allocation2 + $0x20] sm:$0xff]
      %v2116 = vld [vmem:[#allocation2 + $0x28] sm:$0xff]
      %v2117 = vmul.f32 %v2111, %v645
      %v2118 = vmul.f32 %v2112, %v649
      %v2119 = vmul.f32 %v2113, %v647
      %v2120 = vmul.f32 %v2114, %v645
      %v2121 = vmul.f32 %v2115, %v649
      %v2122 = vmul.f32 %v2116, %v647
      %2129 = vrot.lane.b32.xlu0 %v2117, 124
      %v2130 = vpop.permute.xlu0 %2129
      %2131 = vrot.lane.b32.xlu0 %v2118, 124
      %v2132 = vpop.permute.xlu0 %2131
      %2133 = vrot.lane.b32.xlu0 %v2119, 124
      %v2134 = vpop.permute.xlu0 %2133
      %2135 = vrot.lane.b32.xlu0 %v2120, 124
      %v2136 = vpop.permute.xlu0 %2135
      %2137 = vrot.lane.b32.xlu0 %v2121, 124
      %v2138 = vpop.permute.xlu0 %2137
      %2139 = vrot.lane.b32.xlu0 %v2122, 124
      %v2140 = vpop.permute.xlu0 %2139
      %v2141 = vsel %vm677, %v2130, %v2132
      %v2142 = vsel %vm677, %v2132, %v2134
      %v2143 = vsel %vm677, %v2136, %v2138
      %v2144 = vsel %vm677, %v2138, %v2140
      %2149 = vst [vmem:[#allocation3 + $0x80] sm:$0xff] %v2141
      %2150 = vst [vmem:[#allocation3 + $0x88] sm:$0xff] %v2142
      %2151 = vst [vmem:[#allocation3 + $0x90] sm:$0xff] %v2143
      %2152 = vst [vmem:[#allocation3 + $0x98] sm:$0xff] %v2144
      %v2153 = vld [vmem:[#allocation2] sm:$0xff]
      %v2154 = vld [vmem:[#allocation2 + $0x8] sm:$0xff]
      %v2155 = vld [vmem:[#allocation2 + $0x10] sm:$0xff]
      %v2156 = vld [vmem:[#allocation2 + $0x18] sm:$0xff]
      %v2157 = vld [vmem:[#allocation2 + $0x20] sm:$0xff]
      %v2158 = vld [vmem:[#allocation2 + $0x28] sm:$0xff]
      %v2159 = vmul.f32 %v2153, %v697
      %v2160 = vmul.f32 %v2154, %v701
      %v2161 = vmul.f32 %v2155, %v699
      %v2162 = vmul.f32 %v2156, %v697
      %v2163 = vmul.f32 %v2157, %v701
      %v2164 = vmul.f32 %v2158, %v699
      %2171 = vrot.lane.b32.xlu0 %v2159, 112
      %v2172 = vpop.permute.xlu0 %2171
      %2173 = vrot.lane.b32.xlu0 %v2160, 112
      %v2174 = vpop.permute.xlu0 %2173
      %2175 = vrot.lane.b32.xlu0 %v2161, 112
      %v2176 = vpop.permute.xlu0 %2175
      %2177 = vrot.lane.b32.xlu0 %v2162, 112
      %v2178 = vpop.permute.xlu0 %2177
      %2179 = vrot.lane.b32.xlu0 %v2163, 112
      %v2180 = vpop.permute.xlu0 %2179
      %2181 = vrot.lane.b32.xlu0 %v2164, 112
      %v2182 = vpop.permute.xlu0 %2181
      %v2183 = vsel %vm729, %v2172, %v2174
      %v2184 = vsel %vm729, %v2174, %v2176
      %v2185 = vsel %vm729, %v2178, %v2180
      %v2186 = vsel %vm729, %v2180, %v2182
      %2191 = vst [vmem:[#allocation3 + $0xa0] sm:$0xff] %v2183
      %2192 = vst [vmem:[#allocation3 + $0xa8] sm:$0xff] %v2184
      %2193 = vst [vmem:[#allocation3 + $0xb0] sm:$0xff] %v2185
      %2194 = vst [vmem:[#allocation3 + $0xb8] sm:$0xff] %v2186
      %v2195 = vld [vmem:[#allocation2] sm:$0xff]
      %v2196 = vld [vmem:[#allocation2 + $0x8] sm:$0xff]
      %v2197 = vld [vmem:[#allocation2 + $0x10] sm:$0xff]
      %v2198 = vld [vmem:[#allocation2 + $0x18] sm:$0xff]
      %v2199 = vld [vmem:[#allocation2 + $0x20] sm:$0xff]
      %v2200 = vld [vmem:[#allocation2 + $0x28] sm:$0xff]
      %v2201 = vmul.f32 %v2195, %v749
      %v2202 = vmul.f32 %v2196, %v753
      %v2203 = vmul.f32 %v2197, %v751
      %v2204 = vmul.f32 %v2198, %v749
      %v2205 = vmul.f32 %v2199, %v753
      %v2206 = vmul.f32 %v2200, %v751
      %2213 = vrot.lane.b32.xlu0 %v2201, 111
      %v2214 = vpop.permute.xlu0 %2213
      %2215 = vrot.lane.b32.xlu0 %v2202, 111
      %v2216 = vpop.permute.xlu0 %2215
      %2217 = vrot.lane.b32.xlu0 %v2203, 111
      %v2218 = vpop.permute.xlu0 %2217
      %2219 = vrot.lane.b32.xlu0 %v2204, 111
      %v2220 = vpop.permute.xlu0 %2219
      %2221 = vrot.lane.b32.xlu0 %v2205, 111
      %v2222 = vpop.permute.xlu0 %2221
      %2223 = vrot.lane.b32.xlu0 %v2206, 111
      %v2224 = vpop.permute.xlu0 %2223
      %v2225 = vsel %vm781, %v2214, %v2216
      %v2226 = vsel %vm781, %v2216, %v2218
      %v2227 = vsel %vm781, %v2220, %v2222
      %v2228 = vsel %vm781, %v2222, %v2224
      %2233 = vst [vmem:[#allocation3 + $0xc0] sm:$0xff] %v2225
      %2234 = vst [vmem:[#allocation3 + $0xc8] sm:$0xff] %v2226
      %2235 = vst [vmem:[#allocation3 + $0xd0] sm:$0xff] %v2227
      %2236 = vst [vmem:[#allocation3 + $0xd8] sm:$0xff] %v2228
      %v2237 = vld [vmem:[#allocation2] sm:$0xff]
      %v2238 = vld [vmem:[#allocation2 + $0x8] sm:$0xff]
      %v2239 = vld [vmem:[#allocation2 + $0x10] sm:$0xff]
      %v2240 = vld [vmem:[#allocation2 + $0x18] sm:$0xff]
      %v2241 = vld [vmem:[#allocation2 + $0x20] sm:$0xff]
      %v2242 = vld [vmem:[#allocation2 + $0x28] sm:$0xff]
      %2249 = vrot.lane.b32.xlu0 %v2237, 110
      %v2250 = vpop.permute.xlu0 %2249
      %2251 = vrot.lane.b32.xlu0 %v2238, 110
      %v2252 = vpop.permute.xlu0 %2251
      %2253 = vrot.lane.b32.xlu0 %v2239, 110
      %v2254 = vpop.permute.xlu0 %2253
      %2255 = vrot.lane.b32.xlu0 %v2240, 110
      %v2256 = vpop.permute.xlu0 %2255
      %2257 = vrot.lane.b32.xlu0 %v2241, 110
      %v2258 = vpop.permute.xlu0 %2257
      %2259 = vrot.lane.b32.xlu0 %v2242, 110
      %v2260 = vpop.permute.xlu0 %2259
      %v2261 = vsel %vm818, %v2250, %v2252
      %v2262 = vsel %vm818, %v2252, %v2254
      %v2263 = vsel %vm818, %v2256, %v2258
      %v2264 = vsel %vm818, %v2258, %v2260
      %2269 = vst [vmem:[#allocation3 + $0xe0] sm:$0xff] %v2261
      %2270 = vst [vmem:[#allocation3 + $0xe8] sm:$0xff] %v2262
      %2271 = vst [vmem:[#allocation3 + $0xf0] sm:$0xff] %v2263
      %2272 = vst [vmem:[#allocation3 + $0xf8] sm:$0xff] %v2264
      %v2273 = vld [vmem:[#allocation2] sm:$0xff]
      %v2274 = vld [vmem:[#allocation2 + $0x8] sm:$0xff]
      %v2275 = vld [vmem:[#allocation2 + $0x10] sm:$0xff]
      %v2276 = vld [vmem:[#allocation2 + $0x18] sm:$0xff]
      %v2277 = vld [vmem:[#allocation2 + $0x20] sm:$0xff]
      %v2278 = vld [vmem:[#allocation2 + $0x28] sm:$0xff]
      %v2279 = vmul.f32 %v2273, %v838
      %v2280 = vmul.f32 %v2274, %v842
      %v2281 = vmul.f32 %v2275, %v840
      %v2282 = vmul.f32 %v2276, %v838
      %v2283 = vmul.f32 %v2277, %v842
      %v2284 = vmul.f32 %v2278, %v840
      %2291 = vrot.lane.b32.xlu0 %v2279, 109
      %v2292 = vpop.permute.xlu0 %2291
      %2293 = vrot.lane.b32.xlu0 %v2280, 109
      %v2294 = vpop.permute.xlu0 %2293
      %2295 = vrot.lane.b32.xlu0 %v2281, 109
      %v2296 = vpop.permute.xlu0 %2295
      %2297 = vrot.lane.b32.xlu0 %v2282, 109
      %v2298 = vpop.permute.xlu0 %2297
      %2299 = vrot.lane.b32.xlu0 %v2283, 109
      %v2300 = vpop.permute.xlu0 %2299
      %2301 = vrot.lane.b32.xlu0 %v2284, 109
      %v2302 = vpop.permute.xlu0 %2301
      %v2303 = vsel %vm870, %v2292, %v2294
      %v2304 = vsel %vm870, %v2294, %v2296
      %v2305 = vsel %vm870, %v2298, %v2300
      %v2306 = vsel %vm870, %v2300, %v2302
      %2311 = vst [vmem:[#allocation3 + $0x100] sm:$0xff] %v2303
      %2312 = vst [vmem:[#allocation3 + $0x108] sm:$0xff] %v2304
      %2313 = vst [vmem:[#allocation3 + $0x110] sm:$0xff] %v2305
      %2314 = vst [vmem:[#allocation3 + $0x118] sm:$0xff] %v2306
      %v2315 = vld [vmem:[#allocation2] sm:$0xff]
      %v2316 = vld [vmem:[#allocation2 + $0x8] sm:$0xff]
      %v2317 = vld [vmem:[#allocation2 + $0x10] sm:$0xff]
      %v2318 = vld [vmem:[#allocation2 + $0x18] sm:$0xff]
      %v2319 = vld [vmem:[#allocation2 + $0x20] sm:$0xff]
      %v2320 = vld [vmem:[#allocation2 + $0x28] sm:$0xff]
      %v2321 = vmul.f32 %v2315, %v890
      %v2322 = vmul.f32 %v2316, %v894
      %v2323 = vmul.f32 %v2317, %v892
      %v2324 = vmul.f32 %v2318, %v890
      %v2325 = vmul.f32 %v2319, %v894
      %v2326 = vmul.f32 %v2320, %v892
      %2333 = vrot.lane.b32.xlu0 %v2321, 108
      %v2334 = vpop.permute.xlu0 %2333
      %2335 = vrot.lane.b32.xlu0 %v2322, 108
      %v2336 = vpop.permute.xlu0 %2335
      %2337 = vrot.lane.b32.xlu0 %v2323, 108
      %v2338 = vpop.permute.xlu0 %2337
      %2339 = vrot.lane.b32.xlu0 %v2324, 108
      %v2340 = vpop.permute.xlu0 %2339
      %2341 = vrot.lane.b32.xlu0 %v2325, 108
      %v2342 = vpop.permute.xlu0 %2341
      %2343 = vrot.lane.b32.xlu0 %v2326, 108
      %v2344 = vpop.permute.xlu0 %2343
      %v2345 = vsel %vm922, %v2334, %v2336
      %v2346 = vsel %vm922, %v2336, %v2338
      %v2347 = vsel %vm922, %v2340, %v2342
      %v2348 = vsel %vm922, %v2342, %v2344
      %2353 = vst [vmem:[#allocation3 + $0x120] sm:$0xff] %v2345
      %2354 = vst [vmem:[#allocation3 + $0x128] sm:$0xff] %v2346
      %2355 = vst [vmem:[#allocation3 + $0x130] sm:$0xff] %v2347
      %2356 = vst [vmem:[#allocation3 + $0x138] sm:$0xff] %v2348
      %v2357 = vld [vmem:[#allocation2] sm:$0xff]
      %v2358 = vld [vmem:[#allocation2 + $0x8] sm:$0xff]
      %v2359 = vld [vmem:[#allocation2 + $0x10] sm:$0xff]
      %v2360 = vld [vmem:[#allocation2 + $0x18] sm:$0xff]
      %v2361 = vld [vmem:[#allocation2 + $0x20] sm:$0xff]
      %v2362 = vld [vmem:[#allocation2 + $0x28] sm:$0xff]
      %v2363 = vmul.f32 %v2357, %v942
      %v2364 = vmul.f32 %v2358, %v946
      %v2365 = vmul.f32 %v2359, %v944
      %v2366 = vmul.f32 %v2360, %v942
      %v2367 = vmul.f32 %v2361, %v946
      %v2368 = vmul.f32 %v2362, %v944
      %2375 = vrot.lane.b32.xlu0 %v2363, 96
      %v2376 = vpop.permute.xlu0 %2375
      %2377 = vrot.lane.b32.xlu0 %v2364, 96
      %v2378 = vpop.permute.xlu0 %2377
      %2379 = vrot.lane.b32.xlu0 %v2365, 96
      %v2380 = vpop.permute.xlu0 %2379
      %2381 = vrot.lane.b32.xlu0 %v2366, 96
      %v2382 = vpop.permute.xlu0 %2381
      %2383 = vrot.lane.b32.xlu0 %v2367, 96
      %v2384 = vpop.permute.xlu0 %2383
      %2385 = vrot.lane.b32.xlu0 %v2368, 96
      %v2386 = vpop.permute.xlu0 %2385
      %v2387 = vsel %vm974, %v2376, %v2378
      %v2388 = vsel %vm974, %v2378, %v2380
      %v2389 = vsel %vm974, %v2382, %v2384
      %v2390 = vsel %vm974, %v2384, %v2386
      %2395 = vst [vmem:[#allocation3 + $0x140] sm:$0xff] %v2387
      %2396 = vst [vmem:[#allocation3 + $0x148] sm:$0xff] %v2388
      %2397 = vst [vmem:[#allocation3 + $0x150] sm:$0xff] %v2389
      %2398 = vst [vmem:[#allocation3 + $0x158] sm:$0xff] %v2390
      %v2399 = vld [vmem:[#allocation2] sm:$0xff]
      %v2400 = vld [vmem:[#allocation2 + $0x8] sm:$0xff]
      %v2401 = vld [vmem:[#allocation2 + $0x10] sm:$0xff]
      %v2402 = vld [vmem:[#allocation2 + $0x18] sm:$0xff]
      %v2403 = vld [vmem:[#allocation2 + $0x20] sm:$0xff]
      %v2404 = vld [vmem:[#allocation2 + $0x28] sm:$0xff]
      %v2405 = vmul.f32 %v2399, %v994
      %v2406 = vmul.f32 %v2400, %v998
      %v2407 = vmul.f32 %v2401, %v996
      %v2408 = vmul.f32 %v2402, %v994
      %v2409 = vmul.f32 %v2403, %v998
      %v2410 = vmul.f32 %v2404, %v996
      %2417 = vrot.lane.b32.xlu0 %v2405, 95
      %v2418 = vpop.permute.xlu0 %2417
      %2419 = vrot.lane.b32.xlu0 %v2406, 95
      %v2420 = vpop.permute.xlu0 %2419
      %2421 = vrot.lane.b32.xlu0 %v2407, 95
      %v2422 = vpop.permute.xlu0 %2421
      %2423 = vrot.lane.b32.xlu0 %v2408, 95
      %v2424 = vpop.permute.xlu0 %2423
      %2425 = vrot.lane.b32.xlu0 %v2409, 95
      %v2426 = vpop.permute.xlu0 %2425
      %2427 = vrot.lane.b32.xlu0 %v2410, 95
      %v2428 = vpop.permute.xlu0 %2427
      %v2429 = vsel %vm1026, %v2418, %v2420
      %v2430 = vsel %vm1026, %v2420, %v2422
      %v2431 = vsel %vm1026, %v2424, %v2426
      %v2432 = vsel %vm1026, %v2426, %v2428
      %2437 = vst [vmem:[#allocation3 + $0x160] sm:$0xff] %v2429
      %2438 = vst [vmem:[#allocation3 + $0x168] sm:$0xff] %v2430
      %2439 = vst [vmem:[#allocation3 + $0x170] sm:$0xff] %v2431
      %2440 = vst [vmem:[#allocation3 + $0x178] sm:$0xff] %v2432
      %v2441 = vld [vmem:[#allocation2] sm:$0xff]
      %v2442 = vld [vmem:[#allocation2 + $0x8] sm:$0xff]
      %v2443 = vld [vmem:[#allocation2 + $0x10] sm:$0xff]
      %v2444 = vld [vmem:[#allocation2 + $0x18] sm:$0xff]
      %v2445 = vld [vmem:[#allocation2 + $0x20] sm:$0xff]
      %v2446 = vld [vmem:[#allocation2 + $0x28] sm:$0xff]
      %2453 = vrot.lane.b32.xlu0 %v2441, 94
      %v2454 = vpop.permute.xlu0 %2453
      %2455 = vrot.lane.b32.xlu0 %v2442, 94
      %v2456 = vpop.permute.xlu0 %2455
      %2457 = vrot.lane.b32.xlu0 %v2443, 94
      %v2458 = vpop.permute.xlu0 %2457
      %2459 = vrot.lane.b32.xlu0 %v2444, 94
      %v2460 = vpop.permute.xlu0 %2459
      %2461 = vrot.lane.b32.xlu0 %v2445, 94
      %v2462 = vpop.permute.xlu0 %2461
      %2463 = vrot.lane.b32.xlu0 %v2446, 94
      %v2464 = vpop.permute.xlu0 %2463
      %v2465 = vsel %vm1063, %v2454, %v2456
      %v2466 = vsel %vm1063, %v2456, %v2458
      %v2467 = vsel %vm1063, %v2460, %v2462
      %v2468 = vsel %vm1063, %v2462, %v2464
      %2473 = vst [vmem:[#allocation3 + $0x180] sm:$0xff] %v2465
      %2474 = vst [vmem:[#allocation3 + $0x188] sm:$0xff] %v2466
      %2475 = vst [vmem:[#allocation3 + $0x190] sm:$0xff] %v2467
      %2476 = vst [vmem:[#allocation3 + $0x198] sm:$0xff] %v2468
      %v2477 = vld [vmem:[#allocation2] sm:$0xff]
      %v2478 = vld [vmem:[#allocation2 + $0x8] sm:$0xff]
      %v2479 = vld [vmem:[#allocation2 + $0x10] sm:$0xff]
      %v2480 = vld [vmem:[#allocation2 + $0x18] sm:$0xff]
      %v2481 = vld [vmem:[#allocation2 + $0x20] sm:$0xff]
      %v2482 = vld [vmem:[#allocation2 + $0x28] sm:$0xff]
      %v2483 = vmul.f32 %v2477, %v1083
      %v2484 = vmul.f32 %v2478, %v1087
      %v2485 = vmul.f32 %v2479, %v1085
      %v2486 = vmul.f32 %v2480, %v1083
      %v2487 = vmul.f32 %v2481, %v1087
      %v2488 = vmul.f32 %v2482, %v1085
      %2495 = vrot.lane.b32.xlu0 %v2483, 93
      %v2496 = vpop.permute.xlu0 %2495
      %2497 = vrot.lane.b32.xlu0 %v2484, 93
      %v2498 = vpop.permute.xlu0 %2497
      %2499 = vrot.lane.b32.xlu0 %v2485, 93
      %v2500 = vpop.permute.xlu0 %2499
      %2501 = vrot.lane.b32.xlu0 %v2486, 93
      %v2502 = vpop.permute.xlu0 %2501
      %2503 = vrot.lane.b32.xlu0 %v2487, 93
      %v2504 = vpop.permute.xlu0 %2503
      %2505 = vrot.lane.b32.xlu0 %v2488, 93
      %v2506 = vpop.permute.xlu0 %2505
      %v2507 = vsel %vm1115, %v2496, %v2498
      %v2508 = vsel %vm1115, %v2498, %v2500
      %v2509 = vsel %vm1115, %v2502, %v2504
      %v2510 = vsel %vm1115, %v2504, %v2506
      %2515 = vst [vmem:[#allocation3 + $0x1a0] sm:$0xff] %v2507
      %2516 = vst [vmem:[#allocation3 + $0x1a8] sm:$0xff] %v2508
      %2517 = vst [vmem:[#allocation3 + $0x1b0] sm:$0xff] %v2509
      %2518 = vst [vmem:[#allocation3 + $0x1b8] sm:$0xff] %v2510
      %v2519 = vld [vmem:[#allocation2] sm:$0xff]
      %v2520 = vld [vmem:[#allocation2 + $0x8] sm:$0xff]
      %v2521 = vld [vmem:[#allocation2 + $0x10] sm:$0xff]
      %v2522 = vld [vmem:[#allocation2 + $0x18] sm:$0xff]
      %v2523 = vld [vmem:[#allocation2 + $0x20] sm:$0xff]
      %v2524 = vld [vmem:[#allocation2 + $0x28] sm:$0xff]
      %v2525 = vmul.f32 %v2519, %v1135
      %v2526 = vmul.f32 %v2520, %v1139
      %v2527 = vmul.f32 %v2521, %v1137
      %v2528 = vmul.f32 %v2522, %v1135
      %v2529 = vmul.f32 %v2523, %v1139
      %v2530 = vmul.f32 %v2524, %v1137
      %2537 = vrot.lane.b32.xlu0 %v2525, 92
      %v2538 = vpop.permute.xlu0 %2537
      %2539 = vrot.lane.b32.xlu0 %v2526, 92
      %v2540 = vpop.permute.xlu0 %2539
      %2541 = vrot.lane.b32.xlu0 %v2527, 92
      %v2542 = vpop.permute.xlu0 %2541
      %2543 = vrot.lane.b32.xlu0 %v2528, 92
      %v2544 = vpop.permute.xlu0 %2543
      %2545 = vrot.lane.b32.xlu0 %v2529, 92
      %v2546 = vpop.permute.xlu0 %2545
      %2547 = vrot.lane.b32.xlu0 %v2530, 92
      %v2548 = vpop.permute.xlu0 %2547
      %v2549 = vsel %vm1167, %v2538, %v2540
      %v2550 = vsel %vm1167, %v2540, %v2542
      %v2551 = vsel %vm1167, %v2544, %v2546
      %v2552 = vsel %vm1167, %v2546, %v2548
      %2557 = vst [vmem:[#allocation3 + $0x1c0] sm:$0xff] %v2549
      %2558 = vst [vmem:[#allocation3 + $0x1c8] sm:$0xff] %v2550
      %2559 = vst [vmem:[#allocation3 + $0x1d0] sm:$0xff] %v2551
      %2560 = vst [vmem:[#allocation3 + $0x1d8] sm:$0xff] %v2552
      %v2561 = vld [vmem:[#allocation2] sm:$0xff]
      %v2562 = vld [vmem:[#allocation2 + $0x8] sm:$0xff]
      %v2563 = vld [vmem:[#allocation2 + $0x10] sm:$0xff]
      %v2564 = vld [vmem:[#allocation2 + $0x18] sm:$0xff]
      %v2565 = vld [vmem:[#allocation2 + $0x20] sm:$0xff]
      %v2566 = vld [vmem:[#allocation2 + $0x28] sm:$0xff]
      %v2567 = vmul.f32 %v2561, %v1187
      %v2568 = vmul.f32 %v2562, %v1191
      %v2569 = vmul.f32 %v2563, %v1189
      %v2570 = vmul.f32 %v2564, %v1187
      %v2571 = vmul.f32 %v2565, %v1191
      %v2572 = vmul.f32 %v2566, %v1189
      %2579 = vrot.lane.b32.xlu0 %v2567, 80
      %v2580 = vpop.permute.xlu0 %2579
      %2581 = vrot.lane.b32.xlu0 %v2568, 80
      %v2582 = vpop.permute.xlu0 %2581
      %2583 = vrot.lane.b32.xlu0 %v2569, 80
      %v2584 = vpop.permute.xlu0 %2583
      %2585 = vrot.lane.b32.xlu0 %v2570, 80
      %v2586 = vpop.permute.xlu0 %2585
      %2587 = vrot.lane.b32.xlu0 %v2571, 80
      %v2588 = vpop.permute.xlu0 %2587
      %2589 = vrot.lane.b32.xlu0 %v2572, 80
      %v2590 = vpop.permute.xlu0 %2589
      %v2591 = vsel %vm1219, %v2580, %v2582
      %v2592 = vsel %vm1219, %v2582, %v2584
      %v2593 = vsel %vm1219, %v2586, %v2588
      %v2594 = vsel %vm1219, %v2588, %v2590
      %2599 = vst [vmem:[#allocation3 + $0x1e0] sm:$0xff] %v2591
      %2600 = vst [vmem:[#allocation3 + $0x1e8] sm:$0xff] %v2592
      %2601 = vst [vmem:[#allocation3 + $0x1f0] sm:$0xff] %v2593
      %2602 = vst [vmem:[#allocation3 + $0x1f8] sm:$0xff] %v2594
      %v2603 = vld [vmem:[#allocation2] sm:$0xff]
      %v2604 = vld [vmem:[#allocation2 + $0x8] sm:$0xff]
      %v2605 = vld [vmem:[#allocation2 + $0x10] sm:$0xff]
      %v2606 = vld [vmem:[#allocation2 + $0x18] sm:$0xff]
      %v2607 = vld [vmem:[#allocation2 + $0x20] sm:$0xff]
      %v2608 = vld [vmem:[#allocation2 + $0x28] sm:$0xff]
      %v2609 = vmul.f32 %v2603, %v1239
      %v2610 = vmul.f32 %v2604, %v1243
      %v2611 = vmul.f32 %v2605, %v1241
      %v2612 = vmul.f32 %v2606, %v1239
      %v2613 = vmul.f32 %v2607, %v1243
      %v2614 = vmul.f32 %v2608, %v1241
      %2621 = vrot.lane.b32.xlu0 %v2609, 79
      %v2622 = vpop.permute.xlu0 %2621
      %2623 = vrot.lane.b32.xlu0 %v2610, 79
      %v2624 = vpop.permute.xlu0 %2623
      %2625 = vrot.lane.b32.xlu0 %v2611, 79
      %v2626 = vpop.permute.xlu0 %2625
      %2627 = vrot.lane.b32.xlu0 %v2612, 79
      %v2628 = vpop.permute.xlu0 %2627
      %2629 = vrot.lane.b32.xlu0 %v2613, 79
      %v2630 = vpop.permute.xlu0 %2629
      %2631 = vrot.lane.b32.xlu0 %v2614, 79
      %v2632 = vpop.permute.xlu0 %2631
      %v2633 = vsel %vm1271, %v2622, %v2624
      %v2634 = vsel %vm1271, %v2624, %v2626
      %v2635 = vsel %vm1271, %v2628, %v2630
      %v2636 = vsel %vm1271, %v2630, %v2632
      %2641 = vst [vmem:[#allocation3 + $0x200] sm:$0xff] %v2633
      %2642 = vst [vmem:[#allocation3 + $0x208] sm:$0xff] %v2634
      %2643 = vst [vmem:[#allocation3 + $0x210] sm:$0xff] %v2635
      %2644 = vst [vmem:[#allocation3 + $0x218] sm:$0xff] %v2636
      %v2645 = vld [vmem:[#allocation2] sm:$0xff]
      %v2646 = vld [vmem:[#allocation2 + $0x8] sm:$0xff]
      %v2647 = vld [vmem:[#allocation2 + $0x10] sm:$0xff]
      %v2648 = vld [vmem:[#allocation2 + $0x18] sm:$0xff]
      %v2649 = vld [vmem:[#allocation2 + $0x20] sm:$0xff]
      %v2650 = vld [vmem:[#allocation2 + $0x28] sm:$0xff]
      %2657 = vrot.lane.b32.xlu0 %v2645, 78
      %v2658 = vpop.permute.xlu0 %2657
      %2659 = vrot.lane.b32.xlu0 %v2646, 78
      %v2660 = vpop.permute.xlu0 %2659
      %2661 = vrot.lane.b32.xlu0 %v2647, 78
      %v2662 = vpop.permute.xlu0 %2661
      %2663 = vrot.lane.b32.xlu0 %v2648, 78
      %v2664 = vpop.permute.xlu0 %2663
      %2665 = vrot.lane.b32.xlu0 %v2649, 78
      %v2666 = vpop.permute.xlu0 %2665
      %2667 = vrot.lane.b32.xlu0 %v2650, 78
      %v2668 = vpop.permute.xlu0 %2667
      %v2669 = vsel %vm1308, %v2658, %v2660
      %v2670 = vsel %vm1308, %v2660, %v2662
      %v2671 = vsel %vm1308, %v2664, %v2666
      %v2672 = vsel %vm1308, %v2666, %v2668
      %2677 = vst [vmem:[#allocation3 + $0x220] sm:$0xff] %v2669
      %2678 = vst [vmem:[#allocation3 + $0x228] sm:$0xff] %v2670
      %2679 = vst [vmem:[#allocation3 + $0x230] sm:$0xff] %v2671
      %2680 = vst [vmem:[#allocation3 + $0x238] sm:$0xff] %v2672
      %v2681 = vld [vmem:[#allocation2] sm:$0xff]
      %v2682 = vld [vmem:[#allocation2 + $0x8] sm:$0xff]
      %v2683 = vld [vmem:[#allocation2 + $0x10] sm:$0xff]
      %v2684 = vld [vmem:[#allocation2 + $0x18] sm:$0xff]
      %v2685 = vld [vmem:[#allocation2 + $0x20] sm:$0xff]
      %v2686 = vld [vmem:[#allocation2 + $0x28] sm:$0xff]
      %v2687 = vmul.f32 %v2681, %v1328
      %v2688 = vmul.f32 %v2682, %v1332
      %v2689 = vmul.f32 %v2683, %v1330
      %v2690 = vmul.f32 %v2684, %v1328
      %v2691 = vmul.f32 %v2685, %v1332
      %v2692 = vmul.f32 %v2686, %v1330
      %2699 = vrot.lane.b32.xlu0 %v2687, 77
      %v2700 = vpop.permute.xlu0 %2699
      %2701 = vrot.lane.b32.xlu0 %v2688, 77
      %v2702 = vpop.permute.xlu0 %2701
      %2703 = vrot.lane.b32.xlu0 %v2689, 77
      %v2704 = vpop.permute.xlu0 %2703
      %2705 = vrot.lane.b32.xlu0 %v2690, 77
      %v2706 = vpop.permute.xlu0 %2705
      %2707 = vrot.lane.b32.xlu0 %v2691, 77
      %v2708 = vpop.permute.xlu0 %2707
      %2709 = vrot.lane.b32.xlu0 %v2692, 77
      %v2710 = vpop.permute.xlu0 %2709
      %v2711 = vsel %vm1360, %v2700, %v2702
      %v2712 = vsel %vm1360, %v2702, %v2704
      %v2713 = vsel %vm1360, %v2706, %v2708
      %v2714 = vsel %vm1360, %v2708, %v2710
      %2719 = vst [vmem:[#allocation3 + $0x240] sm:$0xff] %v2711
      %2720 = vst [vmem:[#allocation3 + $0x248] sm:$0xff] %v2712
      %2721 = vst [vmem:[#allocation3 + $0x250] sm:$0xff] %v2713
      %2722 = vst [vmem:[#allocation3 + $0x258] sm:$0xff] %v2714
      %v2723 = vld [vmem:[#allocation2] sm:$0xff]
      %v2724 = vld [vmem:[#allocation2 + $0x8] sm:$0xff]
      %v2725 = vld [vmem:[#allocation2 + $0x10] sm:$0xff]
      %v2726 = vld [vmem:[#allocation2 + $0x18] sm:$0xff]
      %v2727 = vld [vmem:[#allocation2 + $0x20] sm:$0xff]
      %v2728 = vld [vmem:[#allocation2 + $0x28] sm:$0xff]
      %v2729 = vmul.f32 %v2723, %v1380
      %v2730 = vmul.f32 %v2724, %v1384
      %v2731 = vmul.f32 %v2725, %v1382
      %v2732 = vmul.f32 %v2726, %v1380
      %v2733 = vmul.f32 %v2727, %v1384
      %v2734 = vmul.f32 %v2728, %v1382
      %2741 = vrot.lane.b32.xlu0 %v2729, 76
      %v2742 = vpop.permute.xlu0 %2741
      %2743 = vrot.lane.b32.xlu0 %v2730, 76
      %v2744 = vpop.permute.xlu0 %2743
      %2745 = vrot.lane.b32.xlu0 %v2731, 76
      %v2746 = vpop.permute.xlu0 %2745
      %2747 = vrot.lane.b32.xlu0 %v2732, 76
      %v2748 = vpop.permute.xlu0 %2747
      %2749 = vrot.lane.b32.xlu0 %v2733, 76
      %v2750 = vpop.permute.xlu0 %2749
      %2751 = vrot.lane.b32.xlu0 %v2734, 76
      %v2752 = vpop.permute.xlu0 %2751
      %v2753 = vsel %vm1412, %v2742, %v2744
      %v2754 = vsel %vm1412, %v2744, %v2746
      %v2755 = vsel %vm1412, %v2748, %v2750
      %v2756 = vsel %vm1412, %v2750, %v2752
      %2761 = vst [vmem:[#allocation3 + $0x260] sm:$0xff] %v2753
      %2762 = vst [vmem:[#allocation3 + $0x268] sm:$0xff] %v2754
      %2763 = vst [vmem:[#allocation3 + $0x270] sm:$0xff] %v2755
      %2764 = vst [vmem:[#allocation3 + $0x278] sm:$0xff] %v2756
      %v2765 = vld [vmem:[#allocation2] sm:$0xff]
      %v2766 = vld [vmem:[#allocation2 + $0x8] sm:$0xff]
      %v2767 = vld [vmem:[#allocation2 + $0x10] sm:$0xff]
      %v2768 = vld [vmem:[#allocation2 + $0x18] sm:$0xff]
      %v2769 = vld [vmem:[#allocation2 + $0x20] sm:$0xff]
      %v2770 = vld [vmem:[#allocation2 + $0x28] sm:$0xff]
      %v2771 = vmul.f32 %v2765, %v1432
      %v2772 = vmul.f32 %v2766, %v1436
      %v2773 = vmul.f32 %v2767, %v1434
      %v2774 = vmul.f32 %v2768, %v1432
      %v2775 = vmul.f32 %v2769, %v1436
      %v2776 = vmul.f32 %v2770, %v1434
      %2783 = vrot.lane.b32.xlu0 %v2771, 64
      %v2784 = vpop.permute.xlu0 %2783
      %2785 = vrot.lane.b32.xlu0 %v2772, 64
      %v2786 = vpop.permute.xlu0 %2785
      %2787 = vrot.lane.b32.xlu0 %v2773, 64
      %v2788 = vpop.permute.xlu0 %2787
      %2789 = vrot.lane.b32.xlu0 %v2774, 64
      %v2790 = vpop.permute.xlu0 %2789
      %2791 = vrot.lane.b32.xlu0 %v2775, 64
      %v2792 = vpop.permute.xlu0 %2791
      %2793 = vrot.lane.b32.xlu0 %v2776, 64
      %v2794 = vpop.permute.xlu0 %2793
      %v2795 = vsel %vm1435, %v2784, %v2786
      %v2796 = vsel %vm1435, %v2786, %v2788
      %v2797 = vsel %vm1435, %v2790, %v2792
      %v2798 = vsel %vm1435, %v2792, %v2794
      %2803 = vst [vmem:[#allocation3 + $0x280] sm:$0xff] %v2795
      %2804 = vst [vmem:[#allocation3 + $0x288] sm:$0xff] %v2796
      %2805 = vst [vmem:[#allocation3 + $0x290] sm:$0xff] %v2797
      %2806 = vst [vmem:[#allocation3 + $0x298] sm:$0xff] %v2798
      %v2807 = vld [vmem:[#allocation2] sm:$0xff]
      %v2808 = vld [vmem:[#allocation2 + $0x8] sm:$0xff]
      %v2809 = vld [vmem:[#allocation2 + $0x10] sm:$0xff]
      %v2810 = vld [vmem:[#allocation2 + $0x18] sm:$0xff]
      %v2811 = vld [vmem:[#allocation2 + $0x20] sm:$0xff]
      %v2812 = vld [vmem:[#allocation2 + $0x28] sm:$0xff]
      %v2813 = vmul.f32 %v2807, %v1483
      %v2814 = vmul.f32 %v2808, %v1487
      %v2815 = vmul.f32 %v2809, %v1485
      %v2816 = vmul.f32 %v2810, %v1483
      %v2817 = vmul.f32 %v2811, %v1487
      %v2818 = vmul.f32 %v2812, %v1485
      %2825 = vrot.lane.b32.xlu0 %v2813, 63
      %v2826 = vpop.permute.xlu0 %2825
      %2827 = vrot.lane.b32.xlu0 %v2814, 63
      %v2828 = vpop.permute.xlu0 %2827
      %2829 = vrot.lane.b32.xlu0 %v2815, 63
      %v2830 = vpop.permute.xlu0 %2829
      %2831 = vrot.lane.b32.xlu0 %v2816, 63
      %v2832 = vpop.permute.xlu0 %2831
      %2833 = vrot.lane.b32.xlu0 %v2817, 63
      %v2834 = vpop.permute.xlu0 %2833
      %2835 = vrot.lane.b32.xlu0 %v2818, 63
      %v2836 = vpop.permute.xlu0 %2835
      %v2837 = vsel %vm1515, %v2826, %v2828
      %v2838 = vsel %vm1515, %v2828, %v2830
      %v2839 = vsel %vm1515, %v2832, %v2834
      %v2840 = vsel %vm1515, %v2834, %v2836
      %2845 = vst [vmem:[#allocation3 + $0x2a0] sm:$0xff] %v2837
      %2846 = vst [vmem:[#allocation3 + $0x2a8] sm:$0xff] %v2838
      %2847 = vst [vmem:[#allocation3 + $0x2b0] sm:$0xff] %v2839
      %2848 = vst [vmem:[#allocation3 + $0x2b8] sm:$0xff] %v2840
      %v2849 = vld [vmem:[#allocation2] sm:$0xff]
      %v2850 = vld [vmem:[#allocation2 + $0x8] sm:$0xff]
      %v2851 = vld [vmem:[#allocation2 + $0x10] sm:$0xff]
      %v2852 = vld [vmem:[#allocation2 + $0x18] sm:$0xff]
      %v2853 = vld [vmem:[#allocation2 + $0x20] sm:$0xff]
      %v2854 = vld [vmem:[#allocation2 + $0x28] sm:$0xff]
      %2861 = vrot.lane.b32.xlu0 %v2849, 62
      %v2862 = vpop.permute.xlu0 %2861
      %2863 = vrot.lane.b32.xlu0 %v2850, 62
      %v2864 = vpop.permute.xlu0 %2863
      %2865 = vrot.lane.b32.xlu0 %v2851, 62
      %v2866 = vpop.permute.xlu0 %2865
      %2867 = vrot.lane.b32.xlu0 %v2852, 62
      %v2868 = vpop.permute.xlu0 %2867
      %2869 = vrot.lane.b32.xlu0 %v2853, 62
      %v2870 = vpop.permute.xlu0 %2869
      %2871 = vrot.lane.b32.xlu0 %v2854, 62
      %v2872 = vpop.permute.xlu0 %2871
      %v2873 = vsel %vm1552, %v2862, %v2864
      %v2874 = vsel %vm1552, %v2864, %v2866
      %v2875 = vsel %vm1552, %v2868, %v2870
      %v2876 = vsel %vm1552, %v2870, %v2872
      %2881 = vst [vmem:[#allocation3 + $0x2c0] sm:$0xff] %v2873
      %2882 = vst [vmem:[#allocation3 + $0x2c8] sm:$0xff] %v2874
      %2883 = vst [vmem:[#allocation3 + $0x2d0] sm:$0xff] %v2875
      %2884 = vst [vmem:[#allocation3 + $0x2d8] sm:$0xff] %v2876
      %v2885 = vld [vmem:[#allocation2] sm:$0xff]
      %v2886 = vld [vmem:[#allocation2 + $0x8] sm:$0xff]
      %v2887 = vld [vmem:[#allocation2 + $0x10] sm:$0xff]
      %v2888 = vld [vmem:[#allocation2 + $0x18] sm:$0xff]
      %v2889 = vld [vmem:[#allocation2 + $0x20] sm:$0xff]
      %v2890 = vld [vmem:[#allocation2 + $0x28] sm:$0xff]
      %v2891 = vmul.f32 %v2885, %v1572
      %v2892 = vmul.f32 %v2886, %v1576
      %v2893 = vmul.f32 %v2887, %v1574
      %v2894 = vmul.f32 %v2888, %v1572
      %v2895 = vmul.f32 %v2889, %v1576
      %v2896 = vmul.f32 %v2890, %v1574
      %2903 = vrot.lane.b32.xlu0 %v2891, 61
      %v2904 = vpop.permute.xlu0 %2903
      %2905 = vrot.lane.b32.xlu0 %v2892, 61
      %v2906 = vpop.permute.xlu0 %2905
      %2907 = vrot.lane.b32.xlu0 %v2893, 61
      %v2908 = vpop.permute.xlu0 %2907
      %2909 = vrot.lane.b32.xlu0 %v2894, 61
      %v2910 = vpop.permute.xlu0 %2909
      %2911 = vrot.lane.b32.xlu0 %v2895, 61
      %v2912 = vpop.permute.xlu0 %2911
      %2913 = vrot.lane.b32.xlu0 %v2896, 61
      %v2914 = vpop.permute.xlu0 %2913
      %v2915 = vsel %vm1604, %v2904, %v2906
      %v2916 = vsel %vm1604, %v2906, %v2908
      %v2917 = vsel %vm1604, %v2910, %v2912
      %v2918 = vsel %vm1604, %v2912, %v2914
      %2923 = vst [vmem:[#allocation3 + $0x2e0] sm:$0xff] %v2915
      %2924 = vst [vmem:[#allocation3 + $0x2e8] sm:$0xff] %v2916
      %2925 = vst [vmem:[#allocation3 + $0x2f0] sm:$0xff] %v2917
      %2926 = vst [vmem:[#allocation3 + $0x2f8] sm:$0xff] %v2918
      %v2927 = vld [vmem:[#allocation2] sm:$0xff]
      %v2928 = vld [vmem:[#allocation2 + $0x8] sm:$0xff]
      %v2929 = vld [vmem:[#allocation2 + $0x10] sm:$0xff]
      %v2930 = vld [vmem:[#allocation2 + $0x18] sm:$0xff]
      %v2931 = vld [vmem:[#allocation2 + $0x20] sm:$0xff]
      %v2932 = vld [vmem:[#allocation2 + $0x28] sm:$0xff]
      %v2933 = vmul.f32 %v2927, %v1624
      %v2934 = vmul.f32 %v2928, %v1628
      %v2935 = vmul.f32 %v2929, %v1626
      %v2936 = vmul.f32 %v2930, %v1624
      %v2937 = vmul.f32 %v2931, %v1628
      %v2938 = vmul.f32 %v2932, %v1626
      %2945 = vrot.lane.b32.xlu0 %v2933, 60
      %v2946 = vpop.permute.xlu0 %2945
      %2947 = vrot.lane.b32.xlu0 %v2934, 60
      %v2948 = vpop.permute.xlu0 %2947
      %2949 = vrot.lane.b32.xlu0 %v2935, 60
      %v2950 = vpop.permute.xlu0 %2949
      %2951 = vrot.lane.b32.xlu0 %v2936, 60
      %v2952 = vpop.permute.xlu0 %2951
      %2953 = vrot.lane.b32.xlu0 %v2937, 60
      %v2954 = vpop.permute.xlu0 %2953
      %2955 = vrot.lane.b32.xlu0 %v2938, 60
      %v2956 = vpop.permute.xlu0 %2955
      %v2957 = vsel %vm1656, %v2946, %v2948
      %v2958 = vsel %vm1656, %v2948, %v2950
      %v2959 = vsel %vm1656, %v2952, %v2954
      %v2960 = vsel %vm1656, %v2954, %v2956
      %2965 = vst [vmem:[#allocation3 + $0x300] sm:$0xff] %v2957
      %2966 = vst [vmem:[#allocation3 + $0x308] sm:$0xff] %v2958
      %2967 = vst [vmem:[#allocation3 + $0x310] sm:$0xff] %v2959
      %2968 = vst [vmem:[#allocation3 + $0x318] sm:$0xff] %v2960
      %v2969 = vld [vmem:[%s5] sm:$0xff]
      %v2970 = vld [vmem:[%s5 + $0x8] sm:$0xff]
      %v2971 = vld [vmem:[%s5 + $0x10] sm:$0xff]
      %v2972 = vld [vmem:[%s5 + $0x18] sm:$0xff]
      %v2973 = vld [vmem:[%s5 + $0x20] sm:$0xff]
      %v2974 = vld [vmem:[%s5 + $0x28] sm:$0xff]
      %v2975 = vld [vmem:[%s5 + $0x30] sm:$0xff]
      %v2976 = vld [vmem:[%s5 + $0x38] sm:$0xff]
      %v2977 = vld [vmem:[#allocation3] sm:$0xff]
      %v2978 = vld [vmem:[#allocation3 + $0x8] sm:$0xff]
      %v2979 = vld [vmem:[#allocation3 + $0x10] sm:$0xff]
      %v2980 = vld [vmem:[#allocation3 + $0x18] sm:$0xff]
      %v2981 = vld [vmem:[#allocation3 + $0x20] sm:$0xff]
      %v2982 = vld [vmem:[#allocation3 + $0x28] sm:$0xff]
      %v2983 = vld [vmem:[#allocation3 + $0x30] sm:$0xff]
      %v2984 = vld [vmem:[#allocation3 + $0x38] sm:$0xff]
      %v2985 = vld [vmem:[#allocation3 + $0x40] sm:$0xff]
      %v2986 = vld [vmem:[#allocation3 + $0x48] sm:$0xff]
      %v2987 = vld [vmem:[#allocation3 + $0x50] sm:$0xff]
      %v2988 = vld [vmem:[#allocation3 + $0x58] sm:$0xff]
      %v2989 = vld [vmem:[#allocation3 + $0x60] sm:$0xff]
      %v2990 = vld [vmem:[#allocation3 + $0x68] sm:$0xff]
      %v2991 = vld [vmem:[#allocation3 + $0x70] sm:$0xff]
      %v2992 = vld [vmem:[#allocation3 + $0x78] sm:$0xff]
      %v2993 = vld [vmem:[#allocation3 + $0x80] sm:$0xff]
      %v2994 = vld [vmem:[#allocation3 + $0x88] sm:$0xff]
      %v2995 = vld [vmem:[#allocation3 + $0x90] sm:$0xff]
      %v2996 = vld [vmem:[#allocation3 + $0x98] sm:$0xff]
      %v2997 = vld [vmem:[#allocation3 + $0xa0] sm:$0xff]
      %v2998 = vld [vmem:[#allocation3 + $0xa8] sm:$0xff]
      %v2999 = vld [vmem:[#allocation3 + $0xb0] sm:$0xff]
      %v3000 = vld [vmem:[#allocation3 + $0xb8] sm:$0xff]
      %v3001 = vld [vmem:[#allocation3 + $0xc0] sm:$0xff]
      %v3002 = vld [vmem:[#allocation3 + $0xc8] sm:$0xff]
      %v3003 = vld [vmem:[#allocation3 + $0xd0] sm:$0xff]
      %v3004 = vld [vmem:[#allocation3 + $0xd8] sm:$0xff]
      %v3005 = vld [vmem:[#allocation3 + $0xe0] sm:$0xff]
      %v3006 = vld [vmem:[#allocation3 + $0xe8] sm:$0xff]
      %v3007 = vld [vmem:[#allocation3 + $0xf0] sm:$0xff]
      %v3008 = vld [vmem:[#allocation3 + $0xf8] sm:$0xff]
      %v3009 = vld [vmem:[#allocation3 + $0x100] sm:$0xff]
      %v3010 = vld [vmem:[#allocation3 + $0x108] sm:$0xff]
      %v3011 = vld [vmem:[#allocation3 + $0x110] sm:$0xff]
      %v3012 = vld [vmem:[#allocation3 + $0x118] sm:$0xff]
      %v3013 = vld [vmem:[#allocation3 + $0x120] sm:$0xff]
      %v3014 = vld [vmem:[#allocation3 + $0x128] sm:$0xff]
      %v3015 = vld [vmem:[#allocation3 + $0x130] sm:$0xff]
      %v3016 = vld [vmem:[#allocation3 + $0x138] sm:$0xff]
      %v3017 = vld [vmem:[#allocation3 + $0x140] sm:$0xff]
      %v3018 = vld [vmem:[#allocation3 + $0x148] sm:$0xff]
      %v3019 = vld [vmem:[#allocation3 + $0x150] sm:$0xff]
      %v3020 = vld [vmem:[#allocation3 + $0x158] sm:$0xff]
      %v3021 = vld [vmem:[#allocation3 + $0x160] sm:$0xff]
      %v3022 = vld [vmem:[#allocation3 + $0x168] sm:$0xff]
      %v3023 = vld [vmem:[#allocation3 + $0x170] sm:$0xff]
      %v3024 = vld [vmem:[#allocation3 + $0x178] sm:$0xff]
      %v3025 = vld [vmem:[#allocation3 + $0x180] sm:$0xff]
      %v3026 = vld [vmem:[#allocation3 + $0x188] sm:$0xff]
      %v3027 = vld [vmem:[#allocation3 + $0x190] sm:$0xff]
      %v3028 = vld [vmem:[#allocation3 + $0x198] sm:$0xff]
      %v3029 = vld [vmem:[#allocation3 + $0x1a0] sm:$0xff]
      %v3030 = vld [vmem:[#allocation3 + $0x1a8] sm:$0xff]
      %v3031 = vld [vmem:[#allocation3 + $0x1b0] sm:$0xff]
      %v3032 = vld [vmem:[#allocation3 + $0x1b8] sm:$0xff]
      %v3033 = vld [vmem:[#allocation3 + $0x1c0] sm:$0xff]
      %v3034 = vld [vmem:[#allocation3 + $0x1c8] sm:$0xff]
      %v3035 = vld [vmem:[#allocation3 + $0x1d0] sm:$0xff]
      %v3036 = vld [vmem:[#allocation3 + $0x1d8] sm:$0xff]
      %v3037 = vld [vmem:[#allocation3 + $0x1e0] sm:$0xff]
      %v3038 = vld [vmem:[#allocation3 + $0x1e8] sm:$0xff]
      %v3039 = vld [vmem:[#allocation3 + $0x1f0] sm:$0xff]
      %v3040 = vld [vmem:[#allocation3 + $0x1f8] sm:$0xff]
      %v3041 = vld [vmem:[#allocation3 + $0x200] sm:$0xff]
      %v3042 = vld [vmem:[#allocation3 + $0x208] sm:$0xff]
      %v3043 = vld [vmem:[#allocation3 + $0x210] sm:$0xff]
      %v3044 = vld [vmem:[#allocation3 + $0x218] sm:$0xff]
      %v3045 = vld [vmem:[#allocation3 + $0x220] sm:$0xff]
      %v3046 = vld [vmem:[#allocation3 + $0x228] sm:$0xff]
      %v3047 = vld [vmem:[#allocation3 + $0x230] sm:$0xff]
      %v3048 = vld [vmem:[#allocation3 + $0x238] sm:$0xff]
      %v3049 = vld [vmem:[#allocation3 + $0x240] sm:$0xff]
      %v3050 = vld [vmem:[#allocation3 + $0x248] sm:$0xff]
      %v3051 = vld [vmem:[#allocation3 + $0x250] sm:$0xff]
      %v3052 = vld [vmem:[#allocation3 + $0x258] sm:$0xff]
      %v3053 = vld [vmem:[#allocation3 + $0x260] sm:$0xff]
      %v3054 = vld [vmem:[#allocation3 + $0x268] sm:$0xff]
      %v3055 = vld [vmem:[#allocation3 + $0x270] sm:$0xff]
      %v3056 = vld [vmem:[#allocation3 + $0x278] sm:$0xff]
      %v3057 = vld [vmem:[#allocation3 + $0x280] sm:$0xff]
      %v3058 = vld [vmem:[#allocation3 + $0x288] sm:$0xff]
      %v3059 = vld [vmem:[#allocation3 + $0x290] sm:$0xff]
      %v3060 = vld [vmem:[#allocation3 + $0x298] sm:$0xff]
      %v3061 = vld [vmem:[#allocation3 + $0x2a0] sm:$0xff]
      %v3062 = vld [vmem:[#allocation3 + $0x2a8] sm:$0xff]
      %v3063 = vld [vmem:[#allocation3 + $0x2b0] sm:$0xff]
      %v3064 = vld [vmem:[#allocation3 + $0x2b8] sm:$0xff]
      %v3065 = vld [vmem:[#allocation3 + $0x2c0] sm:$0xff]
      %v3066 = vld [vmem:[#allocation3 + $0x2c8] sm:$0xff]
      %v3067 = vld [vmem:[#allocation3 + $0x2d0] sm:$0xff]
      %v3068 = vld [vmem:[#allocation3 + $0x2d8] sm:$0xff]
      %v3069 = vld [vmem:[#allocation3 + $0x2e0] sm:$0xff]
      %v3070 = vld [vmem:[#allocation3 + $0x2e8] sm:$0xff]
      %v3071 = vld [vmem:[#allocation3 + $0x2f0] sm:$0xff]
      %v3072 = vld [vmem:[#allocation3 + $0x2f8] sm:$0xff]
      %v3073 = vld [vmem:[#allocation3 + $0x300] sm:$0xff]
      %v3074 = vld [vmem:[#allocation3 + $0x308] sm:$0xff]
      %v3075 = vld [vmem:[#allocation3 + $0x310] sm:$0xff]
      %v3076 = vld [vmem:[#allocation3 + $0x318] sm:$0xff]
      %v3077 = vld [vmem:[%s6] sm:$0xff]
      %v3078 = vld [vmem:[%s6 + $0x8] sm:$0xff]
      %3080 = vset.pattern.permute.xlu0 0
      %3081 = vperm.xlu0 %3080, %v3077
      %v3082 = vpop.permute.xlu0 %3081
      %3085 = vset.pattern.permute.xlu0 0
      %3086 = vperm.xlu0 %3085, %v3078
      %v3087 = vpop.permute.xlu0 %3086
      %v3090 = vsel %vm700, %v2972, 0
      %v3093 = vsel %vm700, %v2976, 0
      %3095 = vmatprep.subr.mxu0 %v2978
      %3096 = vmatpush1.msra.mxu0 %v2977
      %3097 = vmatprep.subr.mxu0 %v2980
      %3098 = vmatpush1.msra.mxu0 %v2979
      %3099 = vmatprep.subr.mxu0 %v2982
      %3100 = vmatpush1.msra.mxu0 %v2981
      %3101 = vmatprep.subr.mxu0 %v2984
      %3102 = vmatpush1.msra.mxu0 %v2983
      %3103 = vmatprep.subr.mxu0 %v2986
      %3104 = vmatpush1.msra.mxu0 %v2985
      %3105 = vmatprep.subr.mxu0 %v2988
      %3106 = vmatpush1.msra.mxu0 %v2987
      %3107 = vmatprep.subr.mxu0 %v2990
      %3108 = vmatpush1.msra.mxu0 %v2989
      %3109 = vmatprep.subr.mxu0 %v2992
      %3110 = vmatpush1.msra.mxu0 %v2991
      %3111 = vmatprep.subr.mxu0 %v2994
      %3112 = vmatpush1.msra.mxu0 %v2993
      %3113 = vmatprep.subr.mxu0 %v2996
      %3114 = vmatpush1.msra.mxu0 %v2995
      %3115 = vmatprep.subr.mxu0 %v2998
      %3116 = vmatpush1.msra.mxu0 %v2997
      %3117 = vmatprep.subr.mxu0 %v3000
      %3118 = vmatpush1.msra.mxu0 %v2999
      %3119 = vmatprep.subr.mxu0 %v3002
      %3120 = vmatpush1.msra.mxu0 %v3001
      %3121 = vmatprep.subr.mxu0 %v3004
      %3122 = vmatpush1.msra.mxu0 %v3003
      %3123 = vmatprep.subr.mxu0 %v3006
      %3124 = vmatpush1.msra.mxu0 %v3005
      %3125 = vmatprep.subr.mxu0 %v3008
      %3126 = vmatpush1.msra.mxu0 %v3007
      %3127 = vmatprep.subr.mxu0 %v3010
      %3128 = vmatpush1.msra.mxu0 %v3009
      %3129 = vmatprep.subr.mxu0 %v3012
      %3130 = vmatpush1.msra.mxu0 %v3011
      %3131 = vmatprep.subr.mxu0 %v3014
      %3132 = vmatpush1.msra.mxu0 %v3013
      %3133 = vmatprep.subr.mxu0 %v3016
      %3134 = vmatpush1.msra.mxu0 %v3015
      %3135 = vmatprep.subr.mxu0 %v3018
      %3136 = vmatpush1.msra.mxu0 %v3017
      %3137 = vmatprep.subr.mxu0 %v3020
      %3138 = vmatpush1.msra.mxu0 %v3019
      %3139 = vmatprep.subr.mxu0 %v3022
      %3140 = vmatpush1.msra.mxu0 %v3021
      %3141 = vmatprep.subr.mxu0 %v3024
      %3142 = vmatpush1.msra.mxu0 %v3023
      %3143 = vmatprep.subr.mxu0 %v3026
      %3144 = vmatpush1.msra.mxu0 %v3025
      %3145 = vmatprep.subr.mxu0 %v3028
      %3146 = vmatpush1.msra.mxu0 %v3027
      %3147 = vmatprep.subr.mxu0 %v3030
      %3148 = vmatpush1.msra.mxu0 %v3029
      %3149 = vmatprep.subr.mxu0 %v3032
      %3150 = vmatpush1.msra.mxu0 %v3031
      %3151 = vmatprep.subr.mxu0 %v3034
      %3152 = vmatpush1.msra.mxu0 %v3033
      %3153 = vmatprep.subr.mxu0 %v3036
      %3154 = vmatpush1.msra.mxu0 %v3035
      %3155 = vmatprep.subr.mxu0 %v3038
      %3156 = vmatpush1.msra.mxu0 %v3037
      %3157 = vmatprep.subr.mxu0 %v3040
      %3158 = vmatpush1.msra.mxu0 %v3039
      %3159 = vmatprep.mubr.f32.mxu0 %v2970
      %3160 = vmatmul.mubr.f32.gmra.mrb[0].mxu0 %v2969
      %v3161 = vpop.f32.mrb[0].mxu0
      %v3162 = vadd.f32 %v3082, %v3161
      %v3163 = vpop.f32.mrb[0].mxu0
      %v3164 = vadd.f32 %v3082, %v3163
      %3165 = vmatprep.mubr.f32.mxu0 %v2974
      %3166 = vmatmul.mubr.f32.gmra.mrb[0].mxu0 %v2973
      %v3167 = vpop.f32.mrb[0].mxu0
      %v3168 = vadd.f32 %v3087, %v3167
      %v3169 = vpop.f32.mrb[0].mxu0
      %v3170 = vadd.f32 %v3087, %v3169
      %3171 = vdwg.mxu0
      %3172 = vmatprep.subr.mxu0 %v3042
      %3173 = vmatpush1.msra.mxu0 %v3041
      %3174 = vmatprep.subr.mxu0 %v3044
      %3175 = vmatpush1.msra.mxu0 %v3043
      %3176 = vmatprep.subr.mxu0 %v3046
      %3177 = vmatpush1.msra.mxu0 %v3045
      %3178 = vmatprep.subr.mxu0 %v3048
      %3179 = vmatpush1.msra.mxu0 %v3047
      %3180 = vmatprep.subr.mxu0 %v3050
      %3181 = vmatpush1.msra.mxu0 %v3049
      %3182 = vmatprep.subr.mxu0 %v3052
      %3183 = vmatpush1.msra.mxu0 %v3051
      %3184 = vmatprep.subr.mxu0 %v3054
      %3185 = vmatpush1.msra.mxu0 %v3053
      %3186 = vmatprep.subr.mxu0 %v3056
      %3187 = vmatpush1.msra.mxu0 %v3055
      %3188 = vmatprep.subr.mxu0 %v3058
      %3189 = vmatpush1.msra.mxu0 %v3057
      %3190 = vmatprep.subr.mxu0 %v3060
      %3191 = vmatpush1.msra.mxu0 %v3059
      %3192 = vmatprep.subr.mxu0 %v3062
      %3193 = vmatpush1.msra.mxu0 %v3061
      %3194 = vmatprep.subr.mxu0 %v3064
      %3195 = vmatpush1.msra.mxu0 %v3063
      %3196 = vmatprep.subr.mxu0 %v3066
      %3197 = vmatpush1.msra.mxu0 %v3065
      %3198 = vmatprep.subr.mxu0 %v3068
      %3199 = vmatpush1.msra.mxu0 %v3067
      %3200 = vmatprep.subr.mxu0 %v3070
      %3201 = vmatpush1.msra.mxu0 %v3069
      %3202 = vmatprep.subr.mxu0 %v3072
      %3203 = vmatpush1.msra.mxu0 %v3071
      %3204 = vmatprep.subr.mxu0 %v3074
      %3205 = vmatpush1.msra.mxu0 %v3073
      %3206 = vmatprep.subr.mxu0 %v3076
      %3207 = vmatpush1.msra.mxu0 %v3075
      %3208 = vmatprep.subr.mxu0 0.0
      %3209 = vmatpush1.msra.mxu0 0.0
      %3210 = vmatprep.subr.mxu0 0.0
      %3211 = vmatpush1.msra.mxu0 0.0
      %3212 = vmatprep.subr.mxu0 0.0
      %3213 = vmatpush1.msra.mxu0 0.0
      %3214 = vmatprep.subr.mxu0 0.0
      %3215 = vmatpush1.msra.mxu0 0.0
      %3216 = vmatprep.subr.mxu0 0.0
      %3217 = vmatpush1.msra.mxu0 0.0
      %3218 = vmatprep.subr.mxu0 0.0
      %3219 = vmatpush1.msra.mxu0 0.0
      %3220 = vmatprep.subr.mxu0 0.0
      %3221 = vmatpush1.msra.mxu0 0.0
      %3222 = vmatprep.subr.mxu0 0.0
      %3223 = vmatpush1.msra.mxu0 0.0
      %3224 = vmatprep.subr.mxu0 0.0
      %3225 = vmatpush1.msra.mxu0 0.0
      %3226 = vmatprep.subr.mxu0 0.0
      %3227 = vmatpush1.msra.mxu0 0.0
      %3228 = vmatprep.subr.mxu0 0.0
      %3229 = vmatpush1.msra.mxu0 0.0
      %3230 = vmatprep.subr.mxu0 0.0
      %3231 = vmatpush1.msra.mxu0 0.0
      %3232 = vmatprep.subr.mxu0 0.0
      %3233 = vmatpush1.msra.mxu0 0.0
      %3234 = vmatprep.subr.mxu0 0.0
      %3235 = vmatpush1.msra.mxu0 0.0
      %3236 = vmatprep.mubr.f32.mxu0 %v3090
      %3237 = vmatmul.mubr.f32.gmra.mrb[0].mxu0 %v2971
      %v3238 = vpop.f32.mrb[0].mxu0
      %v3239 = vadd.f32 %v3162, %v3238
      %v3240 = vpop.f32.mrb[0].mxu0
      %v3241 = vadd.f32 %v3164, %v3240
      %3242 = vmatprep.mubr.f32.mxu0 %v3093
      %3243 = vmatmul.mubr.f32.gmra.mrb[0].mxu0 %v2975
      %v3244 = vpop.f32.mrb[0].mxu0
      %v3245 = vadd.f32 %v3168, %v3244
      %v3246 = vpop.f32.mrb[0].mxu0
      %v3247 = vadd.f32 %v3170, %v3246
      %3248 = vdwg.mxu0
      %v3249 = vmax.f32 %v3239, 0.0
      %v3250 = vmax.f32 %v3241, 0.0
      %v3251 = vmax.f32 %v3245, 0.0
      %v3252 = vmax.f32 %v3247, 0.0
      %3257 = vrot.lane.b32.xlu0 %v3249, 34
      %v3258 = vpop.permute.xlu0 %3257
      %3259 = vrot.lane.b32.xlu0 %v3250, 34
      %v3260 = vpop.permute.xlu0 %3259
      %3261 = vrot.lane.b32.xlu0 %v3251, 34
      %v3262 = vpop.permute.xlu0 %3261
      %3263 = vrot.lane.b32.xlu0 %v3252, 34
      %v3264 = vpop.permute.xlu0 %3263
      %v3265 = vsel %vm387, %v3258, %v3260
      %v3266 = vsel %vm387, %v3262, %v3264
      %3273 = vst.msk [vmem:[#allocation2] sm:$0xff] %vm440, %v3258
      %3274 = vst [vmem:[#allocation2 + $0x8] sm:$0xff] %v3265
      %3275 = vst.msk [vmem:[#allocation2 + $0x10] sm:$0xff] %vm387, %v3260
      %3276 = vst.msk [vmem:[#allocation2 + $0x18] sm:$0xff] %vm440, %v3262
      %3277 = vst [vmem:[#allocation2 + $0x20] sm:$0xff] %v3266
      %3278 = vst.msk [vmem:[#allocation2 + $0x28] sm:$0xff] %vm387, %v3264
      %v3279 = vld [vmem:[#allocation2] sm:$0xff]
      %v3280 = vld [vmem:[#allocation2 + $0x8] sm:$0xff]
      %v3281 = vld [vmem:[#allocation2 + $0x18] sm:$0xff]
      %v3282 = vld [vmem:[#allocation2 + $0x20] sm:$0xff]
      %v3283 = vmul.f32 %v3279, %v455
      %v3284 = vmul.f32 %v3280, %v459
      %v3285 = vmul.f32 %v3281, %v455
      %v3286 = vmul.f32 %v3282, %v459
      %3287 = vst [vmem:[#allocation3] sm:$0xff] %v3283
      %3288 = vst [vmem:[#allocation3 + $0x8] sm:$0xff] %v3284
      %3289 = vst [vmem:[#allocation3 + $0x10] sm:$0xff] %v3285
      %3290 = vst [vmem:[#allocation3 + $0x18] sm:$0xff] %v3286
      %v3291 = vld [vmem:[#allocation2] sm:$0xff]
      %v3292 = vld [vmem:[#allocation2 + $0x8] sm:$0xff]
      %v3293 = vld [vmem:[#allocation2 + $0x10] sm:$0xff]
      %v3294 = vld [vmem:[#allocation2 + $0x18] sm:$0xff]
      %v3295 = vld [vmem:[#allocation2 + $0x20] sm:$0xff]
      %v3296 = vld [vmem:[#allocation2 + $0x28] sm:$0xff]
      %v3297 = vmul.f32 %v3291, %v486
      %v3298 = vmul.f32 %v3292, %v490
      %v3299 = vmul.f32 %v3293, %v488
      %v3300 = vmul.f32 %v3294, %v486
      %v3301 = vmul.f32 %v3295, %v490
      %v3302 = vmul.f32 %v3296, %v488
      %3309 = vrot.lane.b32.xlu0 %v3297, 127
      %v3310 = vpop.permute.xlu0 %3309
      %3311 = vrot.lane.b32.xlu0 %v3298, 127
      %v3312 = vpop.permute.xlu0 %3311
      %3313 = vrot.lane.b32.xlu0 %v3299, 127
      %v3314 = vpop.permute.xlu0 %3313
      %3315 = vrot.lane.b32.xlu0 %v3300, 127
      %v3316 = vpop.permute.xlu0 %3315
      %3317 = vrot.lane.b32.xlu0 %v3301, 127
      %v3318 = vpop.permute.xlu0 %3317
      %3319 = vrot.lane.b32.xlu0 %v3302, 127
      %v3320 = vpop.permute.xlu0 %3319
      %v3321 = vsel %vm518, %v3310, %v3312
      %v3322 = vsel %vm518, %v3312, %v3314
      %v3323 = vsel %vm518, %v3316, %v3318
      %v3324 = vsel %vm518, %v3318, %v3320
      %3329 = vst [vmem:[#allocation3 + $0x20] sm:$0xff] %v3321
      %3330 = vst [vmem:[#allocation3 + $0x28] sm:$0xff] %v3322
      %3331 = vst [vmem:[#allocation3 + $0x30] sm:$0xff] %v3323
      %3332 = vst [vmem:[#allocation3 + $0x38] sm:$0xff] %v3324
      %v3333 = vld [vmem:[#allocation2] sm:$0xff]
      %v3334 = vld [vmem:[#allocation2 + $0x8] sm:$0xff]
      %v3335 = vld [vmem:[#allocation2 + $0x10] sm:$0xff]
      %v3336 = vld [vmem:[#allocation2 + $0x18] sm:$0xff]
      %v3337 = vld [vmem:[#allocation2 + $0x20] sm:$0xff]
      %v3338 = vld [vmem:[#allocation2 + $0x28] sm:$0xff]
      %3345 = vrot.lane.b32.xlu0 %v3333, 126
      %v3346 = vpop.permute.xlu0 %3345
      %3347 = vrot.lane.b32.xlu0 %v3334, 126
      %v3348 = vpop.permute.xlu0 %3347
      %3349 = vrot.lane.b32.xlu0 %v3335, 126
      %v3350 = vpop.permute.xlu0 %3349
      %3351 = vrot.lane.b32.xlu0 %v3336, 126
      %v3352 = vpop.permute.xlu0 %3351
      %3353 = vrot.lane.b32.xlu0 %v3337, 126
      %v3354 = vpop.permute.xlu0 %3353
      %3355 = vrot.lane.b32.xlu0 %v3338, 126
      %v3356 = vpop.permute.xlu0 %3355
      %v3357 = vsel %vm555, %v3346, %v3348
      %v3358 = vsel %vm555, %v3348, %v3350
      %v3359 = vsel %vm555, %v3352, %v3354
      %v3360 = vsel %vm555, %v3354, %v3356
      %3365 = vst [vmem:[#allocation3 + $0x40] sm:$0xff] %v3357
      %3366 = vst [vmem:[#allocation3 + $0x48] sm:$0xff] %v3358
      %3367 = vst [vmem:[#allocation3 + $0x50] sm:$0xff] %v3359
      %3368 = vst [vmem:[#allocation3 + $0x58] sm:$0xff] %v3360
      %v3369 = vld [vmem:[#allocation2] sm:$0xff]
      %v3370 = vld [vmem:[#allocation2 + $0x8] sm:$0xff]
      %v3371 = vld [vmem:[#allocation2 + $0x10] sm:$0xff]
      %v3372 = vld [vmem:[#allocation2 + $0x18] sm:$0xff]
      %v3373 = vld [vmem:[#allocation2 + $0x20] sm:$0xff]
      %v3374 = vld [vmem:[#allocation2 + $0x28] sm:$0xff]
      %v3375 = vmul.f32 %v3369, %v584
      %v3376 = vmul.f32 %v3370, %v588
      %v3377 = vmul.f32 %v3371, %v586
      %v3378 = vmul.f32 %v3372, %v584
      %v3379 = vmul.f32 %v3373, %v588
      %v3380 = vmul.f32 %v3374, %v586
      %3387 = vrot.lane.b32.xlu0 %v3375, 125
      %v3388 = vpop.permute.xlu0 %3387
      %3389 = vrot.lane.b32.xlu0 %v3376, 125
      %v3390 = vpop.permute.xlu0 %3389
      %3391 = vrot.lane.b32.xlu0 %v3377, 125
      %v3392 = vpop.permute.xlu0 %3391
      %3393 = vrot.lane.b32.xlu0 %v3378, 125
      %v3394 = vpop.permute.xlu0 %3393
      %3395 = vrot.lane.b32.xlu0 %v3379, 125
      %v3396 = vpop.permute.xlu0 %3395
      %3397 = vrot.lane.b32.xlu0 %v3380, 125
      %v3398 = vpop.permute.xlu0 %3397
      %v3399 = vsel %vm616, %v3388, %v3390
      %v3400 = vsel %vm616, %v3390, %v3392
      %v3401 = vsel %vm616, %v3394, %v3396
      %v3402 = vsel %vm616, %v3396, %v3398
      %3407 = vst [vmem:[#allocation3 + $0x60] sm:$0xff] %v3399
      %3408 = vst [vmem:[#allocation3 + $0x68] sm:$0xff] %v3400
      %3409 = vst [vmem:[#allocation3 + $0x70] sm:$0xff] %v3401
      %3410 = vst [vmem:[#allocation3 + $0x78] sm:$0xff] %v3402
      %v3411 = vld [vmem:[#allocation2] sm:$0xff]
      %v3412 = vld [vmem:[#allocation2 + $0x8] sm:$0xff]
      %v3413 = vld [vmem:[#allocation2 + $0x10] sm:$0xff]
      %v3414 = vld [vmem:[#allocation2 + $0x18] sm:$0xff]
      %v3415 = vld [vmem:[#allocation2 + $0x20] sm:$0xff]
      %v3416 = vld [vmem:[#allocation2 + $0x28] sm:$0xff]
      %v3417 = vmul.f32 %v3411, %v645
      %v3418 = vmul.f32 %v3412, %v649
      %v3419 = vmul.f32 %v3413, %v647
      %v3420 = vmul.f32 %v3414, %v645
      %v3421 = vmul.f32 %v3415, %v649
      %v3422 = vmul.f32 %v3416, %v647
      %3429 = vrot.lane.b32.xlu0 %v3417, 124
      %v3430 = vpop.permute.xlu0 %3429
      %3431 = vrot.lane.b32.xlu0 %v3418, 124
      %v3432 = vpop.permute.xlu0 %3431
      %3433 = vrot.lane.b32.xlu0 %v3419, 124
      %v3434 = vpop.permute.xlu0 %3433
      %3435 = vrot.lane.b32.xlu0 %v3420, 124
      %v3436 = vpop.permute.xlu0 %3435
      %3437 = vrot.lane.b32.xlu0 %v3421, 124
      %v3438 = vpop.permute.xlu0 %3437
      %3439 = vrot.lane.b32.xlu0 %v3422, 124
      %v3440 = vpop.permute.xlu0 %3439
      %v3441 = vsel %vm677, %v3430, %v3432
      %v3442 = vsel %vm677, %v3432, %v3434
      %v3443 = vsel %vm677, %v3436, %v3438
      %v3444 = vsel %vm677, %v3438, %v3440
      %3449 = vst [vmem:[#allocation3 + $0x80] sm:$0xff] %v3441
      %3450 = vst [vmem:[#allocation3 + $0x88] sm:$0xff] %v3442
      %3451 = vst [vmem:[#allocation3 + $0x90] sm:$0xff] %v3443
      %3452 = vst [vmem:[#allocation3 + $0x98] sm:$0xff] %v3444
      %v3453 = vld [vmem:[#allocation2] sm:$0xff]
      %v3454 = vld [vmem:[#allocation2 + $0x8] sm:$0xff]
      %v3455 = vld [vmem:[#allocation2 + $0x10] sm:$0xff]
      %v3456 = vld [vmem:[#allocation2 + $0x18] sm:$0xff]
      %v3457 = vld [vmem:[#allocation2 + $0x20] sm:$0xff]
      %v3458 = vld [vmem:[#allocation2 + $0x28] sm:$0xff]
      %v3459 = vmul.f32 %v3453, %v697
      %v3460 = vmul.f32 %v3454, %v701
      %v3461 = vmul.f32 %v3455, %v699
      %v3462 = vmul.f32 %v3456, %v697
      %v3463 = vmul.f32 %v3457, %v701
      %v3464 = vmul.f32 %v3458, %v699
      %3471 = vrot.lane.b32.xlu0 %v3459, 112
      %v3472 = vpop.permute.xlu0 %3471
      %3473 = vrot.lane.b32.xlu0 %v3460, 112
      %v3474 = vpop.permute.xlu0 %3473
      %3475 = vrot.lane.b32.xlu0 %v3461, 112
      %v3476 = vpop.permute.xlu0 %3475
      %3477 = vrot.lane.b32.xlu0 %v3462, 112
      %v3478 = vpop.permute.xlu0 %3477
      %3479 = vrot.lane.b32.xlu0 %v3463, 112
      %v3480 = vpop.permute.xlu0 %3479
      %3481 = vrot.lane.b32.xlu0 %v3464, 112
      %v3482 = vpop.permute.xlu0 %3481
      %v3483 = vsel %vm729, %v3472, %v3474
      %v3484 = vsel %vm729, %v3474, %v3476
      %v3485 = vsel %vm729, %v3478, %v3480
      %v3486 = vsel %vm729, %v3480, %v3482
      %3491 = vst [vmem:[#allocation3 + $0xa0] sm:$0xff] %v3483
      %3492 = vst [vmem:[#allocation3 + $0xa8] sm:$0xff] %v3484
      %3493 = vst [vmem:[#allocation3 + $0xb0] sm:$0xff] %v3485
      %3494 = vst [vmem:[#allocation3 + $0xb8] sm:$0xff] %v3486
      %v3495 = vld [vmem:[#allocation2] sm:$0xff]
      %v3496 = vld [vmem:[#allocation2 + $0x8] sm:$0xff]
      %v3497 = vld [vmem:[#allocation2 + $0x10] sm:$0xff]
      %v3498 = vld [vmem:[#allocation2 + $0x18] sm:$0xff]
      %v3499 = vld [vmem:[#allocation2 + $0x20] sm:$0xff]
      %v3500 = vld [vmem:[#allocation2 + $0x28] sm:$0xff]
      %v3501 = vmul.f32 %v3495, %v749
      %v3502 = vmul.f32 %v3496, %v753
      %v3503 = vmul.f32 %v3497, %v751
      %v3504 = vmul.f32 %v3498, %v749
      %v3505 = vmul.f32 %v3499, %v753
      %v3506 = vmul.f32 %v3500, %v751
      %3513 = vrot.lane.b32.xlu0 %v3501, 111
      %v3514 = vpop.permute.xlu0 %3513
      %3515 = vrot.lane.b32.xlu0 %v3502, 111
      %v3516 = vpop.permute.xlu0 %3515
      %3517 = vrot.lane.b32.xlu0 %v3503, 111
      %v3518 = vpop.permute.xlu0 %3517
      %3519 = vrot.lane.b32.xlu0 %v3504, 111
      %v3520 = vpop.permute.xlu0 %3519
      %3521 = vrot.lane.b32.xlu0 %v3505, 111
      %v3522 = vpop.permute.xlu0 %3521
      %3523 = vrot.lane.b32.xlu0 %v3506, 111
      %v3524 = vpop.permute.xlu0 %3523
      %v3525 = vsel %vm781, %v3514, %v3516
      %v3526 = vsel %vm781, %v3516, %v3518
      %v3527 = vsel %vm781, %v3520, %v3522
      %v3528 = vsel %vm781, %v3522, %v3524
      %3533 = vst [vmem:[#allocation3 + $0xc0] sm:$0xff] %v3525
      %3534 = vst [vmem:[#allocation3 + $0xc8] sm:$0xff] %v3526
      %3535 = vst [vmem:[#allocation3 + $0xd0] sm:$0xff] %v3527
      %3536 = vst [vmem:[#allocation3 + $0xd8] sm:$0xff] %v3528
      %v3537 = vld [vmem:[#allocation2] sm:$0xff]
      %v3538 = vld [vmem:[#allocation2 + $0x8] sm:$0xff]
      %v3539 = vld [vmem:[#allocation2 + $0x10] sm:$0xff]
      %v3540 = vld [vmem:[#allocation2 + $0x18] sm:$0xff]
      %v3541 = vld [vmem:[#allocation2 + $0x20] sm:$0xff]
      %v3542 = vld [vmem:[#allocation2 + $0x28] sm:$0xff]
      %3549 = vrot.lane.b32.xlu0 %v3537, 110
      %v3550 = vpop.permute.xlu0 %3549
      %3551 = vrot.lane.b32.xlu0 %v3538, 110
      %v3552 = vpop.permute.xlu0 %3551
      %3553 = vrot.lane.b32.xlu0 %v3539, 110
      %v3554 = vpop.permute.xlu0 %3553
      %3555 = vrot.lane.b32.xlu0 %v3540, 110
      %v3556 = vpop.permute.xlu0 %3555
      %3557 = vrot.lane.b32.xlu0 %v3541, 110
      %v3558 = vpop.permute.xlu0 %3557
      %3559 = vrot.lane.b32.xlu0 %v3542, 110
      %v3560 = vpop.permute.xlu0 %3559
      %v3561 = vsel %vm818, %v3550, %v3552
      %v3562 = vsel %vm818, %v3552, %v3554
      %v3563 = vsel %vm818, %v3556, %v3558
      %v3564 = vsel %vm818, %v3558, %v3560
      %3569 = vst [vmem:[#allocation3 + $0xe0] sm:$0xff] %v3561
      %3570 = vst [vmem:[#allocation3 + $0xe8] sm:$0xff] %v3562
      %3571 = vst [vmem:[#allocation3 + $0xf0] sm:$0xff] %v3563
      %3572 = vst [vmem:[#allocation3 + $0xf8] sm:$0xff] %v3564
      %v3573 = vld [vmem:[#allocation2] sm:$0xff]
      %v3574 = vld [vmem:[#allocation2 + $0x8] sm:$0xff]
      %v3575 = vld [vmem:[#allocation2 + $0x10] sm:$0xff]
      %v3576 = vld [vmem:[#allocation2 + $0x18] sm:$0xff]
      %v3577 = vld [vmem:[#allocation2 + $0x20] sm:$0xff]
      %v3578 = vld [vmem:[#allocation2 + $0x28] sm:$0xff]
      %v3579 = vmul.f32 %v3573, %v838
      %v3580 = vmul.f32 %v3574, %v842
      %v3581 = vmul.f32 %v3575, %v840
      %v3582 = vmul.f32 %v3576, %v838
      %v3583 = vmul.f32 %v3577, %v842
      %v3584 = vmul.f32 %v3578, %v840
      %3591 = vrot.lane.b32.xlu0 %v3579, 109
      %v3592 = vpop.permute.xlu0 %3591
      %3593 = vrot.lane.b32.xlu0 %v3580, 109
      %v3594 = vpop.permute.xlu0 %3593
      %3595 = vrot.lane.b32.xlu0 %v3581, 109
      %v3596 = vpop.permute.xlu0 %3595
      %3597 = vrot.lane.b32.xlu0 %v3582, 109
      %v3598 = vpop.permute.xlu0 %3597
      %3599 = vrot.lane.b32.xlu0 %v3583, 109
      %v3600 = vpop.permute.xlu0 %3599
      %3601 = vrot.lane.b32.xlu0 %v3584, 109
      %v3602 = vpop.permute.xlu0 %3601
      %v3603 = vsel %vm870, %v3592, %v3594
      %v3604 = vsel %vm870, %v3594, %v3596
      %v3605 = vsel %vm870, %v3598, %v3600
      %v3606 = vsel %vm870, %v3600, %v3602
      %3611 = vst [vmem:[#allocation3 + $0x100] sm:$0xff] %v3603
      %3612 = vst [vmem:[#allocation3 + $0x108] sm:$0xff] %v3604
      %3613 = vst [vmem:[#allocation3 + $0x110] sm:$0xff] %v3605
      %3614 = vst [vmem:[#allocation3 + $0x118] sm:$0xff] %v3606
      %v3615 = vld [vmem:[#allocation2] sm:$0xff]
      %v3616 = vld [vmem:[#allocation2 + $0x8] sm:$0xff]
      %v3617 = vld [vmem:[#allocation2 + $0x10] sm:$0xff]
      %v3618 = vld [vmem:[#allocation2 + $0x18] sm:$0xff]
      %v3619 = vld [vmem:[#allocation2 + $0x20] sm:$0xff]
      %v3620 = vld [vmem:[#allocation2 + $0x28] sm:$0xff]
      %v3621 = vmul.f32 %v3615, %v890
      %v3622 = vmul.f32 %v3616, %v894
      %v3623 = vmul.f32 %v3617, %v892
      %v3624 = vmul.f32 %v3618, %v890
      %v3625 = vmul.f32 %v3619, %v894
      %v3626 = vmul.f32 %v3620, %v892
      %3633 = vrot.lane.b32.xlu0 %v3621, 108
      %v3634 = vpop.permute.xlu0 %3633
      %3635 = vrot.lane.b32.xlu0 %v3622, 108
      %v3636 = vpop.permute.xlu0 %3635
      %3637 = vrot.lane.b32.xlu0 %v3623, 108
      %v3638 = vpop.permute.xlu0 %3637
      %3639 = vrot.lane.b32.xlu0 %v3624, 108
      %v3640 = vpop.permute.xlu0 %3639
      %3641 = vrot.lane.b32.xlu0 %v3625, 108
      %v3642 = vpop.permute.xlu0 %3641
      %3643 = vrot.lane.b32.xlu0 %v3626, 108
      %v3644 = vpop.permute.xlu0 %3643
      %v3645 = vsel %vm922, %v3634, %v3636
      %v3646 = vsel %vm922, %v3636, %v3638
      %v3647 = vsel %vm922, %v3640, %v3642
      %v3648 = vsel %vm922, %v3642, %v3644
      %3653 = vst [vmem:[#allocation3 + $0x120] sm:$0xff] %v3645
      %3654 = vst [vmem:[#allocation3 + $0x128] sm:$0xff] %v3646
      %3655 = vst [vmem:[#allocation3 + $0x130] sm:$0xff] %v3647
      %3656 = vst [vmem:[#allocation3 + $0x138] sm:$0xff] %v3648
      %v3657 = vld [vmem:[#allocation2] sm:$0xff]
      %v3658 = vld [vmem:[#allocation2 + $0x8] sm:$0xff]
      %v3659 = vld [vmem:[#allocation2 + $0x10] sm:$0xff]
      %v3660 = vld [vmem:[#allocation2 + $0x18] sm:$0xff]
      %v3661 = vld [vmem:[#allocation2 + $0x20] sm:$0xff]
      %v3662 = vld [vmem:[#allocation2 + $0x28] sm:$0xff]
      %v3663 = vmul.f32 %v3657, %v942
      %v3664 = vmul.f32 %v3658, %v946
      %v3665 = vmul.f32 %v3659, %v944
      %v3666 = vmul.f32 %v3660, %v942
      %v3667 = vmul.f32 %v3661, %v946
      %v3668 = vmul.f32 %v3662, %v944
      %3675 = vrot.lane.b32.xlu0 %v3663, 96
      %v3676 = vpop.permute.xlu0 %3675
      %3677 = vrot.lane.b32.xlu0 %v3664, 96
      %v3678 = vpop.permute.xlu0 %3677
      %3679 = vrot.lane.b32.xlu0 %v3665, 96
      %v3680 = vpop.permute.xlu0 %3679
      %3681 = vrot.lane.b32.xlu0 %v3666, 96
      %v3682 = vpop.permute.xlu0 %3681
      %3683 = vrot.lane.b32.xlu0 %v3667, 96
      %v3684 = vpop.permute.xlu0 %3683
      %3685 = vrot.lane.b32.xlu0 %v3668, 96
      %v3686 = vpop.permute.xlu0 %3685
      %v3687 = vsel %vm974, %v3676, %v3678
      %v3688 = vsel %vm974, %v3678, %v3680
      %v3689 = vsel %vm974, %v3682, %v3684
      %v3690 = vsel %vm974, %v3684, %v3686
      %3695 = vst [vmem:[#allocation3 + $0x140] sm:$0xff] %v3687
      %3696 = vst [vmem:[#allocation3 + $0x148] sm:$0xff] %v3688
      %3697 = vst [vmem:[#allocation3 + $0x150] sm:$0xff] %v3689
      %3698 = vst [vmem:[#allocation3 + $0x158] sm:$0xff] %v3690
      %v3699 = vld [vmem:[#allocation2] sm:$0xff]
      %v3700 = vld [vmem:[#allocation2 + $0x8] sm:$0xff]
      %v3701 = vld [vmem:[#allocation2 + $0x10] sm:$0xff]
      %v3702 = vld [vmem:[#allocation2 + $0x18] sm:$0xff]
      %v3703 = vld [vmem:[#allocation2 + $0x20] sm:$0xff]
      %v3704 = vld [vmem:[#allocation2 + $0x28] sm:$0xff]
      %v3705 = vmul.f32 %v3699, %v994
      %v3706 = vmul.f32 %v3700, %v998
      %v3707 = vmul.f32 %v3701, %v996
      %v3708 = vmul.f32 %v3702, %v994
      %v3709 = vmul.f32 %v3703, %v998
      %v3710 = vmul.f32 %v3704, %v996
      %3717 = vrot.lane.b32.xlu0 %v3705, 95
      %v3718 = vpop.permute.xlu0 %3717
      %3719 = vrot.lane.b32.xlu0 %v3706, 95
      %v3720 = vpop.permute.xlu0 %3719
      %3721 = vrot.lane.b32.xlu0 %v3707, 95
      %v3722 = vpop.permute.xlu0 %3721
      %3723 = vrot.lane.b32.xlu0 %v3708, 95
      %v3724 = vpop.permute.xlu0 %3723
      %3725 = vrot.lane.b32.xlu0 %v3709, 95
      %v3726 = vpop.permute.xlu0 %3725
      %3727 = vrot.lane.b32.xlu0 %v3710, 95
      %v3728 = vpop.permute.xlu0 %3727
      %v3729 = vsel %vm1026, %v3718, %v3720
      %v3730 = vsel %vm1026, %v3720, %v3722
      %v3731 = vsel %vm1026, %v3724, %v3726
      %v3732 = vsel %vm1026, %v3726, %v3728
      %3737 = vst [vmem:[#allocation3 + $0x160] sm:$0xff] %v3729
      %3738 = vst [vmem:[#allocation3 + $0x168] sm:$0xff] %v3730
      %3739 = vst [vmem:[#allocation3 + $0x170] sm:$0xff] %v3731
      %3740 = vst [vmem:[#allocation3 + $0x178] sm:$0xff] %v3732
      %v3741 = vld [vmem:[#allocation2] sm:$0xff]
      %v3742 = vld [vmem:[#allocation2 + $0x8] sm:$0xff]
      %v3743 = vld [vmem:[#allocation2 + $0x10] sm:$0xff]
      %v3744 = vld [vmem:[#allocation2 + $0x18] sm:$0xff]
      %v3745 = vld [vmem:[#allocation2 + $0x20] sm:$0xff]
      %v3746 = vld [vmem:[#allocation2 + $0x28] sm:$0xff]
      %3753 = vrot.lane.b32.xlu0 %v3741, 94
      %v3754 = vpop.permute.xlu0 %3753
      %3755 = vrot.lane.b32.xlu0 %v3742, 94
      %v3756 = vpop.permute.xlu0 %3755
      %3757 = vrot.lane.b32.xlu0 %v3743, 94
      %v3758 = vpop.permute.xlu0 %3757
      %3759 = vrot.lane.b32.xlu0 %v3744, 94
      %v3760 = vpop.permute.xlu0 %3759
      %3761 = vrot.lane.b32.xlu0 %v3745, 94
      %v3762 = vpop.permute.xlu0 %3761
      %3763 = vrot.lane.b32.xlu0 %v3746, 94
      %v3764 = vpop.permute.xlu0 %3763
      %v3765 = vsel %vm1063, %v3754, %v3756
      %v3766 = vsel %vm1063, %v3756, %v3758
      %v3767 = vsel %vm1063, %v3760, %v3762
      %v3768 = vsel %vm1063, %v3762, %v3764
      %3773 = vst [vmem:[#allocation3 + $0x180] sm:$0xff] %v3765
      %3774 = vst [vmem:[#allocation3 + $0x188] sm:$0xff] %v3766
      %3775 = vst [vmem:[#allocation3 + $0x190] sm:$0xff] %v3767
      %3776 = vst [vmem:[#allocation3 + $0x198] sm:$0xff] %v3768
      %v3777 = vld [vmem:[#allocation2] sm:$0xff]
      %v3778 = vld [vmem:[#allocation2 + $0x8] sm:$0xff]
      %v3779 = vld [vmem:[#allocation2 + $0x10] sm:$0xff]
      %v3780 = vld [vmem:[#allocation2 + $0x18] sm:$0xff]
      %v3781 = vld [vmem:[#allocation2 + $0x20] sm:$0xff]
      %v3782 = vld [vmem:[#allocation2 + $0x28] sm:$0xff]
      %v3783 = vmul.f32 %v3777, %v1083
      %v3784 = vmul.f32 %v3778, %v1087
      %v3785 = vmul.f32 %v3779, %v1085
      %v3786 = vmul.f32 %v3780, %v1083
      %v3787 = vmul.f32 %v3781, %v1087
      %v3788 = vmul.f32 %v3782, %v1085
      %3795 = vrot.lane.b32.xlu0 %v3783, 93
      %v3796 = vpop.permute.xlu0 %3795
      %3797 = vrot.lane.b32.xlu0 %v3784, 93
      %v3798 = vpop.permute.xlu0 %3797
      %3799 = vrot.lane.b32.xlu0 %v3785, 93
      %v3800 = vpop.permute.xlu0 %3799
      %3801 = vrot.lane.b32.xlu0 %v3786, 93
      %v3802 = vpop.permute.xlu0 %3801
      %3803 = vrot.lane.b32.xlu0 %v3787, 93
      %v3804 = vpop.permute.xlu0 %3803
      %3805 = vrot.lane.b32.xlu0 %v3788, 93
      %v3806 = vpop.permute.xlu0 %3805
      %v3807 = vsel %vm1115, %v3796, %v3798
      %v3808 = vsel %vm1115, %v3798, %v3800
      %v3809 = vsel %vm1115, %v3802, %v3804
      %v3810 = vsel %vm1115, %v3804, %v3806
      %3815 = vst [vmem:[#allocation3 + $0x1a0] sm:$0xff] %v3807
      %3816 = vst [vmem:[#allocation3 + $0x1a8] sm:$0xff] %v3808
      %3817 = vst [vmem:[#allocation3 + $0x1b0] sm:$0xff] %v3809
      %3818 = vst [vmem:[#allocation3 + $0x1b8] sm:$0xff] %v3810
      %v3819 = vld [vmem:[#allocation2] sm:$0xff]
      %v3820 = vld [vmem:[#allocation2 + $0x8] sm:$0xff]
      %v3821 = vld [vmem:[#allocation2 + $0x10] sm:$0xff]
      %v3822 = vld [vmem:[#allocation2 + $0x18] sm:$0xff]
      %v3823 = vld [vmem:[#allocation2 + $0x20] sm:$0xff]
      %v3824 = vld [vmem:[#allocation2 + $0x28] sm:$0xff]
      %v3825 = vmul.f32 %v3819, %v1135
      %v3826 = vmul.f32 %v3820, %v1139
      %v3827 = vmul.f32 %v3821, %v1137
      %v3828 = vmul.f32 %v3822, %v1135
      %v3829 = vmul.f32 %v3823, %v1139
      %v3830 = vmul.f32 %v3824, %v1137
      %3837 = vrot.lane.b32.xlu0 %v3825, 92
      %v3838 = vpop.permute.xlu0 %3837
      %3839 = vrot.lane.b32.xlu0 %v3826, 92
      %v3840 = vpop.permute.xlu0 %3839
      %3841 = vrot.lane.b32.xlu0 %v3827, 92
      %v3842 = vpop.permute.xlu0 %3841
      %3843 = vrot.lane.b32.xlu0 %v3828, 92
      %v3844 = vpop.permute.xlu0 %3843
      %3845 = vrot.lane.b32.xlu0 %v3829, 92
      %v3846 = vpop.permute.xlu0 %3845
      %3847 = vrot.lane.b32.xlu0 %v3830, 92
      %v3848 = vpop.permute.xlu0 %3847
      %v3849 = vsel %vm1167, %v3838, %v3840
      %v3850 = vsel %vm1167, %v3840, %v3842
      %v3851 = vsel %vm1167, %v3844, %v3846
      %v3852 = vsel %vm1167, %v3846, %v3848
      %3857 = vst [vmem:[#allocation3 + $0x1c0] sm:$0xff] %v3849
      %3858 = vst [vmem:[#allocation3 + $0x1c8] sm:$0xff] %v3850
      %3859 = vst [vmem:[#allocation3 + $0x1d0] sm:$0xff] %v3851
      %3860 = vst [vmem:[#allocation3 + $0x1d8] sm:$0xff] %v3852
      %v3861 = vld [vmem:[#allocation2] sm:$0xff]
      %v3862 = vld [vmem:[#allocation2 + $0x8] sm:$0xff]
      %v3863 = vld [vmem:[#allocation2 + $0x10] sm:$0xff]
      %v3864 = vld [vmem:[#allocation2 + $0x18] sm:$0xff]
      %v3865 = vld [vmem:[#allocation2 + $0x20] sm:$0xff]
      %v3866 = vld [vmem:[#allocation2 + $0x28] sm:$0xff]
      %v3867 = vmul.f32 %v3861, %v1187
      %v3868 = vmul.f32 %v3862, %v1191
      %v3869 = vmul.f32 %v3863, %v1189
      %v3870 = vmul.f32 %v3864, %v1187
      %v3871 = vmul.f32 %v3865, %v1191
      %v3872 = vmul.f32 %v3866, %v1189
      %3879 = vrot.lane.b32.xlu0 %v3867, 80
      %v3880 = vpop.permute.xlu0 %3879
      %3881 = vrot.lane.b32.xlu0 %v3868, 80
      %v3882 = vpop.permute.xlu0 %3881
      %3883 = vrot.lane.b32.xlu0 %v3869, 80
      %v3884 = vpop.permute.xlu0 %3883
      %3885 = vrot.lane.b32.xlu0 %v3870, 80
      %v3886 = vpop.permute.xlu0 %3885
      %3887 = vrot.lane.b32.xlu0 %v3871, 80
      %v3888 = vpop.permute.xlu0 %3887
      %3889 = vrot.lane.b32.xlu0 %v3872, 80
      %v3890 = vpop.permute.xlu0 %3889
      %v3891 = vsel %vm1219, %v3880, %v3882
      %v3892 = vsel %vm1219, %v3882, %v3884
      %v3893 = vsel %vm1219, %v3886, %v3888
      %v3894 = vsel %vm1219, %v3888, %v3890
      %3899 = vst [vmem:[#allocation3 + $0x1e0] sm:$0xff] %v3891
      %3900 = vst [vmem:[#allocation3 + $0x1e8] sm:$0xff] %v3892
      %3901 = vst [vmem:[#allocation3 + $0x1f0] sm:$0xff] %v3893
      %3902 = vst [vmem:[#allocation3 + $0x1f8] sm:$0xff] %v3894
      %v3903 = vld [vmem:[#allocation2] sm:$0xff]
      %v3904 = vld [vmem:[#allocation2 + $0x8] sm:$0xff]
      %v3905 = vld [vmem:[#allocation2 + $0x10] sm:$0xff]
      %v3906 = vld [vmem:[#allocation2 + $0x18] sm:$0xff]
      %v3907 = vld [vmem:[#allocation2 + $0x20] sm:$0xff]
      %v3908 = vld [vmem:[#allocation2 + $0x28] sm:$0xff]
      %v3909 = vmul.f32 %v3903, %v1239
      %v3910 = vmul.f32 %v3904, %v1243
      %v3911 = vmul.f32 %v3905, %v1241
      %v3912 = vmul.f32 %v3906, %v1239
      %v3913 = vmul.f32 %v3907, %v1243
      %v3914 = vmul.f32 %v3908, %v1241
      %3921 = vrot.lane.b32.xlu0 %v3909, 79
      %v3922 = vpop.permute.xlu0 %3921
      %3923 = vrot.lane.b32.xlu0 %v3910, 79
      %v3924 = vpop.permute.xlu0 %3923
      %3925 = vrot.lane.b32.xlu0 %v3911, 79
      %v3926 = vpop.permute.xlu0 %3925
      %3927 = vrot.lane.b32.xlu0 %v3912, 79
      %v3928 = vpop.permute.xlu0 %3927
      %3929 = vrot.lane.b32.xlu0 %v3913, 79
      %v3930 = vpop.permute.xlu0 %3929
      %3931 = vrot.lane.b32.xlu0 %v3914, 79
      %v3932 = vpop.permute.xlu0 %3931
      %v3933 = vsel %vm1271, %v3922, %v3924
      %v3934 = vsel %vm1271, %v3924, %v3926
      %v3935 = vsel %vm1271, %v3928, %v3930
      %v3936 = vsel %vm1271, %v3930, %v3932
      %3941 = vst [vmem:[#allocation3 + $0x200] sm:$0xff] %v3933
      %3942 = vst [vmem:[#allocation3 + $0x208] sm:$0xff] %v3934
      %3943 = vst [vmem:[#allocation3 + $0x210] sm:$0xff] %v3935
      %3944 = vst [vmem:[#allocation3 + $0x218] sm:$0xff] %v3936
      %v3945 = vld [vmem:[#allocation2] sm:$0xff]
      %v3946 = vld [vmem:[#allocation2 + $0x8] sm:$0xff]
      %v3947 = vld [vmem:[#allocation2 + $0x10] sm:$0xff]
      %v3948 = vld [vmem:[#allocation2 + $0x18] sm:$0xff]
      %v3949 = vld [vmem:[#allocation2 + $0x20] sm:$0xff]
      %v3950 = vld [vmem:[#allocation2 + $0x28] sm:$0xff]
      %3957 = vrot.lane.b32.xlu0 %v3945, 78
      %v3958 = vpop.permute.xlu0 %3957
      %3959 = vrot.lane.b32.xlu0 %v3946, 78
      %v3960 = vpop.permute.xlu0 %3959
      %3961 = vrot.lane.b32.xlu0 %v3947, 78
      %v3962 = vpop.permute.xlu0 %3961
      %3963 = vrot.lane.b32.xlu0 %v3948, 78
      %v3964 = vpop.permute.xlu0 %3963
      %3965 = vrot.lane.b32.xlu0 %v3949, 78
      %v3966 = vpop.permute.xlu0 %3965
      %3967 = vrot.lane.b32.xlu0 %v3950, 78
      %v3968 = vpop.permute.xlu0 %3967
      %v3969 = vsel %vm1308, %v3958, %v3960
      %v3970 = vsel %vm1308, %v3960, %v3962
      %v3971 = vsel %vm1308, %v3964, %v3966
      %v3972 = vsel %vm1308, %v3966, %v3968
      %3977 = vst [vmem:[#allocation3 + $0x220] sm:$0xff] %v3969
      %3978 = vst [vmem:[#allocation3 + $0x228] sm:$0xff] %v3970
      %3979 = vst [vmem:[#allocation3 + $0x230] sm:$0xff] %v3971
      %3980 = vst [vmem:[#allocation3 + $0x238] sm:$0xff] %v3972
      %v3981 = vld [vmem:[#allocation2] sm:$0xff]
      %v3982 = vld [vmem:[#allocation2 + $0x8] sm:$0xff]
      %v3983 = vld [vmem:[#allocation2 + $0x10] sm:$0xff]
      %v3984 = vld [vmem:[#allocation2 + $0x18] sm:$0xff]
      %v3985 = vld [vmem:[#allocation2 + $0x20] sm:$0xff]
      %v3986 = vld [vmem:[#allocation2 + $0x28] sm:$0xff]
      %v3987 = vmul.f32 %v3981, %v1328
      %v3988 = vmul.f32 %v3982, %v1332
      %v3989 = vmul.f32 %v3983, %v1330
      %v3990 = vmul.f32 %v3984, %v1328
      %v3991 = vmul.f32 %v3985, %v1332
      %v3992 = vmul.f32 %v3986, %v1330
      %3999 = vrot.lane.b32.xlu0 %v3987, 77
      %v4000 = vpop.permute.xlu0 %3999
      %4001 = vrot.lane.b32.xlu0 %v3988, 77
      %v4002 = vpop.permute.xlu0 %4001
      %4003 = vrot.lane.b32.xlu0 %v3989, 77
      %v4004 = vpop.permute.xlu0 %4003
      %4005 = vrot.lane.b32.xlu0 %v3990, 77
      %v4006 = vpop.permute.xlu0 %4005
      %4007 = vrot.lane.b32.xlu0 %v3991, 77
      %v4008 = vpop.permute.xlu0 %4007
      %4009 = vrot.lane.b32.xlu0 %v3992, 77
      %v4010 = vpop.permute.xlu0 %4009
      %v4011 = vsel %vm1360, %v4000, %v4002
      %v4012 = vsel %vm1360, %v4002, %v4004
      %v4013 = vsel %vm1360, %v4006, %v4008
      %v4014 = vsel %vm1360, %v4008, %v4010
      %4019 = vst [vmem:[#allocation3 + $0x240] sm:$0xff] %v4011
      %4020 = vst [vmem:[#allocation3 + $0x248] sm:$0xff] %v4012
      %4021 = vst [vmem:[#allocation3 + $0x250] sm:$0xff] %v4013
      %4022 = vst [vmem:[#allocation3 + $0x258] sm:$0xff] %v4014
      %v4023 = vld [vmem:[#allocation2] sm:$0xff]
      %v4024 = vld [vmem:[#allocation2 + $0x8] sm:$0xff]
      %v4025 = vld [vmem:[#allocation2 + $0x10] sm:$0xff]
      %v4026 = vld [vmem:[#allocation2 + $0x18] sm:$0xff]
      %v4027 = vld [vmem:[#allocation2 + $0x20] sm:$0xff]
      %v4028 = vld [vmem:[#allocation2 + $0x28] sm:$0xff]
      %v4029 = vmul.f32 %v4023, %v1380
      %v4030 = vmul.f32 %v4024, %v1384
      %v4031 = vmul.f32 %v4025, %v1382
      %v4032 = vmul.f32 %v4026, %v1380
      %v4033 = vmul.f32 %v4027, %v1384
      %v4034 = vmul.f32 %v4028, %v1382
      %4041 = vrot.lane.b32.xlu0 %v4029, 76
      %v4042 = vpop.permute.xlu0 %4041
      %4043 = vrot.lane.b32.xlu0 %v4030, 76
      %v4044 = vpop.permute.xlu0 %4043
      %4045 = vrot.lane.b32.xlu0 %v4031, 76
      %v4046 = vpop.permute.xlu0 %4045
      %4047 = vrot.lane.b32.xlu0 %v4032, 76
      %v4048 = vpop.permute.xlu0 %4047
      %4049 = vrot.lane.b32.xlu0 %v4033, 76
      %v4050 = vpop.permute.xlu0 %4049
      %4051 = vrot.lane.b32.xlu0 %v4034, 76
      %v4052 = vpop.permute.xlu0 %4051
      %v4053 = vsel %vm1412, %v4042, %v4044
      %v4054 = vsel %vm1412, %v4044, %v4046
      %v4055 = vsel %vm1412, %v4048, %v4050
      %v4056 = vsel %vm1412, %v4050, %v4052
      %4061 = vst [vmem:[#allocation3 + $0x260] sm:$0xff] %v4053
      %4062 = vst [vmem:[#allocation3 + $0x268] sm:$0xff] %v4054
      %4063 = vst [vmem:[#allocation3 + $0x270] sm:$0xff] %v4055
      %4064 = vst [vmem:[#allocation3 + $0x278] sm:$0xff] %v4056
      %v4065 = vld [vmem:[#allocation2] sm:$0xff]
      %v4066 = vld [vmem:[#allocation2 + $0x8] sm:$0xff]
      %v4067 = vld [vmem:[#allocation2 + $0x10] sm:$0xff]
      %v4068 = vld [vmem:[#allocation2 + $0x18] sm:$0xff]
      %v4069 = vld [vmem:[#allocation2 + $0x20] sm:$0xff]
      %v4070 = vld [vmem:[#allocation2 + $0x28] sm:$0xff]
      %v4071 = vmul.f32 %v4065, %v1432
      %v4072 = vmul.f32 %v4066, %v1436
      %v4073 = vmul.f32 %v4067, %v1434
      %v4074 = vmul.f32 %v4068, %v1432
      %v4075 = vmul.f32 %v4069, %v1436
      %v4076 = vmul.f32 %v4070, %v1434
      %4083 = vrot.lane.b32.xlu0 %v4071, 64
      %v4084 = vpop.permute.xlu0 %4083
      %4085 = vrot.lane.b32.xlu0 %v4072, 64
      %v4086 = vpop.permute.xlu0 %4085
      %4087 = vrot.lane.b32.xlu0 %v4073, 64
      %v4088 = vpop.permute.xlu0 %4087
      %4089 = vrot.lane.b32.xlu0 %v4074, 64
      %v4090 = vpop.permute.xlu0 %4089
      %4091 = vrot.lane.b32.xlu0 %v4075, 64
      %v4092 = vpop.permute.xlu0 %4091
      %4093 = vrot.lane.b32.xlu0 %v4076, 64
      %v4094 = vpop.permute.xlu0 %4093
      %v4095 = vsel %vm1435, %v4084, %v4086
      %v4096 = vsel %vm1435, %v4086, %v4088
      %v4097 = vsel %vm1435, %v4090, %v4092
      %v4098 = vsel %vm1435, %v4092, %v4094
      %4103 = vst [vmem:[#allocation3 + $0x280] sm:$0xff] %v4095
      %4104 = vst [vmem:[#allocation3 + $0x288] sm:$0xff] %v4096
      %4105 = vst [vmem:[#allocation3 + $0x290] sm:$0xff] %v4097
      %4106 = vst [vmem:[#allocation3 + $0x298] sm:$0xff] %v4098
      %v4107 = vld [vmem:[#allocation2] sm:$0xff]
      %v4108 = vld [vmem:[#allocation2 + $0x8] sm:$0xff]
      %v4109 = vld [vmem:[#allocation2 + $0x10] sm:$0xff]
      %v4110 = vld [vmem:[#allocation2 + $0x18] sm:$0xff]
      %v4111 = vld [vmem:[#allocation2 + $0x20] sm:$0xff]
      %v4112 = vld [vmem:[#allocation2 + $0x28] sm:$0xff]
      %v4113 = vmul.f32 %v4107, %v1483
      %v4114 = vmul.f32 %v4108, %v1487
      %v4115 = vmul.f32 %v4109, %v1485
      %v4116 = vmul.f32 %v4110, %v1483
      %v4117 = vmul.f32 %v4111, %v1487
      %v4118 = vmul.f32 %v4112, %v1485
      %4125 = vrot.lane.b32.xlu0 %v4113, 63
      %v4126 = vpop.permute.xlu0 %4125
      %4127 = vrot.lane.b32.xlu0 %v4114, 63
      %v4128 = vpop.permute.xlu0 %4127
      %4129 = vrot.lane.b32.xlu0 %v4115, 63
      %v4130 = vpop.permute.xlu0 %4129
      %4131 = vrot.lane.b32.xlu0 %v4116, 63
      %v4132 = vpop.permute.xlu0 %4131
      %4133 = vrot.lane.b32.xlu0 %v4117, 63
      %v4134 = vpop.permute.xlu0 %4133
      %4135 = vrot.lane.b32.xlu0 %v4118, 63
      %v4136 = vpop.permute.xlu0 %4135
      %v4137 = vsel %vm1515, %v4126, %v4128
      %v4138 = vsel %vm1515, %v4128, %v4130
      %v4139 = vsel %vm1515, %v4132, %v4134
      %v4140 = vsel %vm1515, %v4134, %v4136
      %4145 = vst [vmem:[#allocation3 + $0x2a0] sm:$0xff] %v4137
      %4146 = vst [vmem:[#allocation3 + $0x2a8] sm:$0xff] %v4138
      %4147 = vst [vmem:[#allocation3 + $0x2b0] sm:$0xff] %v4139
      %4148 = vst [vmem:[#allocation3 + $0x2b8] sm:$0xff] %v4140
      %v4149 = vld [vmem:[#allocation2] sm:$0xff]
      %v4150 = vld [vmem:[#allocation2 + $0x8] sm:$0xff]
      %v4151 = vld [vmem:[#allocation2 + $0x10] sm:$0xff]
      %v4152 = vld [vmem:[#allocation2 + $0x18] sm:$0xff]
      %v4153 = vld [vmem:[#allocation2 + $0x20] sm:$0xff]
      %v4154 = vld [vmem:[#allocation2 + $0x28] sm:$0xff]
      %4161 = vrot.lane.b32.xlu0 %v4149, 62
      %v4162 = vpop.permute.xlu0 %4161
      %4163 = vrot.lane.b32.xlu0 %v4150, 62
      %v4164 = vpop.permute.xlu0 %4163
      %4165 = vrot.lane.b32.xlu0 %v4151, 62
      %v4166 = vpop.permute.xlu0 %4165
      %4167 = vrot.lane.b32.xlu0 %v4152, 62
      %v4168 = vpop.permute.xlu0 %4167
      %4169 = vrot.lane.b32.xlu0 %v4153, 62
      %v4170 = vpop.permute.xlu0 %4169
      %4171 = vrot.lane.b32.xlu0 %v4154, 62
      %v4172 = vpop.permute.xlu0 %4171
      %v4173 = vsel %vm1552, %v4162, %v4164
      %v4174 = vsel %vm1552, %v4164, %v4166
      %v4175 = vsel %vm1552, %v4168, %v4170
      %v4176 = vsel %vm1552, %v4170, %v4172
      %4181 = vst [vmem:[#allocation3 + $0x2c0] sm:$0xff] %v4173
      %4182 = vst [vmem:[#allocation3 + $0x2c8] sm:$0xff] %v4174
      %4183 = vst [vmem:[#allocation3 + $0x2d0] sm:$0xff] %v4175
      %4184 = vst [vmem:[#allocation3 + $0x2d8] sm:$0xff] %v4176
      %v4185 = vld [vmem:[#allocation2] sm:$0xff]
      %v4186 = vld [vmem:[#allocation2 + $0x8] sm:$0xff]
      %v4187 = vld [vmem:[#allocation2 + $0x10] sm:$0xff]
      %v4188 = vld [vmem:[#allocation2 + $0x18] sm:$0xff]
      %v4189 = vld [vmem:[#allocation2 + $0x20] sm:$0xff]
      %v4190 = vld [vmem:[#allocation2 + $0x28] sm:$0xff]
      %v4191 = vmul.f32 %v4185, %v1572
      %v4192 = vmul.f32 %v4186, %v1576
      %v4193 = vmul.f32 %v4187, %v1574
      %v4194 = vmul.f32 %v4188, %v1572
      %v4195 = vmul.f32 %v4189, %v1576
      %v4196 = vmul.f32 %v4190, %v1574
      %4203 = vrot.lane.b32.xlu0 %v4191, 61
      %v4204 = vpop.permute.xlu0 %4203
      %4205 = vrot.lane.b32.xlu0 %v4192, 61
      %v4206 = vpop.permute.xlu0 %4205
      %4207 = vrot.lane.b32.xlu0 %v4193, 61
      %v4208 = vpop.permute.xlu0 %4207
      %4209 = vrot.lane.b32.xlu0 %v4194, 61
      %v4210 = vpop.permute.xlu0 %4209
      %4211 = vrot.lane.b32.xlu0 %v4195, 61
      %v4212 = vpop.permute.xlu0 %4211
      %4213 = vrot.lane.b32.xlu0 %v4196, 61
      %v4214 = vpop.permute.xlu0 %4213
      %v4215 = vsel %vm1604, %v4204, %v4206
      %v4216 = vsel %vm1604, %v4206, %v4208
      %v4217 = vsel %vm1604, %v4210, %v4212
      %v4218 = vsel %vm1604, %v4212, %v4214
      %4223 = vst [vmem:[#allocation3 + $0x2e0] sm:$0xff] %v4215
      %4224 = vst [vmem:[#allocation3 + $0x2e8] sm:$0xff] %v4216
      %4225 = vst [vmem:[#allocation3 + $0x2f0] sm:$0xff] %v4217
      %4226 = vst [vmem:[#allocation3 + $0x2f8] sm:$0xff] %v4218
      %v4227 = vld [vmem:[#allocation2] sm:$0xff]
      %v4228 = vld [vmem:[#allocation2 + $0x8] sm:$0xff]
      %v4229 = vld [vmem:[#allocation2 + $0x10] sm:$0xff]
      %v4230 = vld [vmem:[#allocation2 + $0x18] sm:$0xff]
      %v4231 = vld [vmem:[#allocation2 + $0x20] sm:$0xff]
      %v4232 = vld [vmem:[#allocation2 + $0x28] sm:$0xff]
      %v4233 = vmul.f32 %v4227, %v1624
      %v4234 = vmul.f32 %v4228, %v1628
      %v4235 = vmul.f32 %v4229, %v1626
      %v4236 = vmul.f32 %v4230, %v1624
      %v4237 = vmul.f32 %v4231, %v1628
      %v4238 = vmul.f32 %v4232, %v1626
      %4245 = vrot.lane.b32.xlu0 %v4233, 60
      %v4246 = vpop.permute.xlu0 %4245
      %4247 = vrot.lane.b32.xlu0 %v4234, 60
      %v4248 = vpop.permute.xlu0 %4247
      %4249 = vrot.lane.b32.xlu0 %v4235, 60
      %v4250 = vpop.permute.xlu0 %4249
      %4251 = vrot.lane.b32.xlu0 %v4236, 60
      %v4252 = vpop.permute.xlu0 %4251
      %4253 = vrot.lane.b32.xlu0 %v4237, 60
      %v4254 = vpop.permute.xlu0 %4253
      %4255 = vrot.lane.b32.xlu0 %v4238, 60
      %v4256 = vpop.permute.xlu0 %4255
      %v4257 = vsel %vm1656, %v4246, %v4248
      %v4258 = vsel %vm1656, %v4248, %v4250
      %v4259 = vsel %vm1656, %v4252, %v4254
      %v4260 = vsel %vm1656, %v4254, %v4256
      %4265 = vst [vmem:[#allocation3 + $0x300] sm:$0xff] %v4257
      %4266 = vst [vmem:[#allocation3 + $0x308] sm:$0xff] %v4258
      %4267 = vst [vmem:[#allocation3 + $0x310] sm:$0xff] %v4259
      %4268 = vst [vmem:[#allocation3 + $0x318] sm:$0xff] %v4260
      %v4269 = vld [vmem:[%s7] sm:$0xff]
      %v4270 = vld [vmem:[%s7 + $0x8] sm:$0xff]
      %v4271 = vld [vmem:[%s7 + $0x10] sm:$0xff]
      %v4272 = vld [vmem:[%s7 + $0x18] sm:$0xff]
      %v4273 = vld [vmem:[%s7 + $0x20] sm:$0xff]
      %v4274 = vld [vmem:[%s7 + $0x28] sm:$0xff]
      %v4275 = vld [vmem:[%s7 + $0x30] sm:$0xff]
      %v4276 = vld [vmem:[%s7 + $0x38] sm:$0xff]
      %v4277 = vld [vmem:[#allocation3] sm:$0xff]
      %v4278 = vld [vmem:[#allocation3 + $0x8] sm:$0xff]
      %v4279 = vld [vmem:[#allocation3 + $0x10] sm:$0xff]
      %v4280 = vld [vmem:[#allocation3 + $0x18] sm:$0xff]
      %v4281 = vld [vmem:[#allocation3 + $0x20] sm:$0xff]
      %v4282 = vld [vmem:[#allocation3 + $0x28] sm:$0xff]
      %v4283 = vld [vmem:[#allocation3 + $0x30] sm:$0xff]
      %v4284 = vld [vmem:[#allocation3 + $0x38] sm:$0xff]
      %v4285 = vld [vmem:[#allocation3 + $0x40] sm:$0xff]
      %v4286 = vld [vmem:[#allocation3 + $0x48] sm:$0xff]
      %v4287 = vld [vmem:[#allocation3 + $0x50] sm:$0xff]
      %v4288 = vld [vmem:[#allocation3 + $0x58] sm:$0xff]
      %v4289 = vld [vmem:[#allocation3 + $0x60] sm:$0xff]
      %v4290 = vld [vmem:[#allocation3 + $0x68] sm:$0xff]
      %v4291 = vld [vmem:[#allocation3 + $0x70] sm:$0xff]
      %v4292 = vld [vmem:[#allocation3 + $0x78] sm:$0xff]
      %v4293 = vld [vmem:[#allocation3 + $0x80] sm:$0xff]
      %v4294 = vld [vmem:[#allocation3 + $0x88] sm:$0xff]
      %v4295 = vld [vmem:[#allocation3 + $0x90] sm:$0xff]
      %v4296 = vld [vmem:[#allocation3 + $0x98] sm:$0xff]
      %v4297 = vld [vmem:[#allocation3 + $0xa0] sm:$0xff]
      %v4298 = vld [vmem:[#allocation3 + $0xa8] sm:$0xff]
      %v4299 = vld [vmem:[#allocation3 + $0xb0] sm:$0xff]
      %v4300 = vld [vmem:[#allocation3 + $0xb8] sm:$0xff]
      %v4301 = vld [vmem:[#allocation3 + $0xc0] sm:$0xff]
      %v4302 = vld [vmem:[#allocation3 + $0xc8] sm:$0xff]
      %v4303 = vld [vmem:[#allocation3 + $0xd0] sm:$0xff]
      %v4304 = vld [vmem:[#allocation3 + $0xd8] sm:$0xff]
      %v4305 = vld [vmem:[#allocation3 + $0xe0] sm:$0xff]
      %v4306 = vld [vmem:[#allocation3 + $0xe8] sm:$0xff]
      %v4307 = vld [vmem:[#allocation3 + $0xf0] sm:$0xff]
      %v4308 = vld [vmem:[#allocation3 + $0xf8] sm:$0xff]
      %v4309 = vld [vmem:[#allocation3 + $0x100] sm:$0xff]
      %v4310 = vld [vmem:[#allocation3 + $0x108] sm:$0xff]
      %v4311 = vld [vmem:[#allocation3 + $0x110] sm:$0xff]
      %v4312 = vld [vmem:[#allocation3 + $0x118] sm:$0xff]
      %v4313 = vld [vmem:[#allocation3 + $0x120] sm:$0xff]
      %v4314 = vld [vmem:[#allocation3 + $0x128] sm:$0xff]
      %v4315 = vld [vmem:[#allocation3 + $0x130] sm:$0xff]
      %v4316 = vld [vmem:[#allocation3 + $0x138] sm:$0xff]
      %v4317 = vld [vmem:[#allocation3 + $0x140] sm:$0xff]
      %v4318 = vld [vmem:[#allocation3 + $0x148] sm:$0xff]
      %v4319 = vld [vmem:[#allocation3 + $0x150] sm:$0xff]
      %v4320 = vld [vmem:[#allocation3 + $0x158] sm:$0xff]
      %v4321 = vld [vmem:[#allocation3 + $0x160] sm:$0xff]
      %v4322 = vld [vmem:[#allocation3 + $0x168] sm:$0xff]
      %v4323 = vld [vmem:[#allocation3 + $0x170] sm:$0xff]
      %v4324 = vld [vmem:[#allocation3 + $0x178] sm:$0xff]
      %v4325 = vld [vmem:[#allocation3 + $0x180] sm:$0xff]
      %v4326 = vld [vmem:[#allocation3 + $0x188] sm:$0xff]
      %v4327 = vld [vmem:[#allocation3 + $0x190] sm:$0xff]
      %v4328 = vld [vmem:[#allocation3 + $0x198] sm:$0xff]
      %v4329 = vld [vmem:[#allocation3 + $0x1a0] sm:$0xff]
      %v4330 = vld [vmem:[#allocation3 + $0x1a8] sm:$0xff]
      %v4331 = vld [vmem:[#allocation3 + $0x1b0] sm:$0xff]
      %v4332 = vld [vmem:[#allocation3 + $0x1b8] sm:$0xff]
      %v4333 = vld [vmem:[#allocation3 + $0x1c0] sm:$0xff]
      %v4334 = vld [vmem:[#allocation3 + $0x1c8] sm:$0xff]
      %v4335 = vld [vmem:[#allocation3 + $0x1d0] sm:$0xff]
      %v4336 = vld [vmem:[#allocation3 + $0x1d8] sm:$0xff]
      %v4337 = vld [vmem:[#allocation3 + $0x1e0] sm:$0xff]
      %v4338 = vld [vmem:[#allocation3 + $0x1e8] sm:$0xff]
      %v4339 = vld [vmem:[#allocation3 + $0x1f0] sm:$0xff]
      %v4340 = vld [vmem:[#allocation3 + $0x1f8] sm:$0xff]
      %v4341 = vld [vmem:[#allocation3 + $0x200] sm:$0xff]
      %v4342 = vld [vmem:[#allocation3 + $0x208] sm:$0xff]
      %v4343 = vld [vmem:[#allocation3 + $0x210] sm:$0xff]
      %v4344 = vld [vmem:[#allocation3 + $0x218] sm:$0xff]
      %v4345 = vld [vmem:[#allocation3 + $0x220] sm:$0xff]
      %v4346 = vld [vmem:[#allocation3 + $0x228] sm:$0xff]
      %v4347 = vld [vmem:[#allocation3 + $0x230] sm:$0xff]
      %v4348 = vld [vmem:[#allocation3 + $0x238] sm:$0xff]
      %v4349 = vld [vmem:[#allocation3 + $0x240] sm:$0xff]
      %v4350 = vld [vmem:[#allocation3 + $0x248] sm:$0xff]
      %v4351 = vld [vmem:[#allocation3 + $0x250] sm:$0xff]
      %v4352 = vld [vmem:[#allocation3 + $0x258] sm:$0xff]
      %v4353 = vld [vmem:[#allocation3 + $0x260] sm:$0xff]
      %v4354 = vld [vmem:[#allocation3 + $0x268] sm:$0xff]
      %v4355 = vld [vmem:[#allocation3 + $0x270] sm:$0xff]
      %v4356 = vld [vmem:[#allocation3 + $0x278] sm:$0xff]
      %v4357 = vld [vmem:[#allocation3 + $0x280] sm:$0xff]
      %v4358 = vld [vmem:[#allocation3 + $0x288] sm:$0xff]
      %v4359 = vld [vmem:[#allocation3 + $0x290] sm:$0xff]
      %v4360 = vld [vmem:[#allocation3 + $0x298] sm:$0xff]
      %v4361 = vld [vmem:[#allocation3 + $0x2a0] sm:$0xff]
      %v4362 = vld [vmem:[#allocation3 + $0x2a8] sm:$0xff]
      %v4363 = vld [vmem:[#allocation3 + $0x2b0] sm:$0xff]
      %v4364 = vld [vmem:[#allocation3 + $0x2b8] sm:$0xff]
      %v4365 = vld [vmem:[#allocation3 + $0x2c0] sm:$0xff]
      %v4366 = vld [vmem:[#allocation3 + $0x2c8] sm:$0xff]
      %v4367 = vld [vmem:[#allocation3 + $0x2d0] sm:$0xff]
      %v4368 = vld [vmem:[#allocation3 + $0x2d8] sm:$0xff]
      %v4369 = vld [vmem:[#allocation3 + $0x2e0] sm:$0xff]
      %v4370 = vld [vmem:[#allocation3 + $0x2e8] sm:$0xff]
      %v4371 = vld [vmem:[#allocation3 + $0x2f0] sm:$0xff]
      %v4372 = vld [vmem:[#allocation3 + $0x2f8] sm:$0xff]
      %v4373 = vld [vmem:[#allocation3 + $0x300] sm:$0xff]
      %v4374 = vld [vmem:[#allocation3 + $0x308] sm:$0xff]
      %v4375 = vld [vmem:[#allocation3 + $0x310] sm:$0xff]
      %v4376 = vld [vmem:[#allocation3 + $0x318] sm:$0xff]
      %v4377 = vld [vmem:[%s8] sm:$0xff]
      %v4378 = vld [vmem:[%s8 + $0x8] sm:$0xff]
      %4380 = vset.pattern.permute.xlu0 0
      %4381 = vperm.xlu0 %4380, %v4377
      %v4382 = vpop.permute.xlu0 %4381
      %4385 = vset.pattern.permute.xlu0 0
      %4386 = vperm.xlu0 %4385, %v4378
      %v4387 = vpop.permute.xlu0 %4386
      %v4390 = vsel %vm700, %v4272, 0
      %v4393 = vsel %vm700, %v4276, 0
      %4395 = vmatprep.subr.mxu0 %v4278
      %4396 = vmatpush1.msra.mxu0 %v4277
      %4397 = vmatprep.subr.mxu0 %v4280
      %4398 = vmatpush1.msra.mxu0 %v4279
      %4399 = vmatprep.subr.mxu0 %v4282
      %4400 = vmatpush1.msra.mxu0 %v4281
      %4401 = vmatprep.subr.mxu0 %v4284
      %4402 = vmatpush1.msra.mxu0 %v4283
      %4403 = vmatprep.subr.mxu0 %v4286
      %4404 = vmatpush1.msra.mxu0 %v4285
      %4405 = vmatprep.subr.mxu0 %v4288
      %4406 = vmatpush1.msra.mxu0 %v4287
      %4407 = vmatprep.subr.mxu0 %v4290
      %4408 = vmatpush1.msra.mxu0 %v4289
      %4409 = vmatprep.subr.mxu0 %v4292
      %4410 = vmatpush1.msra.mxu0 %v4291
      %4411 = vmatprep.subr.mxu0 %v4294
      %4412 = vmatpush1.msra.mxu0 %v4293
      %4413 = vmatprep.subr.mxu0 %v4296
      %4414 = vmatpush1.msra.mxu0 %v4295
      %4415 = vmatprep.subr.mxu0 %v4298
      %4416 = vmatpush1.msra.mxu0 %v4297
      %4417 = vmatprep.subr.mxu0 %v4300
      %4418 = vmatpush1.msra.mxu0 %v4299
      %4419 = vmatprep.subr.mxu0 %v4302
      %4420 = vmatpush1.msra.mxu0 %v4301
      %4421 = vmatprep.subr.mxu0 %v4304
      %4422 = vmatpush1.msra.mxu0 %v4303
      %4423 = vmatprep.subr.mxu0 %v4306
      %4424 = vmatpush1.msra.mxu0 %v4305
      %4425 = vmatprep.subr.mxu0 %v4308
      %4426 = vmatpush1.msra.mxu0 %v4307
      %4427 = vmatprep.subr.mxu0 %v4310
      %4428 = vmatpush1.msra.mxu0 %v4309
      %4429 = vmatprep.subr.mxu0 %v4312
      %4430 = vmatpush1.msra.mxu0 %v4311
      %4431 = vmatprep.subr.mxu0 %v4314
      %4432 = vmatpush1.msra.mxu0 %v4313
      %4433 = vmatprep.subr.mxu0 %v4316
      %4434 = vmatpush1.msra.mxu0 %v4315
      %4435 = vmatprep.subr.mxu0 %v4318
      %4436 = vmatpush1.msra.mxu0 %v4317
      %4437 = vmatprep.subr.mxu0 %v4320
      %4438 = vmatpush1.msra.mxu0 %v4319
      %4439 = vmatprep.subr.mxu0 %v4322
      %4440 = vmatpush1.msra.mxu0 %v4321
      %4441 = vmatprep.subr.mxu0 %v4324
      %4442 = vmatpush1.msra.mxu0 %v4323
      %4443 = vmatprep.subr.mxu0 %v4326
      %4444 = vmatpush1.msra.mxu0 %v4325
      %4445 = vmatprep.subr.mxu0 %v4328
      %4446 = vmatpush1.msra.mxu0 %v4327
      %4447 = vmatprep.subr.mxu0 %v4330
      %4448 = vmatpush1.msra.mxu0 %v4329
      %4449 = vmatprep.subr.mxu0 %v4332
      %4450 = vmatpush1.msra.mxu0 %v4331
      %4451 = vmatprep.subr.mxu0 %v4334
      %4452 = vmatpush1.msra.mxu0 %v4333
      %4453 = vmatprep.subr.mxu0 %v4336
      %4454 = vmatpush1.msra.mxu0 %v4335
      %4455 = vmatprep.subr.mxu0 %v4338
      %4456 = vmatpush1.msra.mxu0 %v4337
      %4457 = vmatprep.subr.mxu0 %v4340
      %4458 = vmatpush1.msra.mxu0 %v4339
      %4459 = vmatprep.mubr.f32.mxu0 %v4270
      %4460 = vmatmul.mubr.f32.gmra.mrb[0].mxu0 %v4269
      %v4461 = vpop.f32.mrb[0].mxu0
      %v4462 = vadd.f32 %v4382, %v4461
      %v4463 = vpop.f32.mrb[0].mxu0
      %v4464 = vadd.f32 %v4382, %v4463
      %4465 = vmatprep.mubr.f32.mxu0 %v4274
      %4466 = vmatmul.mubr.f32.gmra.mrb[0].mxu0 %v4273
      %v4467 = vpop.f32.mrb[0].mxu0
      %v4468 = vadd.f32 %v4387, %v4467
      %v4469 = vpop.f32.mrb[0].mxu0
      %v4470 = vadd.f32 %v4387, %v4469
      %4471 = vdwg.mxu0
      %4472 = vmatprep.subr.mxu0 %v4342
      %4473 = vmatpush1.msra.mxu0 %v4341
      %4474 = vmatprep.subr.mxu0 %v4344
      %4475 = vmatpush1.msra.mxu0 %v4343
      %4476 = vmatprep.subr.mxu0 %v4346
      %4477 = vmatpush1.msra.mxu0 %v4345
      %4478 = vmatprep.subr.mxu0 %v4348
      %4479 = vmatpush1.msra.mxu0 %v4347
      %4480 = vmatprep.subr.mxu0 %v4350
      %4481 = vmatpush1.msra.mxu0 %v4349
      %4482 = vmatprep.subr.mxu0 %v4352
      %4483 = vmatpush1.msra.mxu0 %v4351
      %4484 = vmatprep.subr.mxu0 %v4354
      %4485 = vmatpush1.msra.mxu0 %v4353
      %4486 = vmatprep.subr.mxu0 %v4356
      %4487 = vmatpush1.msra.mxu0 %v4355
      %4488 = vmatprep.subr.mxu0 %v4358
      %4489 = vmatpush1.msra.mxu0 %v4357
      %4490 = vmatprep.subr.mxu0 %v4360
      %4491 = vmatpush1.msra.mxu0 %v4359
      %4492 = vmatprep.subr.mxu0 %v4362
      %4493 = vmatpush1.msra.mxu0 %v4361
      %4494 = vmatprep.subr.mxu0 %v4364
      %4495 = vmatpush1.msra.mxu0 %v4363
      %4496 = vmatprep.subr.mxu0 %v4366
      %4497 = vmatpush1.msra.mxu0 %v4365
      %4498 = vmatprep.subr.mxu0 %v4368
      %4499 = vmatpush1.msra.mxu0 %v4367
      %4500 = vmatprep.subr.mxu0 %v4370
      %4501 = vmatpush1.msra.mxu0 %v4369
      %4502 = vmatprep.subr.mxu0 %v4372
      %4503 = vmatpush1.msra.mxu0 %v4371
      %4504 = vmatprep.subr.mxu0 %v4374
      %4505 = vmatpush1.msra.mxu0 %v4373
      %4506 = vmatprep.subr.mxu0 %v4376
      %4507 = vmatpush1.msra.mxu0 %v4375
      %4508 = vmatprep.subr.mxu0 0.0
      %4509 = vmatpush1.msra.mxu0 0.0
      %4510 = vmatprep.subr.mxu0 0.0
      %4511 = vmatpush1.msra.mxu0 0.0
      %4512 = vmatprep.subr.mxu0 0.0
      %4513 = vmatpush1.msra.mxu0 0.0
      %4514 = vmatprep.subr.mxu0 0.0
      %4515 = vmatpush1.msra.mxu0 0.0
      %4516 = vmatprep.subr.mxu0 0.0
      %4517 = vmatpush1.msra.mxu0 0.0
      %4518 = vmatprep.subr.mxu0 0.0
      %4519 = vmatpush1.msra.mxu0 0.0
      %4520 = vmatprep.subr.mxu0 0.0
      %4521 = vmatpush1.msra.mxu0 0.0
      %4522 = vmatprep.subr.mxu0 0.0
      %4523 = vmatpush1.msra.mxu0 0.0
      %4524 = vmatprep.subr.mxu0 0.0
      %4525 = vmatpush1.msra.mxu0 0.0
      %4526 = vmatprep.subr.mxu0 0.0
      %4527 = vmatpush1.msra.mxu0 0.0
      %4528 = vmatprep.subr.mxu0 0.0
      %4529 = vmatpush1.msra.mxu0 0.0
      %4530 = vmatprep.subr.mxu0 0.0
      %4531 = vmatpush1.msra.mxu0 0.0
      %4532 = vmatprep.subr.mxu0 0.0
      %4533 = vmatpush1.msra.mxu0 0.0
      %4534 = vmatprep.subr.mxu0 0.0
      %4535 = vmatpush1.msra.mxu0 0.0
      %4536 = vmatprep.mubr.f32.mxu0 %v4390
      %4537 = vmatmul.mubr.f32.gmra.mrb[0].mxu0 %v4271
      %v4538 = vpop.f32.mrb[0].mxu0
      %v4539 = vadd.f32 %v4462, %v4538
      %v4540 = vpop.f32.mrb[0].mxu0
      %v4541 = vadd.f32 %v4464, %v4540
      %4542 = vmatprep.mubr.f32.mxu0 %v4393
      %4543 = vmatmul.mubr.f32.gmra.mrb[0].mxu0 %v4275
      %v4544 = vpop.f32.mrb[0].mxu0
      %v4545 = vadd.f32 %v4468, %v4544
      %v4546 = vpop.f32.mrb[0].mxu0
      %v4547 = vadd.f32 %v4470, %v4546
      %4548 = vdwg.mxu0
      %v4549 = vmax.f32 %v4539, 0.0
      %v4550 = vmax.f32 %v4541, 0.0
      %v4551 = vmax.f32 %v4545, 0.0
      %v4552 = vmax.f32 %v4547, 0.0
      %4557 = vrot.lane.b32.xlu0 %v4549, 34
      %v4558 = vpop.permute.xlu0 %4557
      %4559 = vrot.lane.b32.xlu0 %v4550, 34
      %v4560 = vpop.permute.xlu0 %4559
      %4561 = vrot.lane.b32.xlu0 %v4551, 34
      %v4562 = vpop.permute.xlu0 %4561
      %4563 = vrot.lane.b32.xlu0 %v4552, 34
      %v4564 = vpop.permute.xlu0 %4563
      %v4565 = vsel %vm387, %v4558, %v4560
      %v4566 = vsel %vm387, %v4562, %v4564
      %4573 = vst.msk [vmem:[#allocation2] sm:$0xff] %vm440, %v4558
      %4574 = vst [vmem:[#allocation2 + $0x8] sm:$0xff] %v4565
      %4575 = vst.msk [vmem:[#allocation2 + $0x10] sm:$0xff] %vm387, %v4560
      %4576 = vst.msk [vmem:[#allocation2 + $0x18] sm:$0xff] %vm440, %v4562
      %4577 = vst [vmem:[#allocation2 + $0x20] sm:$0xff] %v4566
      %4578 = vst.msk [vmem:[#allocation2 + $0x28] sm:$0xff] %vm387, %v4564
      %v4579 = vld [vmem:[#allocation2] sm:$0xff]
      %v4580 = vld [vmem:[#allocation2 + $0x8] sm:$0xff]
      %v4581 = vld [vmem:[#allocation2 + $0x10] sm:$0xff]
      %v4582 = vld [vmem:[#allocation2 + $0x18] sm:$0xff]
      %v4583 = vld [vmem:[#allocation2 + $0x20] sm:$0xff]
      %v4584 = vld [vmem:[#allocation2 + $0x28] sm:$0xff]
      %v4585 = vmul.f32 %v4579, %v749
      %v4586 = vmul.f32 %v4580, %v753
      %v4587 = vmul.f32 %v4581, %v751
      %v4588 = vmul.f32 %v4582, %v749
      %v4589 = vmul.f32 %v4583, %v753
      %v4590 = vmul.f32 %v4584, %v751
      %4597 = vrot.lane.b32.xlu0 %v4585, 111
      %v4598 = vpop.permute.xlu0 %4597
      %4599 = vrot.lane.b32.xlu0 %v4586, 111
      %v4600 = vpop.permute.xlu0 %4599
      %4601 = vrot.lane.b32.xlu0 %v4587, 111
      %v4602 = vpop.permute.xlu0 %4601
      %4603 = vrot.lane.b32.xlu0 %v4588, 111
      %v4604 = vpop.permute.xlu0 %4603
      %4605 = vrot.lane.b32.xlu0 %v4589, 111
      %v4606 = vpop.permute.xlu0 %4605
      %4607 = vrot.lane.b32.xlu0 %v4590, 111
      %v4608 = vpop.permute.xlu0 %4607
      %v4609 = vsel %vm781, %v4598, %v4600
      %v4610 = vsel %vm781, %v4600, %v4602
      %v4611 = vsel %vm781, %v4604, %v4606
      %v4612 = vsel %vm781, %v4606, %v4608
      %4617 = vst [vmem:[#allocation3] sm:$0xff] %v4609
      %4618 = vst [vmem:[#allocation3 + $0x8] sm:$0xff] %v4610
      %4619 = vst [vmem:[#allocation3 + $0x10] sm:$0xff] %v4611
      %4620 = vst [vmem:[#allocation3 + $0x18] sm:$0xff] %v4612
      %v4621 = vld [vmem:[#allocation2] sm:$0xff]
      %v4622 = vld [vmem:[#allocation2 + $0x8] sm:$0xff]
      %v4623 = vld [vmem:[#allocation2 + $0x10] sm:$0xff]
      %v4624 = vld [vmem:[#allocation2 + $0x18] sm:$0xff]
      %v4625 = vld [vmem:[#allocation2 + $0x20] sm:$0xff]
      %v4626 = vld [vmem:[#allocation2 + $0x28] sm:$0xff]
      %4633 = vrot.lane.b32.xlu0 %v4621, 110
      %v4634 = vpop.permute.xlu0 %4633
      %4635 = vrot.lane.b32.xlu0 %v4622, 110
      %v4636 = vpop.permute.xlu0 %4635
      %4637 = vrot.lane.b32.xlu0 %v4623, 110
      %v4638 = vpop.permute.xlu0 %4637
      %4639 = vrot.lane.b32.xlu0 %v4624, 110
      %v4640 = vpop.permute.xlu0 %4639
      %4641 = vrot.lane.b32.xlu0 %v4625, 110
      %v4642 = vpop.permute.xlu0 %4641
      %4643 = vrot.lane.b32.xlu0 %v4626, 110
      %v4644 = vpop.permute.xlu0 %4643
      %v4645 = vsel %vm818, %v4634, %v4636
      %v4646 = vsel %vm818, %v4636, %v4638
      %v4647 = vsel %vm818, %v4640, %v4642
      %v4648 = vsel %vm818, %v4642, %v4644
      %4653 = vst [vmem:[#allocation3 + $0x20] sm:$0xff] %v4645
      %4654 = vst [vmem:[#allocation3 + $0x28] sm:$0xff] %v4646
      %4655 = vst [vmem:[#allocation3 + $0x30] sm:$0xff] %v4647
      %4656 = vst [vmem:[#allocation3 + $0x38] sm:$0xff] %v4648
      %v4657 = vld [vmem:[#allocation2] sm:$0xff]
      %v4658 = vld [vmem:[#allocation2 + $0x8] sm:$0xff]
      %v4659 = vld [vmem:[#allocation2 + $0x10] sm:$0xff]
      %v4660 = vld [vmem:[#allocation2 + $0x18] sm:$0xff]
      %v4661 = vld [vmem:[#allocation2 + $0x20] sm:$0xff]
      %v4662 = vld [vmem:[#allocation2 + $0x28] sm:$0xff]
      %v4663 = vmul.f32 %v4657, %v838
      %v4664 = vmul.f32 %v4658, %v842
      %v4665 = vmul.f32 %v4659, %v840
      %v4666 = vmul.f32 %v4660, %v838
      %v4667 = vmul.f32 %v4661, %v842
      %v4668 = vmul.f32 %v4662, %v840
      %4675 = vrot.lane.b32.xlu0 %v4663, 109
      %v4676 = vpop.permute.xlu0 %4675
      %4677 = vrot.lane.b32.xlu0 %v4664, 109
      %v4678 = vpop.permute.xlu0 %4677
      %4679 = vrot.lane.b32.xlu0 %v4665, 109
      %v4680 = vpop.permute.xlu0 %4679
      %4681 = vrot.lane.b32.xlu0 %v4666, 109
      %v4682 = vpop.permute.xlu0 %4681
      %4683 = vrot.lane.b32.xlu0 %v4667, 109
      %v4684 = vpop.permute.xlu0 %4683
      %4685 = vrot.lane.b32.xlu0 %v4668, 109
      %v4686 = vpop.permute.xlu0 %4685
      %v4687 = vsel %vm870, %v4676, %v4678
      %v4688 = vsel %vm870, %v4678, %v4680
      %v4689 = vsel %vm870, %v4682, %v4684
      %v4690 = vsel %vm870, %v4684, %v4686
      %4695 = vst [vmem:[#allocation3 + $0x40] sm:$0xff] %v4687
      %4696 = vst [vmem:[#allocation3 + $0x48] sm:$0xff] %v4688
      %4697 = vst [vmem:[#allocation3 + $0x50] sm:$0xff] %v4689
      %4698 = vst [vmem:[#allocation3 + $0x58] sm:$0xff] %v4690
      %v4699 = vld [vmem:[#allocation2] sm:$0xff]
      %v4700 = vld [vmem:[#allocation2 + $0x8] sm:$0xff]
      %v4701 = vld [vmem:[#allocation2 + $0x10] sm:$0xff]
      %v4702 = vld [vmem:[#allocation2 + $0x18] sm:$0xff]
      %v4703 = vld [vmem:[#allocation2 + $0x20] sm:$0xff]
      %v4704 = vld [vmem:[#allocation2 + $0x28] sm:$0xff]
      %v4705 = vmul.f32 %v4699, %v994
      %v4706 = vmul.f32 %v4700, %v998
      %v4707 = vmul.f32 %v4701, %v996
      %v4708 = vmul.f32 %v4702, %v994
      %v4709 = vmul.f32 %v4703, %v998
      %v4710 = vmul.f32 %v4704, %v996
      %4717 = vrot.lane.b32.xlu0 %v4705, 95
      %v4718 = vpop.permute.xlu0 %4717
      %4719 = vrot.lane.b32.xlu0 %v4706, 95
      %v4720 = vpop.permute.xlu0 %4719
      %4721 = vrot.lane.b32.xlu0 %v4707, 95
      %v4722 = vpop.permute.xlu0 %4721
      %4723 = vrot.lane.b32.xlu0 %v4708, 95
      %v4724 = vpop.permute.xlu0 %4723
      %4725 = vrot.lane.b32.xlu0 %v4709, 95
      %v4726 = vpop.permute.xlu0 %4725
      %4727 = vrot.lane.b32.xlu0 %v4710, 95
      %v4728 = vpop.permute.xlu0 %4727
      %v4729 = vsel %vm1026, %v4718, %v4720
      %v4730 = vsel %vm1026, %v4720, %v4722
      %v4731 = vsel %vm1026, %v4724, %v4726
      %v4732 = vsel %vm1026, %v4726, %v4728
      %4737 = vst [vmem:[#allocation3 + $0x60] sm:$0xff] %v4729
      %4738 = vst [vmem:[#allocation3 + $0x68] sm:$0xff] %v4730
      %4739 = vst [vmem:[#allocation3 + $0x70] sm:$0xff] %v4731
      %4740 = vst [vmem:[#allocation3 + $0x78] sm:$0xff] %v4732
      %v4741 = vld [vmem:[#allocation2] sm:$0xff]
      %v4742 = vld [vmem:[#allocation2 + $0x8] sm:$0xff]
      %v4743 = vld [vmem:[#allocation2 + $0x10] sm:$0xff]
      %v4744 = vld [vmem:[#allocation2 + $0x18] sm:$0xff]
      %v4745 = vld [vmem:[#allocation2 + $0x20] sm:$0xff]
      %v4746 = vld [vmem:[#allocation2 + $0x28] sm:$0xff]
      %4753 = vrot.lane.b32.xlu0 %v4741, 94
      %v4754 = vpop.permute.xlu0 %4753
      %4755 = vrot.lane.b32.xlu0 %v4742, 94
      %v4756 = vpop.permute.xlu0 %4755
      %4757 = vrot.lane.b32.xlu0 %v4743, 94
      %v4758 = vpop.permute.xlu0 %4757
      %4759 = vrot.lane.b32.xlu0 %v4744, 94
      %v4760 = vpop.permute.xlu0 %4759
      %4761 = vrot.lane.b32.xlu0 %v4745, 94
      %v4762 = vpop.permute.xlu0 %4761
      %4763 = vrot.lane.b32.xlu0 %v4746, 94
      %v4764 = vpop.permute.xlu0 %4763
      %v4765 = vsel %vm1063, %v4754, %v4756
      %v4766 = vsel %vm1063, %v4756, %v4758
      %v4767 = vsel %vm1063, %v4760, %v4762
      %v4768 = vsel %vm1063, %v4762, %v4764
      %4773 = vst [vmem:[#allocation3 + $0x80] sm:$0xff] %v4765
      %4774 = vst [vmem:[#allocation3 + $0x88] sm:$0xff] %v4766
      %4775 = vst [vmem:[#allocation3 + $0x90] sm:$0xff] %v4767
      %4776 = vst [vmem:[#allocation3 + $0x98] sm:$0xff] %v4768
      %v4777 = vld [vmem:[#allocation2] sm:$0xff]
      %v4778 = vld [vmem:[#allocation2 + $0x8] sm:$0xff]
      %v4779 = vld [vmem:[#allocation2 + $0x10] sm:$0xff]
      %v4780 = vld [vmem:[#allocation2 + $0x18] sm:$0xff]
      %v4781 = vld [vmem:[#allocation2 + $0x20] sm:$0xff]
      %v4782 = vld [vmem:[#allocation2 + $0x28] sm:$0xff]
      %v4783 = vmul.f32 %v4777, %v1083
      %v4784 = vmul.f32 %v4778, %v1087
      %v4785 = vmul.f32 %v4779, %v1085
      %v4786 = vmul.f32 %v4780, %v1083
      %v4787 = vmul.f32 %v4781, %v1087
      %v4788 = vmul.f32 %v4782, %v1085
      %4795 = vrot.lane.b32.xlu0 %v4783, 93
      %v4796 = vpop.permute.xlu0 %4795
      %4797 = vrot.lane.b32.xlu0 %v4784, 93
      %v4798 = vpop.permute.xlu0 %4797
      %4799 = vrot.lane.b32.xlu0 %v4785, 93
      %v4800 = vpop.permute.xlu0 %4799
      %4801 = vrot.lane.b32.xlu0 %v4786, 93
      %v4802 = vpop.permute.xlu0 %4801
      %4803 = vrot.lane.b32.xlu0 %v4787, 93
      %v4804 = vpop.permute.xlu0 %4803
      %4805 = vrot.lane.b32.xlu0 %v4788, 93
      %v4806 = vpop.permute.xlu0 %4805
      %v4807 = vsel %vm1115, %v4796, %v4798
      %v4808 = vsel %vm1115, %v4798, %v4800
      %v4809 = vsel %vm1115, %v4802, %v4804
      %v4810 = vsel %vm1115, %v4804, %v4806
      %4815 = vst [vmem:[#allocation3 + $0xa0] sm:$0xff] %v4807
      %4816 = vst [vmem:[#allocation3 + $0xa8] sm:$0xff] %v4808
      %4817 = vst [vmem:[#allocation3 + $0xb0] sm:$0xff] %v4809
      %4818 = vst [vmem:[#allocation3 + $0xb8] sm:$0xff] %v4810
      %v4819 = vld [vmem:[#allocation2] sm:$0xff]
      %v4820 = vld [vmem:[#allocation2 + $0x8] sm:$0xff]
      %v4821 = vld [vmem:[#allocation2 + $0x10] sm:$0xff]
      %v4822 = vld [vmem:[#allocation2 + $0x18] sm:$0xff]
      %v4823 = vld [vmem:[#allocation2 + $0x20] sm:$0xff]
      %v4824 = vld [vmem:[#allocation2 + $0x28] sm:$0xff]
      %v4825 = vmul.f32 %v4819, %v1239
      %v4826 = vmul.f32 %v4820, %v1243
      %v4827 = vmul.f32 %v4821, %v1241
      %v4828 = vmul.f32 %v4822, %v1239
      %v4829 = vmul.f32 %v4823, %v1243
      %v4830 = vmul.f32 %v4824, %v1241
      %4837 = vrot.lane.b32.xlu0 %v4825, 79
      %v4838 = vpop.permute.xlu0 %4837
      %4839 = vrot.lane.b32.xlu0 %v4826, 79
      %v4840 = vpop.permute.xlu0 %4839
      %4841 = vrot.lane.b32.xlu0 %v4827, 79
      %v4842 = vpop.permute.xlu0 %4841
      %4843 = vrot.lane.b32.xlu0 %v4828, 79
      %v4844 = vpop.permute.xlu0 %4843
      %4845 = vrot.lane.b32.xlu0 %v4829, 79
      %v4846 = vpop.permute.xlu0 %4845
      %4847 = vrot.lane.b32.xlu0 %v4830, 79
      %v4848 = vpop.permute.xlu0 %4847
      %v4849 = vsel %vm1271, %v4838, %v4840
      %v4850 = vsel %vm1271, %v4840, %v4842
      %v4851 = vsel %vm1271, %v4844, %v4846
      %v4852 = vsel %vm1271, %v4846, %v4848
      %4857 = vst [vmem:[#allocation3 + $0xc0] sm:$0xff] %v4849
      %4858 = vst [vmem:[#allocation3 + $0xc8] sm:$0xff] %v4850
      %4859 = vst [vmem:[#allocation3 + $0xd0] sm:$0xff] %v4851
      %4860 = vst [vmem:[#allocation3 + $0xd8] sm:$0xff] %v4852
      %v4861 = vld [vmem:[#allocation2] sm:$0xff]
      %v4862 = vld [vmem:[#allocation2 + $0x8] sm:$0xff]
      %v4863 = vld [vmem:[#allocation2 + $0x10] sm:$0xff]
      %v4864 = vld [vmem:[#allocation2 + $0x18] sm:$0xff]
      %v4865 = vld [vmem:[#allocation2 + $0x20] sm:$0xff]
      %v4866 = vld [vmem:[#allocation2 + $0x28] sm:$0xff]
      %4873 = vrot.lane.b32.xlu0 %v4861, 78
      %v4874 = vpop.permute.xlu0 %4873
      %4875 = vrot.lane.b32.xlu0 %v4862, 78
      %v4876 = vpop.permute.xlu0 %4875
      %4877 = vrot.lane.b32.xlu0 %v4863, 78
      %v4878 = vpop.permute.xlu0 %4877
      %4879 = vrot.lane.b32.xlu0 %v4864, 78
      %v4880 = vpop.permute.xlu0 %4879
      %4881 = vrot.lane.b32.xlu0 %v4865, 78
      %v4882 = vpop.permute.xlu0 %4881
      %4883 = vrot.lane.b32.xlu0 %v4866, 78
      %v4884 = vpop.permute.xlu0 %4883
      %v4885 = vsel %vm1308, %v4874, %v4876
      %v4886 = vsel %vm1308, %v4876, %v4878
      %v4887 = vsel %vm1308, %v4880, %v4882
      %v4888 = vsel %vm1308, %v4882, %v4884
      %4893 = vst [vmem:[#allocation3 + $0xe0] sm:$0xff] %v4885
      %4894 = vst [vmem:[#allocation3 + $0xe8] sm:$0xff] %v4886
      %4895 = vst [vmem:[#allocation3 + $0xf0] sm:$0xff] %v4887
      %4896 = vst [vmem:[#allocation3 + $0xf8] sm:$0xff] %v4888
      %v4897 = vld [vmem:[#allocation2] sm:$0xff]
      %v4898 = vld [vmem:[#allocation2 + $0x8] sm:$0xff]
      %v4899 = vld [vmem:[#allocation2 + $0x10] sm:$0xff]
      %v4900 = vld [vmem:[#allocation2 + $0x18] sm:$0xff]
      %v4901 = vld [vmem:[#allocation2 + $0x20] sm:$0xff]
      %v4902 = vld [vmem:[#allocation2 + $0x28] sm:$0xff]
      %v4903 = vmul.f32 %v4897, %v1328
      %v4904 = vmul.f32 %v4898, %v1332
      %v4905 = vmul.f32 %v4899, %v1330
      %v4906 = vmul.f32 %v4900, %v1328
      %v4907 = vmul.f32 %v4901, %v1332
      %v4908 = vmul.f32 %v4902, %v1330
      %4915 = vrot.lane.b32.xlu0 %v4903, 77
      %v4916 = vpop.permute.xlu0 %4915
      %4917 = vrot.lane.b32.xlu0 %v4904, 77
      %v4918 = vpop.permute.xlu0 %4917
      %4919 = vrot.lane.b32.xlu0 %v4905, 77
      %v4920 = vpop.permute.xlu0 %4919
      %4921 = vrot.lane.b32.xlu0 %v4906, 77
      %v4922 = vpop.permute.xlu0 %4921
      %4923 = vrot.lane.b32.xlu0 %v4907, 77
      %v4924 = vpop.permute.xlu0 %4923
      %4925 = vrot.lane.b32.xlu0 %v4908, 77
      %v4926 = vpop.permute.xlu0 %4925
      %v4927 = vsel %vm1360, %v4916, %v4918
      %v4928 = vsel %vm1360, %v4918, %v4920
      %v4929 = vsel %vm1360, %v4922, %v4924
      %v4930 = vsel %vm1360, %v4924, %v4926
      %4935 = vst [vmem:[#allocation3 + $0x100] sm:$0xff] %v4927
      %4936 = vst [vmem:[#allocation3 + $0x108] sm:$0xff] %v4928
      %4937 = vst [vmem:[#allocation3 + $0x110] sm:$0xff] %v4929
      %4938 = vst [vmem:[#allocation3 + $0x118] sm:$0xff] %v4930
      %v4939 = vld [vmem:[%s9] sm:$0xff]
      %v4940 = vld [vmem:[#allocation3] sm:$0xff]
      %v4941 = vld [vmem:[#allocation3 + $0x8] sm:$0xff]
      %v4942 = vld [vmem:[#allocation3 + $0x10] sm:$0xff]
      %v4943 = vld [vmem:[#allocation3 + $0x18] sm:$0xff]
      %v4944 = vld [vmem:[#allocation3 + $0x20] sm:$0xff]
      %v4945 = vld [vmem:[#allocation3 + $0x28] sm:$0xff]
      %v4946 = vld [vmem:[#allocation3 + $0x30] sm:$0xff]
      %v4947 = vld [vmem:[#allocation3 + $0x38] sm:$0xff]
      %v4948 = vld [vmem:[#allocation3 + $0x40] sm:$0xff]
      %v4949 = vld [vmem:[#allocation3 + $0x48] sm:$0xff]
      %v4950 = vld [vmem:[#allocation3 + $0x50] sm:$0xff]
      %v4951 = vld [vmem:[#allocation3 + $0x58] sm:$0xff]
      %v4952 = vld [vmem:[#allocation3 + $0x60] sm:$0xff]
      %v4953 = vld [vmem:[#allocation3 + $0x68] sm:$0xff]
      %v4954 = vld [vmem:[#allocation3 + $0x70] sm:$0xff]
      %v4955 = vld [vmem:[#allocation3 + $0x78] sm:$0xff]
      %v4956 = vld [vmem:[#allocation3 + $0x80] sm:$0xff]
      %v4957 = vld [vmem:[#allocation3 + $0x88] sm:$0xff]
      %v4958 = vld [vmem:[#allocation3 + $0x90] sm:$0xff]
      %v4959 = vld [vmem:[#allocation3 + $0x98] sm:$0xff]
      %v4960 = vld [vmem:[#allocation3 + $0xa0] sm:$0xff]
      %v4961 = vld [vmem:[#allocation3 + $0xa8] sm:$0xff]
      %v4962 = vld [vmem:[#allocation3 + $0xb0] sm:$0xff]
      %v4963 = vld [vmem:[#allocation3 + $0xb8] sm:$0xff]
      %v4964 = vld [vmem:[#allocation3 + $0xc0] sm:$0xff]
      %v4965 = vld [vmem:[#allocation3 + $0xc8] sm:$0xff]
      %v4966 = vld [vmem:[#allocation3 + $0xd0] sm:$0xff]
      %v4967 = vld [vmem:[#allocation3 + $0xd8] sm:$0xff]
      %v4968 = vld [vmem:[#allocation3 + $0xe0] sm:$0xff]
      %v4969 = vld [vmem:[#allocation3 + $0xe8] sm:$0xff]
      %v4970 = vld [vmem:[#allocation3 + $0xf0] sm:$0xff]
      %v4971 = vld [vmem:[#allocation3 + $0xf8] sm:$0xff]
      %v4972 = vld [vmem:[#allocation3 + $0x100] sm:$0xff]
      %v4973 = vld [vmem:[#allocation3 + $0x108] sm:$0xff]
      %v4974 = vld [vmem:[#allocation3 + $0x110] sm:$0xff]
      %v4975 = vld [vmem:[#allocation3 + $0x118] sm:$0xff]
      %v4976 = vld [vmem:[%s10] sm:$0xf]
      %4978 = vset.pattern.permute.xlu0 0
      %4979 = vperm.xlu0 %4978, %v4976
      %v4980 = vpop.permute.xlu0 %4979
      %v4983 = vcombine.high %v4939, %v4939
      %v4984 = vsel %vm700, %v4983, 0
      %4986 = vmatprep.subr.mxu0 %v4941
      %4987 = vmatpush1.msra.mxu0 %v4940
      %4988 = vmatprep.subr.mxu0 %v4943
      %4989 = vmatpush1.msra.mxu0 %v4942
      %4990 = vmatprep.subr.mxu0 %v4945
      %4991 = vmatpush1.msra.mxu0 %v4944
      %4992 = vmatprep.subr.mxu0 %v4947
      %4993 = vmatpush1.msra.mxu0 %v4946
      %4994 = vmatprep.subr.mxu0 %v4949
      %4995 = vmatpush1.msra.mxu0 %v4948
      %4996 = vmatprep.subr.mxu0 %v4951
      %4997 = vmatpush1.msra.mxu0 %v4950
      %4998 = vmatprep.subr.mxu0 %v4953
      %4999 = vmatpush1.msra.mxu0 %v4952
      %5000 = vmatprep.subr.mxu0 %v4955
      %5001 = vmatpush1.msra.mxu0 %v4954
      %5002 = vmatprep.subr.mxu0 %v4957
      %5003 = vmatpush1.msra.mxu0 %v4956
      %5004 = vmatprep.subr.mxu0 %v4959
      %5005 = vmatpush1.msra.mxu0 %v4958
      %5006 = vmatprep.subr.mxu0 %v4961
      %5007 = vmatpush1.msra.mxu0 %v4960
      %5008 = vmatprep.subr.mxu0 %v4963
      %5009 = vmatpush1.msra.mxu0 %v4962
      %5010 = vmatprep.subr.mxu0 %v4965
      %5011 = vmatpush1.msra.mxu0 %v4964
      %5012 = vmatprep.subr.mxu0 %v4967
      %5013 = vmatpush1.msra.mxu0 %v4966
      %5014 = vmatprep.subr.mxu0 %v4969
      %5015 = vmatpush1.msra.mxu0 %v4968
      %5016 = vmatprep.subr.mxu0 %v4971
      %5017 = vmatpush1.msra.mxu0 %v4970
      %5018 = vmatprep.subr.mxu0 %v4973
      %5019 = vmatpush1.msra.mxu0 %v4972
      %5020 = vmatprep.subr.mxu0 %v4975
      %5021 = vmatpush1.msra.mxu0 %v4974
      %5022 = vmatprep.subr.mxu0 0.0
      %5023 = vmatpush1.msra.mxu0 0.0
      %5024 = vmatprep.subr.mxu0 0.0
      %5025 = vmatpush1.msra.mxu0 0.0
      %5026 = vmatprep.subr.mxu0 0.0
      %5027 = vmatpush1.msra.mxu0 0.0
      %5028 = vmatprep.subr.mxu0 0.0
      %5029 = vmatpush1.msra.mxu0 0.0
      %5030 = vmatprep.subr.mxu0 0.0
      %5031 = vmatpush1.msra.mxu0 0.0
      %5032 = vmatprep.subr.mxu0 0.0
      %5033 = vmatpush1.msra.mxu0 0.0
      %5034 = vmatprep.subr.mxu0 0.0
      %5035 = vmatpush1.msra.mxu0 0.0
      %5036 = vmatprep.subr.mxu0 0.0
      %5037 = vmatpush1.msra.mxu0 0.0
      %5038 = vmatprep.subr.mxu0 0.0
      %5039 = vmatpush1.msra.mxu0 0.0
      %5040 = vmatprep.subr.mxu0 0.0
      %5041 = vmatpush1.msra.mxu0 0.0
      %5042 = vmatprep.subr.mxu0 0.0
      %5043 = vmatpush1.msra.mxu0 0.0
      %5044 = vmatprep.subr.mxu0 0.0
      %5045 = vmatpush1.msra.mxu0 0.0
      %5046 = vmatprep.subr.mxu0 0.0
      %5047 = vmatpush1.msra.mxu0 0.0
      %5048 = vmatprep.subr.mxu0 0.0
      %5049 = vmatpush1.msra.mxu0 0.0
      %5050 = vmatprep.mubr.f32.mxu0 %v4984
      %5051 = vmatmul.mubr.f32.gmra.mrb[0].mxu0 %v4939
      %v5052 = vpop.f32.mrb[0].mxu0
      %v5053 = vadd.f32 %v4980, %v5052
      %v5054 = vpop.f32.mrb[0].mxu0
      %v5055 = vadd.f32 %v4980, %v5054
      %5056 = vdwg.mxu0
      %v5059 = vcombine.low %v5053, %v5055
      %5061 = vst [vmem:[%s386] sm:$0xff] %v5059
      %p5062 = scmp.lt.s32.totalorder %s22, 1
      %s5063 = scalar_select %p5062, %s22, 1
      %s5064 = smul.addr %s5063, 2
      %s5065 = smul.addr %s5064, 4
      %s5066 = scalar_lea.vmem %s11, %s5065
      // Predicated region
      $region65: #{decoder_forward.1} parent=63 // pred_check
        %p5067 = pneg %p276
      $region66: #{decoder_forward.1} parent=63 // pred_check_branch
        %5069 = sbr.rel (%p5067) target = $region68
      $region67: #{decoder_forward.1} parent=63 // pred_region
        _
      $region68: #{decoder_forward.1} parent=63 // pred_fallthru
        _
    $region64: #{decoder_forward.1} parent=5 // pred_fallthru
      _
    %p5070 = scmp.le.s32.totalorder 2, %s17
    // Predicated region
    $region69: #{decoder_forward.1} parent=5 // pred_check
      %p5071 = pneg %p5070
    $region70: #{decoder_forward.1} parent=5 // pred_check_branch
      %5073 = sbr.rel (%p5071) target = $region72
    $region71: #{decoder_forward.1} parent=5 // pred_region
      %s5074 = ssub.s32 %s17, 2
      // Predicated region
      $region73: #{decoder_forward.1} parent=71 // pred_check
        %p5075 = pneg %p282
      $region74: #{decoder_forward.1} parent=71 // pred_check_branch
        %5077 = sbr.rel (%p5075) target = $region76
      $region75: #{decoder_forward.1} parent=71 // pred_region
        %p5078 = scmp.lt.s32.totalorder %s23, 1
        %s5079 = scalar_select %p5078, %s23, 1
        %s5080 = smul.addr %s5079, 2
        %s5081 = smul.addr %s5080, 4
        %s5082 = scalar_lea.vmem %s11, %s5081
      $region76: #{decoder_forward.1} parent=71 // pred_fallthru
        _
    $region72: #{decoder_forward.1} parent=5 // pred_fallthru
      _
  $region6: #{decoder_forward.1} parent=0 // loop_footer
    %s21 = sadd.s32 1, %s17
  $region7: #{decoder_forward.1} parent=0 // loop_footer_branch
    %16 = sbr.rel target = $region3
  $region8: #{decoder_forward.1} parent=0 // loop_exit
    _

</llo_original>
